<compile_context>
chip_gen: v6e
topology: v6e:2x2x1
jax: 0.10.0
libtpu: 0.0.40
codegen_flags: <defaults>
</compile_context>

<pallas_src>
import functools

import numpy as np
import jax
import jax.numpy as jnp
from jax import lax
from jax.experimental import pallas as pl
from jax.experimental.pallas import tpu as pltpu

_HALO = 128  # lane halo on each side of the flat activations (>= W+1); 128 keeps
             # all hot stores lane-aligned.


# ----------------------------------------------------------------------------
# Host-side helpers (run once / at trace time)
# ----------------------------------------------------------------------------
def _tap_masks(n_imgs, H, W):
    """(9, n_imgs*H*W) 0/1 masks: tap (dh,dw) is valid at output (h,w)."""
    hh, ww = np.meshgrid(np.arange(H), np.arange(W), indexing="ij")
    rows = []
    for dh in (-1, 0, 1):
        for dw in (-1, 0, 1):
            ok = ((hh + dh >= 0) & (hh + dh < H) &
                  (ww + dw >= 0) & (ww + dw < W))
            rows.append(np.tile(ok.reshape(-1), n_imgs).astype(np.float32))
    return np.stack(rows, axis=0)


def _full_spec(arr):
    nd = arr.ndim
    return pl.BlockSpec(arr.shape, lambda i, _nd=nd: (0,) * _nd)


# ----------------------------------------------------------------------------
# Fused Pallas kernel
# ----------------------------------------------------------------------------
def _make_siamese_kernel(n_branch_layers, n_joint_layers, H, W,
                         n_samples, n_branches, col0):
    HW = H * W
    Mj = n_samples * HW                 # lane columns in the joint stage
    Mb = n_branches * Mj                # lane columns in the batched branch stage
    shifts = [dh * W + dw for dh in (-1, 0, 1) for dw in (-1, 0, 1)]
    n_conv = n_branch_layers + n_joint_layers

    def conv3x3_relu(src_ref, w_ref, b_ref, mask_ref, cols_ref, dst_ref, M):
        """dst[:Cout, col0:col0+M] = relu(W @ masked_im2col(src) + b) — one MXU GEMM."""
        cout = w_ref.shape[0]
        cin = w_ref.shape[1] // 9
        # Build the masked im2col operand in bf16.  Mask multiply happens in
        # f32 (v5e-friendly) on the narrow Cin-row operand; centre tap (t==4)
        # has an all-ones mask so its multiply is skipped.
        for t, s in enumerate(shifts):
            xs = src_ref[:cin, col0 + s: col0 + s + M].astype(jnp.float32)
            if t != 4:
                xs = mask_ref[t:t + 1, :M].astype(jnp.float32) * xs
            cols_ref[t * cin:(t + 1) * cin, :M] = xs.astype(cols_ref.dtype)
        # One K = 9*Cin matmul per layer (v7x accumulates in the MRB).
        acc = jnp.dot(w_ref[...], cols_ref[:9 * cin, :M],
                      preferred_element_type=jnp.float32)
        dst_ref[:cout, col0:col0 + M] = jnp.maximum(acc + b_ref[...], 0.0)

    def kernel(*refs):
        x_ref, mask_ref = refs[0], refs[1]
        conv_refs = [(refs[2 + 2 * i], refs[3 + 2 * i]) for i in range(n_conv)]
        acls_ref = refs[2 + 2 * n_conv]
        bcls_ref = refs[3 + 2 * n_conv]
        out_ref = refs[4 + 2 * n_conv]
        bufs = [refs[5 + 2 * n_conv], refs[6 + 2 * n_conv]]
        cols_ref = refs[7 + 2 * n_conv]

        # Zero only the halo strips: masked taps may read them, so they must be
        # finite (0 * NaN would poison the GEMM).  Every other region that is
        # ever read is written first.
        c_buf = bufs[0].shape[0]
        halo = jnp.zeros((c_buf, col0), bufs[0].dtype)
        for buf in bufs:
            buf[:, :col0] = halo
            buf[:, col0 + Mb:] = halo

        # ---- shared-weight branch stack, both branches batched on the lane axis
        src, dst = x_ref, 0
        for li in range(n_branch_layers):
            w_ref, b_ref = conv_refs[li]
            conv3x3_relu(src, w_ref, b_ref, mask_ref, cols_ref, bufs[dst], Mb)
            src, dst = bufs[dst], dst ^ 1

        # ---- x = |branch1 - branch0|   (f32)
        c_br = conv_refs[n_branch_layers - 1][0].shape[0]
        a0 = src[:c_br, col0: col0 + Mj]
        a1 = src[:c_br, col0 + Mj: col0 + 2 * Mj]
        bufs[dst][:c_br, col0: col0 + Mj] = jnp.abs(a1 - a0)
        src, dst = bufs[dst], dst ^ 1
        # TODO(synk): n_branches == 3 concat path not implemented (the original
        # torch.cat(x, ..., 1) call is ill-formed anyway).

        # ---- joint stack (reuses the first Mj mask columns; valid because the
        #      per-image mask pattern is identical for every image).
        for li in range(n_joint_layers):
            w_ref, b_ref = conv_refs[n_branch_layers + li]
            conv3x3_relu(src, w_ref, b_ref, mask_ref, cols_ref, bufs[dst], Mj)
            src, dst = bufs[dst], dst ^ 1

        # adaptive_avg_pool2d((H, W)) is the identity here (joint keeps H, W).
        # TODO(synk): spatial-size-changing joint stacks (real resampling) not implemented.

        # ---- classifier on the NCHW flatten: vectorized over classes/channels,
        #      single full-block store of the (n_classes, n_samples) result.
        c_j = conv_refs[-1][0].shape[0]
        y = src[:c_j, col0: col0 + Mj]              # (C_joint, N*HW) f32
        acls = acls_ref[...]                        # (K, C_joint, HW) f32
        cols_out = []
        for n in range(n_samples):                  # tiny static loop (N samples)
            y_n = y[:, n * HW:(n + 1) * HW]         # (C_joint, HW)
            prod = acls * y_n                       # (K, C_joint, HW)
            r = jnp.sum(prod, axis=-1)              # (K, C_joint)   lane reduce
            cols_out.append(jnp.sum(r, axis=-1, keepdims=True))   # (K, 1)
        out_ref[...] = jnp.concatenate(cols_out, axis=1) + bcls_ref[...]

    return kernel


# ----------------------------------------------------------------------------
# Forward wrapper
# ----------------------------------------------------------------------------
def siamese_net_forward(kparams, data, n_branches=2):
    """data: (n_branches, batch, C, H, W) float32, PyTorch NCHW layout."""
    if n_branches != 2 or data.shape[0] != 2:
        raise NotImplementedError("only the 2-branch training path is implemented")
    _, N, C, H, W = data.shape
    Mj = N * H * W
    Mb = n_branches * Mj
    col0 = _HALO

    conv_wbs = list(kparams["branches"]) + list(kparams["joint"])
    acls, bcls = kparams["classifier"]
    n_classes = int(acls.shape[0])
    c_buf = max(int(w.shape[0]) for (w, _) in conv_wbs)          # max Cout
    cin_max = max(int(w.shape[1]) // 9 for (w, _) in conv_wbs)   # max Cin

    # Host-side layout prep (tiny, one XLA fusion): NCHW -> channel-major flat
    # (C, n_branches*batch*H*W) with a zero lane halo.  bf16 is fine here: the
    # input only ever feeds the bf16 MXU operand (cols).
    x = jnp.transpose(data, (2, 0, 1, 3, 4)).reshape(C, Mb)
    x = jnp.pad(x, ((0, 0), (col0, col0))).astype(jnp.bfloat16)

    # 0/1 masks are exact in bf16 -> half the un-overlapped prologue DMA.
    masks = jnp.asarray(_tap_masks(n_branches * N, H, W), jnp.bfloat16)

    inputs = [x, masks]
    for (w, b) in conv_wbs:
        inputs += [w, b]
    inputs += [acls, bcls]

    kernel = _make_siamese_kernel(
        len(kparams["branches"]), len(kparams["joint"]),
        H, W, N, n_branches, col0)

    buf_w = col0 + Mb + col0
    out_kn = pl.pallas_call(
        kernel,
        grid=(1,),
        in_specs=[_full_spec(a) for a in inputs],
        out_specs=pl.BlockSpec((n_classes, N), lambda i: (0, 0)),
        out_shape=jax.ShapeDtypeStruct((n_classes, N), jnp.float32),
        scratch_shapes=[pltpu.VMEM((c_buf, buf_w), jnp.float32),      # ping
                        pltpu.VMEM((c_buf, buf_w), jnp.float32),      # pong
                        pltpu.VMEM((9 * cin_max, Mb), jnp.bfloat16)], # im2col cols
    )(*inputs)
    return out_kn.T   # (batch, n_classes); transposing 6 floats host-side is free.


# ----------------------------------------------------------------------------
# Parameters (PyTorch layout) + one-time kernel-layout preparation
# ----------------------------------------------------------------------------
def init_params(key, c_in=4, c_br=8, c_joint=16, h=16, w=16, n_classes=3):
    """Synthetic params in PyTorch layout (Conv2d: (Cout,Cin,3,3); Linear: (out,in))."""
    ks = jax.random.split(key, 8)
    s = 0.1
    nrm = jax.random.normal
    return {
        "branches": [
            (s * nrm(ks[0], (c_br, c_in, 3, 3), jnp.float32), s * nrm(ks[1], (c_br,), jnp.float32)),
            (s * nrm(ks[2], (c_br, c_br, 3, 3), jnp.float32), s * nrm(ks[3], (c_br,), jnp.float32)),
        ],
        "joint": [
            (s * nrm(ks[4], (c_joint, c_br, 3, 3), jnp.float32), s * nrm(ks[5], (c_joint,), jnp.float32)),
        ],
        "classifier": (
            s * nrm(ks[6], (n_classes, c_joint * h * w), jnp.float32),
            s * nrm(ks[7], (n_classes,), jnp.float32),
        ),
    }


def prepare_params(params):
    """One-time re-layout (and bf16 cast of conv weights) for the kernel."""
    def prep_conv(wt, b):
        co, ci = int(wt.shape[0]), int(wt.shape[1])
        # (Cout,Cin,3,3) -> (Cout, 9*Cin): tap-major blocks of Cin, matching the
        # im2col row layout (row = (kh*3+kw)*Cin + cin).  bf16 for the MXU.
        wk = jnp.transpose(wt, (0, 2, 3, 1)).reshape(co, 9 * ci).astype(jnp.bfloat16)
        return wk, b.reshape(co, 1).astype(jnp.float32)

    branches = [prep_conv(w, b) for (w, b) in params["branches"]]
    joint = [prep_conv(w, b) for (w, b) in params["joint"]]
    wc, bc = params["classifier"]
    c_joint = int(joint[-1][0].shape[0])
    hw = int(wc.shape[1]) // c_joint
    # Classifier weights in the kernel's channel-major layout (K, C_joint, H*W),
    # kept f32 (classifier stays on the VPU in f32; bf16 would only save 24 KiB DMA).
    acls = wc.reshape(int(wc.shape[0]), c_joint, hw).astype(jnp.float32)
    bcls = bc.reshape(-1, 1).astype(jnp.float32)   # (K, 1): kernel emits (K, N)
    return {"branches": branches, "joint": joint, "classifier": (acls, bcls)}


# ----------------------------------------------------------------------------
# Pure-JAX reference of the PyTorch forward (for the numerical self-check)
# ----------------------------------------------------------------------------
def reference_forward(params, data):
    def conv_stack(x, layers):
        for wt, b in layers:
            x = lax.conv_general_dilated(
                x, wt, window_strides=(1, 1), padding=((1, 1), (1, 1)),
                dimension_numbers=("NCHW", "OIHW", "NCHW"),
                precision=lax.Precision.HIGHEST)
            x = jnp.maximum(x + b[None, :, None, None], 0.0)
        return x

    res = [conv_stack(data[j], params["branches"]) for j in range(data.shape[0])]
    x = jnp.abs(res[1] - res[0])
    x = conv_stack(x, params["joint"])
    # adaptive_avg_pool2d to the input spatial size is the identity here.
    wc, bc = params["classifier"]
    x = x.reshape(x.shape[0], -1)
    return jnp.dot(x, wc.T, precision=lax.Precision.HIGHEST) + bc


if __name__ == "__main__":
    key = jax.random.PRNGKey(0)
    k_data, k_param = jax.random.split(key)

    n_branches, batch, c_in, h, w = 2, 2, 4, 16, 16
    data = jax.random.normal(k_data, (n_branches, batch, c_in, h, w), jnp.float32)
    params = init_params(k_param, c_in=c_in, h=h, w=w)
    kparams = prepare_params(params)

    fwd = jax.jit(functools.partial(siamese_net_forward, n_branches=n_branches))
    out = jax.block_until_ready(fwd(kparams, data))
    assert out.shape == (batch, 3) and out.dtype == jnp.float32

    # numerical self-check vs. a pure-JAX replica of the PyTorch forward
    ref = reference_forward(params, data)
    err = float(jnp.max(jnp.abs(out - ref)))
    assert err < 1e-1, f"kernel/reference mismatch: max abs err = {err}"
    print("KERNEL_OK")
</pallas_src>

<mosaic_0001>
module attributes {stable_mosaic.version = 11 : i64} {
  func.func @kernel(%arg0: i32, %arg1: memref<4x1280xbf16, #tpu.memory_space<vmem>>, %arg2: memref<9x1024xbf16, #tpu.memory_space<vmem>>, %arg3: memref<8x36xbf16, #tpu.memory_space<vmem>>, %arg4: memref<8x1xf32, #tpu.memory_space<vmem>>, %arg5: memref<8x72xbf16, #tpu.memory_space<vmem>>, %arg6: memref<8x1xf32, #tpu.memory_space<vmem>>, %arg7: memref<16x72xbf16, #tpu.memory_space<vmem>>, %arg8: memref<16x1xf32, #tpu.memory_space<vmem>>, %arg9: memref<3x16x256xf32, #tpu.memory_space<vmem>>, %arg10: memref<3x1xf32, #tpu.memory_space<vmem>>, %arg11: memref<3x2xf32, #tpu.memory_space<vmem>>, %arg12: memref<16x1280xf32, #tpu.memory_space<vmem>>, %arg13: memref<16x1280xf32, #tpu.memory_space<vmem>>, %arg14: memref<72x1024xbf16, #tpu.memory_space<vmem>>) attributes {dimension_semantics = [#tpu.dimension_semantics<arbitrary>], iteration_bounds = array<i64: 1>, scalar_prefetch = 0 : i64, scratch_operands = 3 : i64, tpu.core_type = #tpu.core_type<tc>, window_params = [{pipeline_mode = #tpu.pipeline_mode<synchronous>, transform_indices = @transform_0, window_bounds = array<i64: 4, 1280>}, {pipeline_mode = #tpu.pipeline_mode<synchronous>, transform_indices = @transform_1, window_bounds = array<i64: 9, 1024>}, {pipeline_mode = #tpu.pipeline_mode<synchronous>, transform_indices = @transform_2, window_bounds = array<i64: 8, 36>}, {pipeline_mode = #tpu.pipeline_mode<synchronous>, transform_indices = @transform_3, window_bounds = array<i64: 8, 1>}, {pipeline_mode = #tpu.pipeline_mode<synchronous>, transform_indices = @transform_4, window_bounds = array<i64: 8, 72>}, {pipeline_mode = #tpu.pipeline_mode<synchronous>, transform_indices = @transform_5, window_bounds = array<i64: 8, 1>}, {pipeline_mode = #tpu.pipeline_mode<synchronous>, transform_indices = @transform_6, window_bounds = array<i64: 16, 72>}, {pipeline_mode = #tpu.pipeline_mode<synchronous>, transform_indices = @transform_7, window_bounds = array<i64: 16, 1>}, {pipeline_mode = #tpu.pipeline_mode<synchronous>, transform_indices = @transform_8, window_bounds = array<i64: 3, 16, 256>}, {pipeline_mode = #tpu.pipeline_mode<synchronous>, transform_indices = @transform_9, window_bounds = array<i64: 3, 1>}, {pipeline_mode = #tpu.pipeline_mode<synchronous>, transform_indices = @transform_10, window_bounds = array<i64: 3, 2>}]} {
    %cst = arith.constant 0.000000e+00 : f32
    %0 = vector.broadcast %cst : f32 to vector<16x128xf32>
    %c0 = arith.constant 0 : index
    %c0_0 = arith.constant 0 : index
    %1 = vector.load %arg12[%c0, %c0_0] : memref<16x1280xf32, #tpu.memory_space<vmem>>, vector<16x128xf32>
    tpu.vector_store %arg12[%c0, %c0_0], %0 {strides = array<i32>} : memref<16x1280xf32, #tpu.memory_space<vmem>>, vector<16x128xf32>,
    %c0_1 = arith.constant 0 : index
    %c1152 = arith.constant 1152 : index
    %2 = vector.load %arg12[%c0_1, %c1152] : memref<16x1280xf32, #tpu.memory_space<vmem>>, vector<16x128xf32>
    tpu.vector_store %arg12[%c0_1, %c1152], %0 {strides = array<i32>} : memref<16x1280xf32, #tpu.memory_space<vmem>>, vector<16x128xf32>,
    %c0_2 = arith.constant 0 : index
    %c0_3 = arith.constant 0 : index
    %3 = vector.load %arg13[%c0_2, %c0_3] : memref<16x1280xf32, #tpu.memory_space<vmem>>, vector<16x128xf32>
    tpu.vector_store %arg13[%c0_2, %c0_3], %0 {strides = array<i32>} : memref<16x1280xf32, #tpu.memory_space<vmem>>, vector<16x128xf32>,
    %c0_4 = arith.constant 0 : index
    %c1152_5 = arith.constant 1152 : index
    %4 = vector.load %arg13[%c0_4, %c1152_5] : memref<16x1280xf32, #tpu.memory_space<vmem>>, vector<16x128xf32>
    tpu.vector_store %arg13[%c0_4, %c1152_5], %0 {strides = array<i32>} : memref<16x1280xf32, #tpu.memory_space<vmem>>, vector<16x128xf32>,
    %c0_6 = arith.constant 0 : index
    %c111 = arith.constant 111 : index
    %5 = vector.load %arg1[%c0_6, %c111] : memref<4x1280xbf16, #tpu.memory_space<vmem>>, vector<4x1024xbf16>
    %6 = arith.extf %5 : vector<4x1024xbf16> to vector<4x1024xf32>
    %c0_7 = arith.constant 0 : index
    %c0_8 = arith.constant 0 : index
    %7 = vector.load %arg2[%c0_7, %c0_8] : memref<9x1024xbf16, #tpu.memory_space<vmem>>, vector<1x1024xbf16>
    %8 = arith.extf %7 : vector<1x1024xbf16> to vector<1x1024xf32>
    %9 = vector.broadcast %8 : vector<1x1024xf32> to vector<4x1024xf32>
    %10 = arith.mulf %9, %6 : vector<4x1024xf32>
    %11 = arith.truncf %10 : vector<4x1024xf32> to vector<4x1024xbf16>
    %c0_9 = arith.constant 0 : index
    %c0_10 = arith.constant 0 : index
    %12 = vector.load %arg14[%c0_9, %c0_10] : memref<72x1024xbf16, #tpu.memory_space<vmem>>, vector<4x1024xbf16>
    tpu.vector_store %arg14[%c0_9, %c0_10], %11 {strides = array<i32>} : memref<72x1024xbf16, #tpu.memory_space<vmem>>, vector<4x1024xbf16>,
    %c0_11 = arith.constant 0 : index
    %c112 = arith.constant 112 : index
    %13 = vector.load %arg1[%c0_11, %c112] : memref<4x1280xbf16, #tpu.memory_space<vmem>>, vector<4x1024xbf16>
    %14 = arith.extf %13 : vector<4x1024xbf16> to vector<4x1024xf32>
    %c1 = arith.constant 1 : index
    %c0_12 = arith.constant 0 : index
    %15 = vector.load %arg2[%c1, %c0_12] : memref<9x1024xbf16, #tpu.memory_space<vmem>>, vector<1x1024xbf16>
    %16 = arith.extf %15 : vector<1x1024xbf16> to vector<1x1024xf32>
    %17 = vector.broadcast %16 : vector<1x1024xf32> to vector<4x1024xf32>
    %18 = arith.mulf %17, %14 : vector<4x1024xf32>
    %19 = arith.truncf %18 : vector<4x1024xf32> to vector<4x1024xbf16>
    %c4 = arith.constant 4 : index
    %c0_13 = arith.constant 0 : index
    %20 = vector.load %arg14[%c4, %c0_13] : memref<72x1024xbf16, #tpu.memory_space<vmem>>, vector<4x1024xbf16>
    tpu.vector_store %arg14[%c4, %c0_13], %19 {strides = array<i32>} : memref<72x1024xbf16, #tpu.memory_space<vmem>>, vector<4x1024xbf16>,
    %c0_14 = arith.constant 0 : index
    %c113 = arith.constant 113 : index
    %21 = vector.load %arg1[%c0_14, %c113] : memref<4x1280xbf16, #tpu.memory_space<vmem>>, vector<4x1024xbf16>
    %22 = arith.extf %21 : vector<4x1024xbf16> to vector<4x1024xf32>
    %c2 = arith.constant 2 : index
    %c0_15 = arith.constant 0 : index
    %23 = vector.load %arg2[%c2, %c0_15] : memref<9x1024xbf16, #tpu.memory_space<vmem>>, vector<1x1024xbf16>
    %24 = arith.extf %23 : vector<1x1024xbf16> to vector<1x1024xf32>
    %25 = vector.broadcast %24 : vector<1x1024xf32> to vector<4x1024xf32>
    %26 = arith.mulf %25, %22 : vector<4x1024xf32>
    %27 = arith.truncf %26 : vector<4x1024xf32> to vector<4x1024xbf16>
    %c8 = arith.constant 8 : index
    %c0_16 = arith.constant 0 : index
    %28 = vector.load %arg14[%c8, %c0_16] : memref<72x1024xbf16, #tpu.memory_space<vmem>>, vector<4x1024xbf16>
    tpu.vector_store %arg14[%c8, %c0_16], %27 {strides = array<i32>} : memref<72x1024xbf16, #tpu.memory_space<vmem>>, vector<4x1024xbf16>,
    %c0_17 = arith.constant 0 : index
    %c127 = arith.constant 127 : index
    %29 = vector.load %arg1[%c0_17, %c127] : memref<4x1280xbf16, #tpu.memory_space<vmem>>, vector<4x1024xbf16>
    %30 = arith.extf %29 : vector<4x1024xbf16> to vector<4x1024xf32>
    %c3 = arith.constant 3 : index
    %c0_18 = arith.constant 0 : index
    %31 = vector.load %arg2[%c3, %c0_18] : memref<9x1024xbf16, #tpu.memory_space<vmem>>, vector<1x1024xbf16>
    %32 = arith.extf %31 : vector<1x1024xbf16> to vector<1x1024xf32>
    %33 = vector.broadcast %32 : vector<1x1024xf32> to vector<4x1024xf32>
    %34 = arith.mulf %33, %30 : vector<4x1024xf32>
    %35 = arith.truncf %34 : vector<4x1024xf32> to vector<4x1024xbf16>
    %c12 = arith.constant 12 : index
    %c0_19 = arith.constant 0 : index
    %36 = vector.load %arg14[%c12, %c0_19] : memref<72x1024xbf16, #tpu.memory_space<vmem>>, vector<4x1024xbf16>
    tpu.vector_store %arg14[%c12, %c0_19], %35 {strides = array<i32>} : memref<72x1024xbf16, #tpu.memory_space<vmem>>, vector<4x1024xbf16>,
    %c0_20 = arith.constant 0 : index
    %c128 = arith.constant 128 : index
    %37 = vector.load %arg1[%c0_20, %c128] : memref<4x1280xbf16, #tpu.memory_space<vmem>>, vector<4x1024xbf16>
    %38 = arith.extf %37 : vector<4x1024xbf16> to vector<4x1024xf32>
    %39 = arith.truncf %38 : vector<4x1024xf32> to vector<4x1024xbf16>
    %c16 = arith.constant 16 : index
    %c0_21 = arith.constant 0 : index
    %40 = vector.load %arg14[%c16, %c0_21] : memref<72x1024xbf16, #tpu.memory_space<vmem>>, vector<4x1024xbf16>
    tpu.vector_store %arg14[%c16, %c0_21], %39 {strides = array<i32>} : memref<72x1024xbf16, #tpu.memory_space<vmem>>, vector<4x1024xbf16>,
    %c0_22 = arith.constant 0 : index
    %c129 = arith.constant 129 : index
    %41 = vector.load %arg1[%c0_22, %c129] : memref<4x1280xbf16, #tpu.memory_space<vmem>>, vector<4x1024xbf16>
    %42 = arith.extf %41 : vector<4x1024xbf16> to vector<4x1024xf32>
    %c5 = arith.constant 5 : index
    %c0_23 = arith.constant 0 : index
    %43 = vector.load %arg2[%c5, %c0_23] : memref<9x1024xbf16, #tpu.memory_space<vmem>>, vector<1x1024xbf16>
    %44 = arith.extf %43 : vector<1x1024xbf16> to vector<1x1024xf32>
    %45 = vector.broadcast %44 : vector<1x1024xf32> to vector<4x1024xf32>
    %46 = arith.mulf %45, %42 : vector<4x1024xf32>
    %47 = arith.truncf %46 : vector<4x1024xf32> to vector<4x1024xbf16>
    %c20 = arith.constant 20 : index
    %c0_24 = arith.constant 0 : index
    %48 = vector.load %arg14[%c20, %c0_24] : memref<72x1024xbf16, #tpu.memory_space<vmem>>, vector<4x1024xbf16>
    tpu.vector_store %arg14[%c20, %c0_24], %47 {strides = array<i32>} : memref<72x1024xbf16, #tpu.memory_space<vmem>>, vector<4x1024xbf16>,
    %c0_25 = arith.constant 0 : index
    %c143 = arith.constant 143 : index
    %49 = vector.load %arg1[%c0_25, %c143] : memref<4x1280xbf16, #tpu.memory_space<vmem>>, vector<4x1024xbf16>
    %50 = arith.extf %49 : vector<4x1024xbf16> to vector<4x1024xf32>
    %c6 = arith.constant 6 : index
    %c0_26 = arith.constant 0 : index
    %51 = vector.load %arg2[%c6, %c0_26] : memref<9x1024xbf16, #tpu.memory_space<vmem>>, vector<1x1024xbf16>
    %52 = arith.extf %51 : vector<1x1024xbf16> to vector<1x1024xf32>
    %53 = vector.broadcast %52 : vector<1x1024xf32> to vector<4x1024xf32>
    %54 = arith.mulf %53, %50 : vector<4x1024xf32>
    %55 = arith.truncf %54 : vector<4x1024xf32> to vector<4x1024xbf16>
    %c24 = arith.constant 24 : index
    %c0_27 = arith.constant 0 : index
    %56 = vector.load %arg14[%c24, %c0_27] : memref<72x1024xbf16, #tpu.memory_space<vmem>>, vector<4x1024xbf16>
    tpu.vector_store %arg14[%c24, %c0_27], %55 {strides = array<i32>} : memref<72x1024xbf16, #tpu.memory_space<vmem>>, vector<4x1024xbf16>,
    %c0_28 = arith.constant 0 : index
    %c144 = arith.constant 144 : index
    %57 = vector.load %arg1[%c0_28, %c144] : memref<4x1280xbf16, #tpu.memory_space<vmem>>, vector<4x1024xbf16>
    %58 = arith.extf %57 : vector<4x1024xbf16> to vector<4x1024xf32>
    %c7 = arith.constant 7 : index
    %c0_29 = arith.constant 0 : index
    %59 = vector.load %arg2[%c7, %c0_29] : memref<9x1024xbf16, #tpu.memory_space<vmem>>, vector<1x1024xbf16>
    %60 = arith.extf %59 : vector<1x1024xbf16> to vector<1x1024xf32>
    %61 = vector.broadcast %60 : vector<1x1024xf32> to vector<4x1024xf32>
    %62 = arith.mulf %61, %58 : vector<4x1024xf32>
    %63 = arith.truncf %62 : vector<4x1024xf32> to vector<4x1024xbf16>
    %c28 = arith.constant 28 : index
    %c0_30 = arith.constant 0 : index
    %64 = vector.load %arg14[%c28, %c0_30] : memref<72x1024xbf16, #tpu.memory_space<vmem>>, vector<4x1024xbf16>
    tpu.vector_store %arg14[%c28, %c0_30], %63 {strides = array<i32>} : memref<72x1024xbf16, #tpu.memory_space<vmem>>, vector<4x1024xbf16>,
    %c0_31 = arith.constant 0 : index
    %c145 = arith.constant 145 : index
    %65 = vector.load %arg1[%c0_31, %c145] : memref<4x1280xbf16, #tpu.memory_space<vmem>>, vector<4x1024xbf16>
    %66 = arith.extf %65 : vector<4x1024xbf16> to vector<4x1024xf32>
    %c8_32 = arith.constant 8 : index
    %c0_33 = arith.constant 0 : index
    %67 = vector.load %arg2[%c8_32, %c0_33] : memref<9x1024xbf16, #tpu.memory_space<vmem>>, vector<1x1024xbf16>
    %68 = arith.extf %67 : vector<1x1024xbf16> to vector<1x1024xf32>
    %69 = vector.broadcast %68 : vector<1x1024xf32> to vector<4x1024xf32>
    %70 = arith.mulf %69, %66 : vector<4x1024xf32>
    %71 = arith.truncf %70 : vector<4x1024xf32> to vector<4x1024xbf16>
    %c32 = arith.constant 32 : index
    %c0_34 = arith.constant 0 : index
    %72 = vector.load %arg14[%c32, %c0_34] : memref<72x1024xbf16, #tpu.memory_space<vmem>>, vector<4x1024xbf16>
    tpu.vector_store %arg14[%c32, %c0_34], %71 {strides = array<i32>} : memref<72x1024xbf16, #tpu.memory_space<vmem>>, vector<4x1024xbf16>,
    %c0_35 = arith.constant 0 : index
    %c0_36 = arith.constant 0 : index
    %73 = vector.load %arg3[%c0_35, %c0_36] : memref<8x36xbf16, #tpu.memory_space<vmem>>, vector<8x36xbf16>
    %c0_37 = arith.constant 0 : index
    %c0_38 = arith.constant 0 : index
    %74 = vector.load %arg14[%c0_37, %c0_38] : memref<72x1024xbf16, #tpu.memory_space<vmem>>, vector<36x1024xbf16>
    %cst_39 = arith.constant dense<0.000000e+00> : vector<8x1024xf32>
    %75 = tpu.matmul %73, %74, %cst_39 {dimension_numbers = #tpu.dot_dimension_numbers<[1], [0], [0], [1], [0, 0, 1, 1], [], []>} : vector<8x36xbf16>, vector<36x1024xbf16>, vector<8x1024xf32> -> vector<8x1024xf32>
    %c0_40 = arith.constant 0 : index
    %c0_41 = arith.constant 0 : index
    %76 = vector.load %arg4[%c0_40, %c0_41] : memref<8x1xf32, #tpu.memory_space<vmem>>, vector<8x1xf32>
    %77 = vector.broadcast %76 : vector<8x1xf32> to vector<8x1024xf32>
    %78 = arith.addf %75, %77 : vector<8x1024xf32>
    %cst_42 = arith.constant 0.000000e+00 : f32
    %79 = vector.broadcast %cst_42 : f32 to vector<8x1024xf32>
    %80 = arith.maximumf %78, %79 : vector<8x1024xf32>
    %c0_43 = arith.constant 0 : index
    %c128_44 = arith.constant 128 : index
    %81 = vector.load %arg12[%c0_43, %c128_44] : memref<16x1280xf32, #tpu.memory_space<vmem>>, vector<8x1024xf32>
    tpu.vector_store %arg12[%c0_43, %c128_44], %80 {strides = array<i32>} : memref<16x1280xf32, #tpu.memory_space<vmem>>, vector<8x1024xf32>,
    %c0_45 = arith.constant 0 : index
    %c111_46 = arith.constant 111 : index
    %82 = vector.load %arg12[%c0_45, %c111_46] : memref<16x1280xf32, #tpu.memory_space<vmem>>, vector<8x1024xf32>
    %c0_47 = arith.constant 0 : index
    %c0_48 = arith.constant 0 : index
    %83 = vector.load %arg2[%c0_47, %c0_48] : memref<9x1024xbf16, #tpu.memory_space<vmem>>, vector<1x1024xbf16>
    %84 = arith.extf %83 : vector<1x1024xbf16> to vector<1x1024xf32>
    %85 = vector.broadcast %84 : vector<1x1024xf32> to vector<8x1024xf32>
    %86 = arith.mulf %85, %82 : vector<8x1024xf32>
    %87 = arith.truncf %86 : vector<8x1024xf32> to vector<8x1024xbf16>
    %c0_49 = arith.constant 0 : index
    %c0_50 = arith.constant 0 : index
    %88 = vector.load %arg14[%c0_49, %c0_50] : memref<72x1024xbf16, #tpu.memory_space<vmem>>, vector<8x1024xbf16>
    tpu.vector_store %arg14[%c0_49, %c0_50], %87 {strides = array<i32>} : memref<72x1024xbf16, #tpu.memory_space<vmem>>, vector<8x1024xbf16>,
    %c0_51 = arith.constant 0 : index
    %c112_52 = arith.constant 112 : index
    %89 = vector.load %arg12[%c0_51, %c112_52] : memref<16x1280xf32, #tpu.memory_space<vmem>>, vector<8x1024xf32>
    %c1_53 = arith.constant 1 : index
    %c0_54 = arith.constant 0 : index
    %90 = vector.load %arg2[%c1_53, %c0_54] : memref<9x1024xbf16, #tpu.memory_space<vmem>>, vector<1x1024xbf16>
    %91 = arith.extf %90 : vector<1x1024xbf16> to vector<1x1024xf32>
    %92 = vector.broadcast %91 : vector<1x1024xf32> to vector<8x1024xf32>
    %93 = arith.mulf %92, %89 : vector<8x1024xf32>
    %94 = arith.truncf %93 : vector<8x1024xf32> to vector<8x1024xbf16>
    %c8_55 = arith.constant 8 : index
    %c0_56 = arith.constant 0 : index
    %95 = vector.load %arg14[%c8_55, %c0_56] : memref<72x1024xbf16, #tpu.memory_space<vmem>>, vector<8x1024xbf16>
    tpu.vector_store %arg14[%c8_55, %c0_56], %94 {strides = array<i32>} : memref<72x1024xbf16, #tpu.memory_space<vmem>>, vector<8x1024xbf16>,
    %c0_57 = arith.constant 0 : index
    %c113_58 = arith.constant 113 : index
    %96 = vector.load %arg12[%c0_57, %c113_58] : memref<16x1280xf32, #tpu.memory_space<vmem>>, vector<8x1024xf32>
    %c2_59 = arith.constant 2 : index
    %c0_60 = arith.constant 0 : index
    %97 = vector.load %arg2[%c2_59, %c0_60] : memref<9x1024xbf16, #tpu.memory_space<vmem>>, vector<1x1024xbf16>
    %98 = arith.extf %97 : vector<1x1024xbf16> to vector<1x1024xf32>
    %99 = vector.broadcast %98 : vector<1x1024xf32> to vector<8x1024xf32>
    %100 = arith.mulf %99, %96 : vector<8x1024xf32>
    %101 = arith.truncf %100 : vector<8x1024xf32> to vector<8x1024xbf16>
    %c16_61 = arith.constant 16 : index
    %c0_62 = arith.constant 0 : index
    %102 = vector.load %arg14[%c16_61, %c0_62] : memref<72x1024xbf16, #tpu.memory_space<vmem>>, vector<8x1024xbf16>
    tpu.vector_store %arg14[%c16_61, %c0_62], %101 {strides = array<i32>} : memref<72x1024xbf16, #tpu.memory_space<vmem>>, vector<8x1024xbf16>,
    %c0_63 = arith.constant 0 : index
    %c127_64 = arith.constant 127 : index
    %103 = vector.load %arg12[%c0_63, %c127_64] : memref<16x1280xf32, #tpu.memory_space<vmem>>, vector<8x1024xf32>
    %c3_65 = arith.constant 3 : index
    %c0_66 = arith.constant 0 : index
    %104 = vector.load %arg2[%c3_65, %c0_66] : memref<9x1024xbf16, #tpu.memory_space<vmem>>, vector<1x1024xbf16>
    %105 = arith.extf %104 : vector<1x1024xbf16> to vector<1x1024xf32>
    %106 = vector.broadcast %105 : vector<1x1024xf32> to vector<8x1024xf32>
    %107 = arith.mulf %106, %103 : vector<8x1024xf32>
    %108 = arith.truncf %107 : vector<8x1024xf32> to vector<8x1024xbf16>
    %c24_67 = arith.constant 24 : index
    %c0_68 = arith.constant 0 : index
    %109 = vector.load %arg14[%c24_67, %c0_68] : memref<72x1024xbf16, #tpu.memory_space<vmem>>, vector<8x1024xbf16>
    tpu.vector_store %arg14[%c24_67, %c0_68], %108 {strides = array<i32>} : memref<72x1024xbf16, #tpu.memory_space<vmem>>, vector<8x1024xbf16>,
    %c0_69 = arith.constant 0 : index
    %c128_70 = arith.constant 128 : index
    %110 = vector.load %arg12[%c0_69, %c128_70] : memref<16x1280xf32, #tpu.memory_space<vmem>>, vector<8x1024xf32>
    %111 = arith.truncf %110 : vector<8x1024xf32> to vector<8x1024xbf16>
    %c32_71 = arith.constant 32 : index
    %c0_72 = arith.constant 0 : index
    %112 = vector.load %arg14[%c32_71, %c0_72] : memref<72x1024xbf16, #tpu.memory_space<vmem>>, vector<8x1024xbf16>
    tpu.vector_store %arg14[%c32_71, %c0_72], %111 {strides = array<i32>} : memref<72x1024xbf16, #tpu.memory_space<vmem>>, vector<8x1024xbf16>,
    %c0_73 = arith.constant 0 : index
    %c129_74 = arith.constant 129 : index
    %113 = vector.load %arg12[%c0_73, %c129_74] : memref<16x1280xf32, #tpu.memory_space<vmem>>, vector<8x1024xf32>
    %c5_75 = arith.constant 5 : index
    %c0_76 = arith.constant 0 : index
    %114 = vector.load %arg2[%c5_75, %c0_76] : memref<9x1024xbf16, #tpu.memory_space<vmem>>, vector<1x1024xbf16>
    %115 = arith.extf %114 : vector<1x1024xbf16> to vector<1x1024xf32>
    %116 = vector.broadcast %115 : vector<1x1024xf32> to vector<8x1024xf32>
    %117 = arith.mulf %116, %113 : vector<8x1024xf32>
    %118 = arith.truncf %117 : vector<8x1024xf32> to vector<8x1024xbf16>
    %c40 = arith.constant 40 : index
    %c0_77 = arith.constant 0 : index
    %119 = vector.load %arg14[%c40, %c0_77] : memref<72x1024xbf16, #tpu.memory_space<vmem>>, vector<8x1024xbf16>
    tpu.vector_store %arg14[%c40, %c0_77], %118 {strides = array<i32>} : memref<72x1024xbf16, #tpu.memory_space<vmem>>, vector<8x1024xbf16>,
    %c0_78 = arith.constant 0 : index
    %c143_79 = arith.constant 143 : index
    %120 = vector.load %arg12[%c0_78, %c143_79] : memref<16x1280xf32, #tpu.memory_space<vmem>>, vector<8x1024xf32>
    %c6_80 = arith.constant 6 : index
    %c0_81 = arith.constant 0 : index
    %121 = vector.load %arg2[%c6_80, %c0_81] : memref<9x1024xbf16, #tpu.memory_space<vmem>>, vector<1x1024xbf16>
    %122 = arith.extf %121 : vector<1x1024xbf16> to vector<1x1024xf32>
    %123 = vector.broadcast %122 : vector<1x1024xf32> to vector<8x1024xf32>
    %124 = arith.mulf %123, %120 : vector<8x1024xf32>
    %125 = arith.truncf %124 : vector<8x1024xf32> to vector<8x1024xbf16>
    %c48 = arith.constant 48 : index
    %c0_82 = arith.constant 0 : index
    %126 = vector.load %arg14[%c48, %c0_82] : memref<72x1024xbf16, #tpu.memory_space<vmem>>, vector<8x1024xbf16>
    tpu.vector_store %arg14[%c48, %c0_82], %125 {strides = array<i32>} : memref<72x1024xbf16, #tpu.memory_space<vmem>>, vector<8x1024xbf16>,
    %c0_83 = arith.constant 0 : index
    %c144_84 = arith.constant 144 : index
    %127 = vector.load %arg12[%c0_83, %c144_84] : memref<16x1280xf32, #tpu.memory_space<vmem>>, vector<8x1024xf32>
    %c7_85 = arith.constant 7 : index
    %c0_86 = arith.constant 0 : index
    %128 = vector.load %arg2[%c7_85, %c0_86] : memref<9x1024xbf16, #tpu.memory_space<vmem>>, vector<1x1024xbf16>
    %129 = arith.extf %128 : vector<1x1024xbf16> to vector<1x1024xf32>
    %130 = vector.broadcast %129 : vector<1x1024xf32> to vector<8x1024xf32>
    %131 = arith.mulf %130, %127 : vector<8x1024xf32>
    %132 = arith.truncf %131 : vector<8x1024xf32> to vector<8x1024xbf16>
    %c56 = arith.constant 56 : index
    %c0_87 = arith.constant 0 : index
    %133 = vector.load %arg14[%c56, %c0_87] : memref<72x1024xbf16, #tpu.memory_space<vmem>>, vector<8x1024xbf16>
    tpu.vector_store %arg14[%c56, %c0_87], %132 {strides = array<i32>} : memref<72x1024xbf16, #tpu.memory_space<vmem>>, vector<8x1024xbf16>,
    %c0_88 = arith.constant 0 : index
    %c145_89 = arith.constant 145 : index
    %134 = vector.load %arg12[%c0_88, %c145_89] : memref<16x1280xf32, #tpu.memory_space<vmem>>, vector<8x1024xf32>
    %c8_90 = arith.constant 8 : index
    %c0_91 = arith.constant 0 : index
    %135 = vector.load %arg2[%c8_90, %c0_91] : memref<9x1024xbf16, #tpu.memory_space<vmem>>, vector<1x1024xbf16>
    %136 = arith.extf %135 : vector<1x1024xbf16> to vector<1x1024xf32>
    %137 = vector.broadcast %136 : vector<1x1024xf32> to vector<8x1024xf32>
    %138 = arith.mulf %137, %134 : vector<8x1024xf32>
    %139 = arith.truncf %138 : vector<8x1024xf32> to vector<8x1024xbf16>
    %c64 = arith.constant 64 : index
    %c0_92 = arith.constant 0 : index
    %140 = vector.load %arg14[%c64, %c0_92] : memref<72x1024xbf16, #tpu.memory_space<vmem>>, vector<8x1024xbf16>
    tpu.vector_store %arg14[%c64, %c0_92], %139 {strides = array<i32>} : memref<72x1024xbf16, #tpu.memory_space<vmem>>, vector<8x1024xbf16>,
    %c0_93 = arith.constant 0 : index
    %c0_94 = arith.constant 0 : index
    %141 = vector.load %arg5[%c0_93, %c0_94] : memref<8x72xbf16, #tpu.memory_space<vmem>>, vector<8x72xbf16>
    %c0_95 = arith.constant 0 : index
    %c0_96 = arith.constant 0 : index
    %142 = vector.load %arg14[%c0_95, %c0_96] : memref<72x1024xbf16, #tpu.memory_space<vmem>>, vector<72x1024xbf16>
    %cst_97 = arith.constant dense<0.000000e+00> : vector<8x1024xf32>
    %143 = tpu.matmul %141, %142, %cst_97 {dimension_numbers = #tpu.dot_dimension_numbers<[1], [0], [0], [1], [0, 0, 1, 1], [], []>} : vector<8x72xbf16>, vector<72x1024xbf16>, vector<8x1024xf32> -> vector<8x1024xf32>
    %c0_98 = arith.constant 0 : index
    %c0_99 = arith.constant 0 : index
    %144 = vector.load %arg6[%c0_98, %c0_99] : memref<8x1xf32, #tpu.memory_space<vmem>>, vector<8x1xf32>
    %145 = vector.broadcast %144 : vector<8x1xf32> to vector<8x1024xf32>
    %146 = arith.addf %143, %145 : vector<8x1024xf32>
    %cst_100 = arith.constant 0.000000e+00 : f32
    %147 = vector.broadcast %cst_100 : f32 to vector<8x1024xf32>
    %148 = arith.maximumf %146, %147 : vector<8x1024xf32>
    %c0_101 = arith.constant 0 : index
    %c128_102 = arith.constant 128 : index
    %149 = vector.load %arg13[%c0_101, %c128_102] : memref<16x1280xf32, #tpu.memory_space<vmem>>, vector<8x1024xf32>
    tpu.vector_store %arg13[%c0_101, %c128_102], %148 {strides = array<i32>} : memref<16x1280xf32, #tpu.memory_space<vmem>>, vector<8x1024xf32>,
    %c0_103 = arith.constant 0 : index
    %c128_104 = arith.constant 128 : index
    %150 = vector.load %arg13[%c0_103, %c128_104] : memref<16x1280xf32, #tpu.memory_space<vmem>>, vector<8x512xf32>
    %c0_105 = arith.constant 0 : index
    %c640 = arith.constant 640 : index
    %151 = vector.load %arg13[%c0_105, %c640] : memref<16x1280xf32, #tpu.memory_space<vmem>>, vector<8x512xf32>
    %152 = arith.subf %151, %150 : vector<8x512xf32>
    %153 = math.absf %152 : vector<8x512xf32>
    %c0_106 = arith.constant 0 : index
    %c128_107 = arith.constant 128 : index
    %154 = vector.load %arg12[%c0_106, %c128_107] : memref<16x1280xf32, #tpu.memory_space<vmem>>, vector<8x512xf32>
    tpu.vector_store %arg12[%c0_106, %c128_107], %153 {strides = array<i32>} : memref<16x1280xf32, #tpu.memory_space<vmem>>, vector<8x512xf32>,
    %c0_108 = arith.constant 0 : index
    %c111_109 = arith.constant 111 : index
    %155 = vector.load %arg12[%c0_108, %c111_109] : memref<16x1280xf32, #tpu.memory_space<vmem>>, vector<8x512xf32>
    %c0_110 = arith.constant 0 : index
    %c0_111 = arith.constant 0 : index
    %156 = vector.load %arg2[%c0_110, %c0_111] : memref<9x1024xbf16, #tpu.memory_space<vmem>>, vector<1x512xbf16>
    %157 = arith.extf %156 : vector<1x512xbf16> to vector<1x512xf32>
    %158 = vector.broadcast %157 : vector<1x512xf32> to vector<8x512xf32>
    %159 = arith.mulf %158, %155 : vector<8x512xf32>
    %160 = arith.truncf %159 : vector<8x512xf32> to vector<8x512xbf16>
    %c0_112 = arith.constant 0 : index
    %c0_113 = arith.constant 0 : index
    %161 = vector.load %arg14[%c0_112, %c0_113] : memref<72x1024xbf16, #tpu.memory_space<vmem>>, vector<8x512xbf16>
    tpu.vector_store %arg14[%c0_112, %c0_113], %160 {strides = array<i32>} : memref<72x1024xbf16, #tpu.memory_space<vmem>>, vector<8x512xbf16>,
    %c0_114 = arith.constant 0 : index
    %c112_115 = arith.constant 112 : index
    %162 = vector.load %arg12[%c0_114, %c112_115] : memref<16x1280xf32, #tpu.memory_space<vmem>>, vector<8x512xf32>
    %c1_116 = arith.constant 1 : index
    %c0_117 = arith.constant 0 : index
    %163 = vector.load %arg2[%c1_116, %c0_117] : memref<9x1024xbf16, #tpu.memory_space<vmem>>, vector<1x512xbf16>
    %164 = arith.extf %163 : vector<1x512xbf16> to vector<1x512xf32>
    %165 = vector.broadcast %164 : vector<1x512xf32> to vector<8x512xf32>
    %166 = arith.mulf %165, %162 : vector<8x512xf32>
    %167 = arith.truncf %166 : vector<8x512xf32> to vector<8x512xbf16>
    %c8_118 = arith.constant 8 : index
    %c0_119 = arith.constant 0 : index
    %168 = vector.load %arg14[%c8_118, %c0_119] : memref<72x1024xbf16, #tpu.memory_space<vmem>>, vector<8x512xbf16>
    tpu.vector_store %arg14[%c8_118, %c0_119], %167 {strides = array<i32>} : memref<72x1024xbf16, #tpu.memory_space<vmem>>, vector<8x512xbf16>,
    %c0_120 = arith.constant 0 : index
    %c113_121 = arith.constant 113 : index
    %169 = vector.load %arg12[%c0_120, %c113_121] : memref<16x1280xf32, #tpu.memory_space<vmem>>, vector<8x512xf32>
    %c2_122 = arith.constant 2 : index
    %c0_123 = arith.constant 0 : index
    %170 = vector.load %arg2[%c2_122, %c0_123] : memref<9x1024xbf16, #tpu.memory_space<vmem>>, vector<1x512xbf16>
    %171 = arith.extf %170 : vector<1x512xbf16> to vector<1x512xf32>
    %172 = vector.broadcast %171 : vector<1x512xf32> to vector<8x512xf32>
    %173 = arith.mulf %172, %169 : vector<8x512xf32>
    %174 = arith.truncf %173 : vector<8x512xf32> to vector<8x512xbf16>
    %c16_124 = arith.constant 16 : index
    %c0_125 = arith.constant 0 : index
    %175 = vector.load %arg14[%c16_124, %c0_125] : memref<72x1024xbf16, #tpu.memory_space<vmem>>, vector<8x512xbf16>
    tpu.vector_store %arg14[%c16_124, %c0_125], %174 {strides = array<i32>} : memref<72x1024xbf16, #tpu.memory_space<vmem>>, vector<8x512xbf16>,
    %c0_126 = arith.constant 0 : index
    %c127_127 = arith.constant 127 : index
    %176 = vector.load %arg12[%c0_126, %c127_127] : memref<16x1280xf32, #tpu.memory_space<vmem>>, vector<8x512xf32>
    %c3_128 = arith.constant 3 : index
    %c0_129 = arith.constant 0 : index
    %177 = vector.load %arg2[%c3_128, %c0_129] : memref<9x1024xbf16, #tpu.memory_space<vmem>>, vector<1x512xbf16>
    %178 = arith.extf %177 : vector<1x512xbf16> to vector<1x512xf32>
    %179 = vector.broadcast %178 : vector<1x512xf32> to vector<8x512xf32>
    %180 = arith.mulf %179, %176 : vector<8x512xf32>
    %181 = arith.truncf %180 : vector<8x512xf32> to vector<8x512xbf16>
    %c24_130 = arith.constant 24 : index
    %c0_131 = arith.constant 0 : index
    %182 = vector.load %arg14[%c24_130, %c0_131] : memref<72x1024xbf16, #tpu.memory_space<vmem>>, vector<8x512xbf16>
    tpu.vector_store %arg14[%c24_130, %c0_131], %181 {strides = array<i32>} : memref<72x1024xbf16, #tpu.memory_space<vmem>>, vector<8x512xbf16>,
    %c0_132 = arith.constant 0 : index
    %c128_133 = arith.constant 128 : index
    %183 = vector.load %arg12[%c0_132, %c128_133] : memref<16x1280xf32, #tpu.memory_space<vmem>>, vector<8x512xf32>
    %184 = arith.truncf %183 : vector<8x512xf32> to vector<8x512xbf16>
    %c32_134 = arith.constant 32 : index
    %c0_135 = arith.constant 0 : index
    %185 = vector.load %arg14[%c32_134, %c0_135] : memref<72x1024xbf16, #tpu.memory_space<vmem>>, vector<8x512xbf16>
    tpu.vector_store %arg14[%c32_134, %c0_135], %184 {strides = array<i32>} : memref<72x1024xbf16, #tpu.memory_space<vmem>>, vector<8x512xbf16>,
    %c0_136 = arith.constant 0 : index
    %c129_137 = arith.constant 129 : index
    %186 = vector.load %arg12[%c0_136, %c129_137] : memref<16x1280xf32, #tpu.memory_space<vmem>>, vector<8x512xf32>
    %c5_138 = arith.constant 5 : index
    %c0_139 = arith.constant 0 : index
    %187 = vector.load %arg2[%c5_138, %c0_139] : memref<9x1024xbf16, #tpu.memory_space<vmem>>, vector<1x512xbf16>
    %188 = arith.extf %187 : vector<1x512xbf16> to vector<1x512xf32>
    %189 = vector.broadcast %188 : vector<1x512xf32> to vector<8x512xf32>
    %190 = arith.mulf %189, %186 : vector<8x512xf32>
    %191 = arith.truncf %190 : vector<8x512xf32> to vector<8x512xbf16>
    %c40_140 = arith.constant 40 : index
    %c0_141 = arith.constant 0 : index
    %192 = vector.load %arg14[%c40_140, %c0_141] : memref<72x1024xbf16, #tpu.memory_space<vmem>>, vector<8x512xbf16>
    tpu.vector_store %arg14[%c40_140, %c0_141], %191 {strides = array<i32>} : memref<72x1024xbf16, #tpu.memory_space<vmem>>, vector<8x512xbf16>,
    %c0_142 = arith.constant 0 : index
    %c143_143 = arith.constant 143 : index
    %193 = vector.load %arg12[%c0_142, %c143_143] : memref<16x1280xf32, #tpu.memory_space<vmem>>, vector<8x512xf32>
    %c6_144 = arith.constant 6 : index
    %c0_145 = arith.constant 0 : index
    %194 = vector.load %arg2[%c6_144, %c0_145] : memref<9x1024xbf16, #tpu.memory_space<vmem>>, vector<1x512xbf16>
    %195 = arith.extf %194 : vector<1x512xbf16> to vector<1x512xf32>
    %196 = vector.broadcast %195 : vector<1x512xf32> to vector<8x512xf32>
    %197 = arith.mulf %196, %193 : vector<8x512xf32>
    %198 = arith.truncf %197 : vector<8x512xf32> to vector<8x512xbf16>
    %c48_146 = arith.constant 48 : index
    %c0_147 = arith.constant 0 : index
    %199 = vector.load %arg14[%c48_146, %c0_147] : memref<72x1024xbf16, #tpu.memory_space<vmem>>, vector<8x512xbf16>
    tpu.vector_store %arg14[%c48_146, %c0_147], %198 {strides = array<i32>} : memref<72x1024xbf16, #tpu.memory_space<vmem>>, vector<8x512xbf16>,
    %c0_148 = arith.constant 0 : index
    %c144_149 = arith.constant 144 : index
    %200 = vector.load %arg12[%c0_148, %c144_149] : memref<16x1280xf32, #tpu.memory_space<vmem>>, vector<8x512xf32>
    %c7_150 = arith.constant 7 : index
    %c0_151 = arith.constant 0 : index
    %201 = vector.load %arg2[%c7_150, %c0_151] : memref<9x1024xbf16, #tpu.memory_space<vmem>>, vector<1x512xbf16>
    %202 = arith.extf %201 : vector<1x512xbf16> to vector<1x512xf32>
    %203 = vector.broadcast %202 : vector<1x512xf32> to vector<8x512xf32>
    %204 = arith.mulf %203, %200 : vector<8x512xf32>
    %205 = arith.truncf %204 : vector<8x512xf32> to vector<8x512xbf16>
    %c56_152 = arith.constant 56 : index
    %c0_153 = arith.constant 0 : index
    %206 = vector.load %arg14[%c56_152, %c0_153] : memref<72x1024xbf16, #tpu.memory_space<vmem>>, vector<8x512xbf16>
    tpu.vector_store %arg14[%c56_152, %c0_153], %205 {strides = array<i32>} : memref<72x1024xbf16, #tpu.memory_space<vmem>>, vector<8x512xbf16>,
    %c0_154 = arith.constant 0 : index
    %c145_155 = arith.constant 145 : index
    %207 = vector.load %arg12[%c0_154, %c145_155] : memref<16x1280xf32, #tpu.memory_space<vmem>>, vector<8x512xf32>
    %c8_156 = arith.constant 8 : index
    %c0_157 = arith.constant 0 : index
    %208 = vector.load %arg2[%c8_156, %c0_157] : memref<9x1024xbf16, #tpu.memory_space<vmem>>, vector<1x512xbf16>
    %209 = arith.extf %208 : vector<1x512xbf16> to vector<1x512xf32>
    %210 = vector.broadcast %209 : vector<1x512xf32> to vector<8x512xf32>
    %211 = arith.mulf %210, %207 : vector<8x512xf32>
    %212 = arith.truncf %211 : vector<8x512xf32> to vector<8x512xbf16>
    %c64_158 = arith.constant 64 : index
    %c0_159 = arith.constant 0 : index
    %213 = vector.load %arg14[%c64_158, %c0_159] : memref<72x1024xbf16, #tpu.memory_space<vmem>>, vector<8x512xbf16>
    tpu.vector_store %arg14[%c64_158, %c0_159], %212 {strides = array<i32>} : memref<72x1024xbf16, #tpu.memory_space<vmem>>, vector<8x512xbf16>,
    %c0_160 = arith.constant 0 : index
    %c0_161 = arith.constant 0 : index
    %214 = vector.load %arg7[%c0_160, %c0_161] : memref<16x72xbf16, #tpu.memory_space<vmem>>, vector<16x72xbf16>
    %c0_162 = arith.constant 0 : index
    %c0_163 = arith.constant 0 : index
    %215 = vector.load %arg14[%c0_162, %c0_163] : memref<72x1024xbf16, #tpu.memory_space<vmem>>, vector<72x512xbf16>
    %cst_164 = arith.constant dense<0.000000e+00> : vector<16x512xf32>
    %216 = tpu.matmul %214, %215, %cst_164 {dimension_numbers = #tpu.dot_dimension_numbers<[1], [0], [0], [1], [0, 0, 1, 1], [], []>} : vector<16x72xbf16>, vector<72x512xbf16>, vector<16x512xf32> -> vector<16x512xf32>
    %c0_165 = arith.constant 0 : index
    %c0_166 = arith.constant 0 : index
    %217 = vector.load %arg8[%c0_165, %c0_166] : memref<16x1xf32, #tpu.memory_space<vmem>>, vector<16x1xf32>
    %218 = vector.broadcast %217 : vector<16x1xf32> to vector<16x512xf32>
    %219 = arith.addf %216, %218 : vector<16x512xf32>
    %cst_167 = arith.constant 0.000000e+00 : f32
    %220 = vector.broadcast %cst_167 : f32 to vector<16x512xf32>
    %221 = arith.maximumf %219, %220 : vector<16x512xf32>
    %c0_168 = arith.constant 0 : index
    %c128_169 = arith.constant 128 : index
    %222 = vector.load %arg13[%c0_168, %c128_169] : memref<16x1280xf32, #tpu.memory_space<vmem>>, vector<16x512xf32>
    tpu.vector_store %arg13[%c0_168, %c128_169], %221 {strides = array<i32>} : memref<16x1280xf32, #tpu.memory_space<vmem>>, vector<16x512xf32>,
    %c0_170 = arith.constant 0 : index
    %c128_171 = arith.constant 128 : index
    %223 = vector.load %arg13[%c0_170, %c128_171] : memref<16x1280xf32, #tpu.memory_space<vmem>>, vector<16x512xf32>
    %c0_172 = arith.constant 0 : index
    %c0_173 = arith.constant 0 : index
    %c0_174 = arith.constant 0 : index
    %224 = vector.load %arg9[%c0_172, %c0_173, %c0_174] : memref<3x16x256xf32, #tpu.memory_space<vmem>>, vector<3x16x256xf32>
    %225 = vector.extract_strided_slice %223 {offsets = [0, 0], sizes = [16, 256], strides = [1, 1]} : vector<16x512xf32> to vector<16x256xf32>
    %226 = vector.shape_cast %225 : vector<16x256xf32> to vector<1x16x256xf32>
    %227 = vector.broadcast %226 : vector<1x16x256xf32> to vector<3x16x256xf32>
    %228 = arith.mulf %224, %227 : vector<3x16x256xf32>
    %cst_175 = arith.constant dense<0.000000e+00> : vector<3x16xf32>
    %229 = vector.multi_reduction <add>, %228, %cst_175 [2] : vector<3x16x256xf32> to vector<3x16xf32>
    %cst_176 = arith.constant dense<0.000000e+00> : vector<3xf32>
    %230 = vector.multi_reduction <add>, %229, %cst_176 [1] : vector<3x16xf32> to vector<3xf32>
    %231 = vector.shape_cast %230 : vector<3xf32> to vector<3x1xf32>
    %232 = vector.extract_strided_slice %223 {offsets = [0, 256], sizes = [16, 256], strides = [1, 1]} : vector<16x512xf32> to vector<16x256xf32>
    %233 = vector.shape_cast %232 : vector<16x256xf32> to vector<1x16x256xf32>
    %234 = vector.broadcast %233 : vector<1x16x256xf32> to vector<3x16x256xf32>
    %235 = arith.mulf %224, %234 : vector<3x16x256xf32>
    %cst_177 = arith.constant dense<0.000000e+00> : vector<3x16xf32>
    %236 = vector.multi_reduction <add>, %235, %cst_177 [2] : vector<3x16x256xf32> to vector<3x16xf32>
    %cst_178 = arith.constant dense<0.000000e+00> : vector<3xf32>
    %237 = vector.multi_reduction <add>, %236, %cst_178 [1] : vector<3x16xf32> to vector<3xf32>
    %238 = vector.shape_cast %237 : vector<3xf32> to vector<3x1xf32>
    %239 = tpu.concatenate %231, %238 in 1 : vector<3x1xf32>, vector<3x1xf32> -> vector<3x2xf32>
    %c0_179 = arith.constant 0 : index
    %c0_180 = arith.constant 0 : index
    %240 = vector.load %arg10[%c0_179, %c0_180] : memref<3x1xf32, #tpu.memory_space<vmem>>, vector<3x1xf32>
    %241 = vector.broadcast %240 : vector<3x1xf32> to vector<3x2xf32>
    %242 = arith.addf %239, %241 : vector<3x2xf32>
    %c0_181 = arith.constant 0 : index
    %c0_182 = arith.constant 0 : index
    %243 = vector.load %arg11[%c0_181, %c0_182] : memref<3x2xf32, #tpu.memory_space<vmem>>, vector<3x2xf32>
    tpu.vector_store %arg11[%c0_181, %c0_182], %242 {strides = array<i32>} : memref<3x2xf32, #tpu.memory_space<vmem>>, vector<3x2xf32>,
    return
  }
  func.func @transform_0(%arg0: i32) -> (i32, i32) {
    %c0_i32 = arith.constant 0 : i32
    %c0_i32_0 = arith.constant 0 : i32
    %c0_i32_1 = arith.constant 0 : i32
    return %c0_i32, %c0_i32_0 : i32, i32
  }
  func.func @transform_1(%arg0: i32) -> (i32, i32) {
    %c0_i32 = arith.constant 0 : i32
    %c0_i32_0 = arith.constant 0 : i32
    %c0_i32_1 = arith.constant 0 : i32
    return %c0_i32, %c0_i32_0 : i32, i32
  }
  func.func @transform_2(%arg0: i32) -> (i32, i32) {
    %c0_i32 = arith.constant 0 : i32
    %c0_i32_0 = arith.constant 0 : i32
    %c0_i32_1 = arith.constant 0 : i32
    return %c0_i32, %c0_i32_0 : i32, i32
  }
  func.func @transform_3(%arg0: i32) -> (i32, i32) {
    %c0_i32 = arith.constant 0 : i32
    %c0_i32_0 = arith.constant 0 : i32
    %c0_i32_1 = arith.constant 0 : i32
    return %c0_i32, %c0_i32_0 : i32, i32
  }
  func.func @transform_4(%arg0: i32) -> (i32, i32) {
    %c0_i32 = arith.constant 0 : i32
    %c0_i32_0 = arith.constant 0 : i32
    %c0_i32_1 = arith.constant 0 : i32
    return %c0_i32, %c0_i32_0 : i32, i32
  }
  func.func @transform_5(%arg0: i32) -> (i32, i32) {
    %c0_i32 = arith.constant 0 : i32
    %c0_i32_0 = arith.constant 0 : i32
    %c0_i32_1 = arith.constant 0 : i32
    return %c0_i32, %c0_i32_0 : i32, i32
  }
  func.func @transform_6(%arg0: i32) -> (i32, i32) {
    %c0_i32 = arith.constant 0 : i32
    %c0_i32_0 = arith.constant 0 : i32
    %c0_i32_1 = arith.constant 0 : i32
    return %c0_i32, %c0_i32_0 : i32, i32
  }
  func.func @transform_7(%arg0: i32) -> (i32, i32) {
    %c0_i32 = arith.constant 0 : i32
    %c0_i32_0 = arith.constant 0 : i32
    %c0_i32_1 = arith.constant 0 : i32
    return %c0_i32, %c0_i32_0 : i32, i32
  }
  func.func @transform_8(%arg0: i32) -> (i32, i32, i32) {
    %c0_i32 = arith.constant 0 : i32
    %c0_i32_0 = arith.constant 0 : i32
    %c0_i32_1 = arith.constant 0 : i32
    %c0_i32_2 = arith.constant 0 : i32
    return %c0_i32, %c0_i32_0, %c0_i32_1 : i32, i32, i32
  }
  func.func @transform_9(%arg0: i32) -> (i32, i32) {
    %c0_i32 = arith.constant 0 : i32
    %c0_i32_0 = arith.constant 0 : i32
    %c0_i32_1 = arith.constant 0 : i32
    return %c0_i32, %c0_i32_0 : i32, i32
  }
  func.func @transform_10(%arg0: i32) -> (i32, i32) {
    %c0_i32 = arith.constant 0 : i32
    %c0_i32_0 = arith.constant 0 : i32
    %c0_i32_1 = arith.constant 0 : i32
    return %c0_i32, %c0_i32_0 : i32, i32
  }
}

</mosaic_0001>

<llo_original>
// kernel: siamese_net_forward.1
$region0: #{siamese_net_forward.1}
  #allocation0 [shape = 'u32[]', space=smem, size = 0x4, offset = 0x4, fixed_abs, tag = 'smem constant byte address 0x4 - core index']
  #allocation1 [shape = 'u32[144,128]{1,0:T(1,128)}', space=vmem, size = 0x12000, scoped, tag = 'internal scratch']
  #allocation2 [shape = 'f32[16,1280]{1,0:T(8,128)}', space=vmem, size = 0x14000, scoped, tag = 'scratch operand']
  #allocation3 [shape = 'f32[16,1280]{1,0:T(8,128)}', space=vmem, size = 0x14000, scoped, tag = 'scratch operand']
  #allocation4 [shape = 'bf16[72,1024]{1,0:T(8,128)(2,1)}', space=vmem, size = 0x24000, scoped, tag = 'scratch operand']
  %s0 = inlined_call_operand.vmem [shape: bf16[4,1280], index: 0, kind: input, shape index: {}]
  %s1 = inlined_call_operand.vmem [shape: bf16[9,1024], index: 1, kind: input, shape index: {}]
  %s2 = inlined_call_operand.vmem [shape: bf16[8,36], index: 2, kind: input, shape index: {}]
  %s3 = inlined_call_operand.vmem [shape: f32[8,1], index: 3, kind: input, shape index: {}]
  %s4 = inlined_call_operand.vmem [shape: bf16[8,72], index: 4, kind: input, shape index: {}]
  %s5 = inlined_call_operand.vmem [shape: f32[8,1], index: 5, kind: input, shape index: {}]
  %s6 = inlined_call_operand.vmem [shape: bf16[16,72], index: 6, kind: input, shape index: {}]
  %s7 = inlined_call_operand.vmem [shape: f32[16,1], index: 7, kind: input, shape index: {}]
  %s8 = inlined_call_operand.vmem [shape: f32[3,16,256], index: 8, kind: input, shape index: {}]
  %s9 = inlined_call_operand.vmem [shape: f32[3,1], index: 9, kind: input, shape index: {}]
  %s10 = inlined_call_operand.vmem [shape: f32[3,2], index: 10, kind: output, shape index: {}]
  %s11 = sld [smem:[#allocation0]]
  $region50: #{siamese_net_forward.1} parent=0
    _
  %s13 = ssub.s32 1, %s11
  %s14 = scalar_select 0, %s13, %s11
  // Predicated region
  $region2: #{siamese_net_forward.1} parent=0 // pred_check
    _
  $region3: #{siamese_net_forward.1} parent=0 // pred_check_branch
    %16 = sbr.rel (0) target = $region5
  $region4: #{siamese_net_forward.1} parent=0 // pred_region
    _
  $region5: #{siamese_net_forward.1} parent=0 // pred_fallthru
    _
  // Predicated region
  $region6: #{siamese_net_forward.1} parent=0 // pred_check
    _
  $region7: #{siamese_net_forward.1} parent=0 // pred_check_branch
    %18 = sbr.rel (0) target = $region9
  $region8: #{siamese_net_forward.1} parent=0 // pred_region
    _
  $region9: #{siamese_net_forward.1} parent=0 // pred_fallthru
    _
  // Predicated region
  $region10: #{siamese_net_forward.1} parent=0 // pred_check
    _
  $region11: #{siamese_net_forward.1} parent=0 // pred_check_branch
    %20 = sbr.rel (0) target = $region13
  $region12: #{siamese_net_forward.1} parent=0 // pred_region
    _
  $region13: #{siamese_net_forward.1} parent=0 // pred_fallthru
    _
  // Predicated region
  $region14: #{siamese_net_forward.1} parent=0 // pred_check
    _
  $region15: #{siamese_net_forward.1} parent=0 // pred_check_branch
    %22 = sbr.rel (0) target = $region17
  $region16: #{siamese_net_forward.1} parent=0 // pred_region
    _
  $region17: #{siamese_net_forward.1} parent=0 // pred_fallthru
    _
  // Predicated region
  $region18: #{siamese_net_forward.1} parent=0 // pred_check
    _
  $region19: #{siamese_net_forward.1} parent=0 // pred_check_branch
    %24 = sbr.rel (0) target = $region21
  $region20: #{siamese_net_forward.1} parent=0 // pred_region
    _
  $region21: #{siamese_net_forward.1} parent=0 // pred_fallthru
    _
  // Predicated region
  $region22: #{siamese_net_forward.1} parent=0 // pred_check
    _
  $region23: #{siamese_net_forward.1} parent=0 // pred_check_branch
    %26 = sbr.rel (0) target = $region25
  $region24: #{siamese_net_forward.1} parent=0 // pred_region
    _
  $region25: #{siamese_net_forward.1} parent=0 // pred_fallthru
    _
  // Predicated region
  $region26: #{siamese_net_forward.1} parent=0 // pred_check
    _
  $region27: #{siamese_net_forward.1} parent=0 // pred_check_branch
    %28 = sbr.rel (0) target = $region29
  $region28: #{siamese_net_forward.1} parent=0 // pred_region
    _
  $region29: #{siamese_net_forward.1} parent=0 // pred_fallthru
    _
  // Predicated region
  $region30: #{siamese_net_forward.1} parent=0 // pred_check
    _
  $region31: #{siamese_net_forward.1} parent=0 // pred_check_branch
    %30 = sbr.rel (0) target = $region33
  $region32: #{siamese_net_forward.1} parent=0 // pred_region
    _
  $region33: #{siamese_net_forward.1} parent=0 // pred_fallthru
    _
  // Predicated region
  $region34: #{siamese_net_forward.1} parent=0 // pred_check
    _
  $region35: #{siamese_net_forward.1} parent=0 // pred_check_branch
    %32 = sbr.rel (0) target = $region37
  $region36: #{siamese_net_forward.1} parent=0 // pred_region
    _
  $region37: #{siamese_net_forward.1} parent=0 // pred_fallthru
    _
  // Predicated region
  $region38: #{siamese_net_forward.1} parent=0 // pred_check
    _
  $region39: #{siamese_net_forward.1} parent=0 // pred_check_branch
    %34 = sbr.rel (0) target = $region41
  $region40: #{siamese_net_forward.1} parent=0 // pred_region
    _
  $region41: #{siamese_net_forward.1} parent=0 // pred_fallthru
    _
  %36 = vst [vmem:[#allocation2] sm:$0xff] 0.0
  %37 = vst [vmem:[#allocation2 + $0x50] sm:$0xff] 0.0
  %38 = vst [vmem:[#allocation2 + $0x48] sm:$0xff] 0.0
  %39 = vst [vmem:[#allocation2 + $0x98] sm:$0xff] 0.0
  %40 = vst [vmem:[#allocation3] sm:$0xff] 0.0
  %41 = vst [vmem:[#allocation3 + $0x50] sm:$0xff] 0.0
  %42 = vst [vmem:[#allocation3 + $0x48] sm:$0xff] 0.0
  %43 = vst [vmem:[#allocation3 + $0x98] sm:$0xff] 0.0
  %v44 = vld [vmem:[%s0] sm:$0xff]
  %v45 = vld [vmem:[%s0 + $0x8] sm:$0xff]
  %v46 = vld [vmem:[%s0 + $0x10] sm:$0x3]
  %v47 = vunpack.c.l.bf16 %v44
  %v48 = vunpack.c.h.bf16 %v44
  %v49 = vunpack.c.l.bf16 %v45
  %v50 = vunpack.c.h.bf16 %v45
  %v51 = vunpack.c.l.bf16 %v46
  %v52 = vld [vmem:[%s1] sm:$0x11]
  %v53 = vld [vmem:[%s1 + $0x8] sm:$0x11]
  %v54 = vld [vmem:[%s1 + $0x10] sm:$0x11]
  %v55 = vld [vmem:[%s1 + $0x18] sm:$0x11]
  %v56 = vunpack.c.l.bf16 %v52
  %v57 = vunpack.c.h.bf16 %v52
  %v58 = vunpack.c.l.bf16 %v53
  %v59 = vunpack.c.h.bf16 %v53
  %v60 = vunpack.c.l.bf16 %v54
  %v61 = vunpack.c.h.bf16 %v54
  %v62 = vunpack.c.l.bf16 %v55
  %v63 = vunpack.c.h.bf16 %v55
  %v64 = vlaneseq
  %v65 = vshrl.u32 %v64, 7
  %v66 = vsub.s32 0, %v65
  %v67 = vrot.slane %v56, %v66
  %v68 = vlaneseq
  %v69 = vshrl.u32 %v68, 7
  %v70 = vsub.s32 0, %v69
  %v71 = vrot.slane %v57, %v70
  %v72 = vlaneseq
  %v73 = vshrl.u32 %v72, 7
  %v74 = vsub.s32 0, %v73
  %v75 = vrot.slane %v58, %v74
  %v76 = vlaneseq
  %v77 = vshrl.u32 %v76, 7
  %v78 = vsub.s32 0, %v77
  %v79 = vrot.slane %v59, %v78
  %v80 = vlaneseq
  %v81 = vshrl.u32 %v80, 7
  %v82 = vsub.s32 0, %v81
  %v83 = vrot.slane %v60, %v82
  %v84 = vlaneseq
  %v85 = vshrl.u32 %v84, 7
  %v86 = vsub.s32 0, %v85
  %v87 = vrot.slane %v61, %v86
  %v88 = vlaneseq
  %v89 = vshrl.u32 %v88, 7
  %v90 = vsub.s32 0, %v89
  %v91 = vrot.slane %v62, %v90
  %v92 = vlaneseq
  %v93 = vshrl.u32 %v92, 7
  %v94 = vsub.s32 0, %v93
  %v95 = vrot.slane %v63, %v94
  %v101 = vcombine.high %v47, %v47
  %v102 = vcombine.high %v48, %v48
  %v103 = vcombine.high %v49, %v49
  %v104 = vcombine.high %v50, %v50
  %105 = vrot.lane.b32.xlu0 %v47, 17
  %v106 = vpop.permute.xlu0 %105
  %107 = vrot.lane.b32.xlu0 %v101, 17
  %v108 = vpop.permute.xlu0 %107
  %109 = vrot.lane.b32.xlu0 %v48, 17
  %v110 = vpop.permute.xlu0 %109
  %111 = vrot.lane.b32.xlu0 %v102, 17
  %v112 = vpop.permute.xlu0 %111
  %113 = vrot.lane.b32.xlu0 %v49, 17
  %v114 = vpop.permute.xlu0 %113
  %115 = vrot.lane.b32.xlu0 %v103, 17
  %v116 = vpop.permute.xlu0 %115
  %117 = vrot.lane.b32.xlu0 %v50, 17
  %v118 = vpop.permute.xlu0 %117
  %119 = vrot.lane.b32.xlu0 %v104, 17
  %v120 = vpop.permute.xlu0 %119
  %121 = vrot.lane.b32.xlu0 %v51, 17
  %v122 = vpop.permute.xlu0 %121
  %vm123 = vcmask 138240
  %v124 = vsel %vm123, %v106, %v108
  %v125 = vsel %vm123, %v108, %v110
  %v126 = vsel %vm123, %v110, %v112
  %v127 = vsel %vm123, %v112, %v114
  %v128 = vsel %vm123, %v114, %v116
  %v129 = vsel %vm123, %v116, %v118
  %v130 = vsel %vm123, %v118, %v120
  %v131 = vsel %vm123, %v120, %v122
  %v140 = vmul.f32 %v67, %v124
  %v141 = vmul.f32 %v71, %v125
  %v142 = vmul.f32 %v75, %v126
  %v143 = vmul.f32 %v79, %v127
  %v144 = vmul.f32 %v83, %v128
  %v145 = vmul.f32 %v87, %v129
  %v146 = vmul.f32 %v91, %v130
  %v147 = vmul.f32 %v95, %v131
  %v148 = vpack.c.bf16 %v140, %v140
  %v149 = vpack.c.bf16 %v141, %v141
  %v150 = vpack.c.bf16 %v142, %v142
  %v151 = vpack.c.bf16 %v143, %v143
  %v152 = vpack.c.bf16 %v144, %v144
  %v153 = vpack.c.bf16 %v145, %v145
  %v154 = vpack.c.bf16 %v146, %v146
  %v155 = vpack.c.bf16 %v147, %v147
  %v164 = vunpack.c.l.b16 %v148
  %v165 = vunpack.c.l.b16 %v149
  %v166 = vunpack.c.l.b16 %v150
  %v167 = vunpack.c.l.b16 %v151
  %v168 = vunpack.c.l.b16 %v152
  %v169 = vunpack.c.l.b16 %v153
  %v170 = vunpack.c.l.b16 %v154
  %v171 = vunpack.c.l.b16 %v155
  %v172 = vpack.c.b16 %v165, %v164
  %v173 = vpack.c.b16 %v167, %v166
  %v174 = vpack.c.b16 %v169, %v168
  %v175 = vpack.c.b16 %v171, %v170
  %180 = vst [vmem:[#allocation4] sm:$0x33] %v172
  %181 = vst [vmem:[#allocation4 + $0x8] sm:$0x33] %v173
  %182 = vst [vmem:[#allocation4 + $0x10] sm:$0x33] %v174
  %183 = vst [vmem:[#allocation4 + $0x18] sm:$0x33] %v175
  %v184 = vld [vmem:[%s0] sm:$0xff]
  %v185 = vld [vmem:[%s0 + $0x8] sm:$0xff]
  %v186 = vld [vmem:[%s0 + $0x10] sm:$0x3]
  %v187 = vunpack.c.l.bf16 %v184
  %v188 = vunpack.c.h.bf16 %v184
  %v189 = vunpack.c.l.bf16 %v185
  %v190 = vunpack.c.h.bf16 %v185
  %v191 = vunpack.c.l.bf16 %v186
  %v192 = vld [vmem:[%s1] sm:$0x11]
  %v193 = vld [vmem:[%s1 + $0x8] sm:$0x11]
  %v194 = vld [vmem:[%s1 + $0x10] sm:$0x11]
  %v195 = vld [vmem:[%s1 + $0x18] sm:$0x11]
  %v196 = vunpack.c.l.bf16 %v192
  %v197 = vunpack.c.h.bf16 %v192
  %v198 = vunpack.c.l.bf16 %v193
  %v199 = vunpack.c.h.bf16 %v193
  %v200 = vunpack.c.l.bf16 %v194
  %v201 = vunpack.c.h.bf16 %v194
  %v202 = vunpack.c.l.bf16 %v195
  %v203 = vunpack.c.h.bf16 %v195
  %v204 = vlaneseq
  %v205 = vshrl.u32 %v204, 7
  %v206 = vsub.s32 1, %v205
  %v207 = vrot.slane %v196, %v206
  %v208 = vlaneseq
  %v209 = vshrl.u32 %v208, 7
  %v210 = vsub.s32 1, %v209
  %v211 = vrot.slane %v197, %v210
  %v212 = vlaneseq
  %v213 = vshrl.u32 %v212, 7
  %v214 = vsub.s32 1, %v213
  %v215 = vrot.slane %v198, %v214
  %v216 = vlaneseq
  %v217 = vshrl.u32 %v216, 7
  %v218 = vsub.s32 1, %v217
  %v219 = vrot.slane %v199, %v218
  %v220 = vlaneseq
  %v221 = vshrl.u32 %v220, 7
  %v222 = vsub.s32 1, %v221
  %v223 = vrot.slane %v200, %v222
  %v224 = vlaneseq
  %v225 = vshrl.u32 %v224, 7
  %v226 = vsub.s32 1, %v225
  %v227 = vrot.slane %v201, %v226
  %v228 = vlaneseq
  %v229 = vshrl.u32 %v228, 7
  %v230 = vsub.s32 1, %v229
  %v231 = vrot.slane %v202, %v230
  %v232 = vlaneseq
  %v233 = vshrl.u32 %v232, 7
  %v234 = vsub.s32 1, %v233
  %v235 = vrot.slane %v203, %v234
  %v241 = vcombine.high %v187, %v187
  %v242 = vcombine.high %v188, %v188
  %v243 = vcombine.high %v189, %v189
  %v244 = vcombine.high %v190, %v190
  %245 = vrot.lane.b32.xlu0 %v187, 16
  %v246 = vpop.permute.xlu0 %245
  %247 = vrot.lane.b32.xlu0 %v241, 16
  %v248 = vpop.permute.xlu0 %247
  %249 = vrot.lane.b32.xlu0 %v188, 16
  %v250 = vpop.permute.xlu0 %249
  %251 = vrot.lane.b32.xlu0 %v242, 16
  %v252 = vpop.permute.xlu0 %251
  %253 = vrot.lane.b32.xlu0 %v189, 16
  %v254 = vpop.permute.xlu0 %253
  %255 = vrot.lane.b32.xlu0 %v243, 16
  %v256 = vpop.permute.xlu0 %255
  %257 = vrot.lane.b32.xlu0 %v190, 16
  %v258 = vpop.permute.xlu0 %257
  %259 = vrot.lane.b32.xlu0 %v244, 16
  %v260 = vpop.permute.xlu0 %259
  %261 = vrot.lane.b32.xlu0 %v191, 16
  %v262 = vpop.permute.xlu0 %261
  %vm263 = vcmask 130048
  %v264 = vsel %vm263, %v246, %v248
  %v265 = vsel %vm263, %v248, %v250
  %v266 = vsel %vm263, %v250, %v252
  %v267 = vsel %vm263, %v252, %v254
  %v268 = vsel %vm263, %v254, %v256
  %v269 = vsel %vm263, %v256, %v258
  %v270 = vsel %vm263, %v258, %v260
  %v271 = vsel %vm263, %v260, %v262
  %v280 = vmul.f32 %v207, %v264
  %v281 = vmul.f32 %v211, %v265
  %v282 = vmul.f32 %v215, %v266
  %v283 = vmul.f32 %v219, %v267
  %v284 = vmul.f32 %v223, %v268
  %v285 = vmul.f32 %v227, %v269
  %v286 = vmul.f32 %v231, %v270
  %v287 = vmul.f32 %v235, %v271
  %v288 = vpack.c.bf16 %v280, %v280
  %v289 = vpack.c.bf16 %v281, %v281
  %v290 = vpack.c.bf16 %v282, %v282
  %v291 = vpack.c.bf16 %v283, %v283
  %v292 = vpack.c.bf16 %v284, %v284
  %v293 = vpack.c.bf16 %v285, %v285
  %v294 = vpack.c.bf16 %v286, %v286
  %v295 = vpack.c.bf16 %v287, %v287
  %v304 = vunpack.c.l.b16 %v288
  %v305 = vunpack.c.l.b16 %v289
  %v306 = vunpack.c.l.b16 %v290
  %v307 = vunpack.c.l.b16 %v291
  %v308 = vunpack.c.l.b16 %v292
  %v309 = vunpack.c.l.b16 %v293
  %v310 = vunpack.c.l.b16 %v294
  %v311 = vunpack.c.l.b16 %v295
  %v312 = vpack.c.b16 %v305, %v304
  %v313 = vpack.c.b16 %v307, %v306
  %v314 = vpack.c.b16 %v309, %v308
  %v315 = vpack.c.b16 %v311, %v310
  %v316 = vrot.slane %v312, 6
  %v317 = vrot.slane %v313, 6
  %v318 = vrot.slane %v314, 6
  %v319 = vrot.slane %v315, 6
  %324 = vst [vmem:[#allocation4] sm:$0xcc] %v316
  %325 = vst [vmem:[#allocation4 + $0x8] sm:$0xcc] %v317
  %326 = vst [vmem:[#allocation4 + $0x10] sm:$0xcc] %v318
  %327 = vst [vmem:[#allocation4 + $0x18] sm:$0xcc] %v319
  %v328 = vld [vmem:[%s0] sm:$0xff]
  %v329 = vld [vmem:[%s0 + $0x8] sm:$0xff]
  %v330 = vld [vmem:[%s0 + $0x10] sm:$0x3]
  %v331 = vunpack.c.l.bf16 %v328
  %v332 = vunpack.c.h.bf16 %v328
  %v333 = vunpack.c.l.bf16 %v329
  %v334 = vunpack.c.h.bf16 %v329
  %v335 = vunpack.c.l.bf16 %v330
  %v336 = vld [vmem:[%s1] sm:$0x22]
  %v337 = vld [vmem:[%s1 + $0x8] sm:$0x22]
  %v338 = vld [vmem:[%s1 + $0x10] sm:$0x22]
  %v339 = vld [vmem:[%s1 + $0x18] sm:$0x22]
  %v340 = vunpack.c.l.bf16 %v336
  %v341 = vunpack.c.h.bf16 %v336
  %v342 = vunpack.c.l.bf16 %v337
  %v343 = vunpack.c.h.bf16 %v337
  %v344 = vunpack.c.l.bf16 %v338
  %v345 = vunpack.c.h.bf16 %v338
  %v346 = vunpack.c.l.bf16 %v339
  %v347 = vunpack.c.h.bf16 %v339
  %v348 = vlaneseq
  %v349 = vshrl.u32 %v348, 7
  %v350 = vsub.s32 2, %v349
  %v351 = vrot.slane %v340, %v350
  %v352 = vlaneseq
  %v353 = vshrl.u32 %v352, 7
  %v354 = vsub.s32 2, %v353
  %v355 = vrot.slane %v341, %v354
  %v356 = vlaneseq
  %v357 = vshrl.u32 %v356, 7
  %v358 = vsub.s32 2, %v357
  %v359 = vrot.slane %v342, %v358
  %v360 = vlaneseq
  %v361 = vshrl.u32 %v360, 7
  %v362 = vsub.s32 2, %v361
  %v363 = vrot.slane %v343, %v362
  %v364 = vlaneseq
  %v365 = vshrl.u32 %v364, 7
  %v366 = vsub.s32 2, %v365
  %v367 = vrot.slane %v344, %v366
  %v368 = vlaneseq
  %v369 = vshrl.u32 %v368, 7
  %v370 = vsub.s32 2, %v369
  %v371 = vrot.slane %v345, %v370
  %v372 = vlaneseq
  %v373 = vshrl.u32 %v372, 7
  %v374 = vsub.s32 2, %v373
  %v375 = vrot.slane %v346, %v374
  %v376 = vlaneseq
  %v377 = vshrl.u32 %v376, 7
  %v378 = vsub.s32 2, %v377
  %v379 = vrot.slane %v347, %v378
  %v385 = vcombine.high %v331, %v331
  %v386 = vcombine.high %v332, %v332
  %v387 = vcombine.high %v333, %v333
  %v388 = vcombine.high %v334, %v334
  %389 = vrot.lane.b32.xlu0 %v331, 15
  %v390 = vpop.permute.xlu0 %389
  %391 = vrot.lane.b32.xlu0 %v385, 15
  %v392 = vpop.permute.xlu0 %391
  %393 = vrot.lane.b32.xlu0 %v332, 15
  %v394 = vpop.permute.xlu0 %393
  %395 = vrot.lane.b32.xlu0 %v386, 15
  %v396 = vpop.permute.xlu0 %395
  %397 = vrot.lane.b32.xlu0 %v333, 15
  %v398 = vpop.permute.xlu0 %397
  %399 = vrot.lane.b32.xlu0 %v387, 15
  %v400 = vpop.permute.xlu0 %399
  %401 = vrot.lane.b32.xlu0 %v334, 15
  %v402 = vpop.permute.xlu0 %401
  %403 = vrot.lane.b32.xlu0 %v388, 15
  %v404 = vpop.permute.xlu0 %403
  %405 = vrot.lane.b32.xlu0 %v335, 15
  %v406 = vpop.permute.xlu0 %405
  %vm407 = vcmask 121856
  %v408 = vsel %vm407, %v390, %v392
  %v409 = vsel %vm407, %v392, %v394
  %v410 = vsel %vm407, %v394, %v396
  %v411 = vsel %vm407, %v396, %v398
  %v412 = vsel %vm407, %v398, %v400
  %v413 = vsel %vm407, %v400, %v402
  %v414 = vsel %vm407, %v402, %v404
  %v415 = vsel %vm407, %v404, %v406
  %v424 = vmul.f32 %v351, %v408
  %v425 = vmul.f32 %v355, %v409
  %v426 = vmul.f32 %v359, %v410
  %v427 = vmul.f32 %v363, %v411
  %v428 = vmul.f32 %v367, %v412
  %v429 = vmul.f32 %v371, %v413
  %v430 = vmul.f32 %v375, %v414
  %v431 = vmul.f32 %v379, %v415
  %v432 = vpack.c.bf16 %v424, %v424
  %v433 = vpack.c.bf16 %v425, %v425
  %v434 = vpack.c.bf16 %v426, %v426
  %v435 = vpack.c.bf16 %v427, %v427
  %v436 = vpack.c.bf16 %v428, %v428
  %v437 = vpack.c.bf16 %v429, %v429
  %v438 = vpack.c.bf16 %v430, %v430
  %v439 = vpack.c.bf16 %v431, %v431
  %v448 = vunpack.c.l.b16 %v432
  %v449 = vunpack.c.l.b16 %v433
  %v450 = vunpack.c.l.b16 %v434
  %v451 = vunpack.c.l.b16 %v435
  %v452 = vunpack.c.l.b16 %v436
  %v453 = vunpack.c.l.b16 %v437
  %v454 = vunpack.c.l.b16 %v438
  %v455 = vunpack.c.l.b16 %v439
  %v456 = vpack.c.b16 %v449, %v448
  %v457 = vpack.c.b16 %v451, %v450
  %v458 = vpack.c.b16 %v453, %v452
  %v459 = vpack.c.b16 %v455, %v454
  %464 = vst [vmem:[#allocation4 + $0x20] sm:$0x33] %v456
  %465 = vst [vmem:[#allocation4 + $0x28] sm:$0x33] %v457
  %466 = vst [vmem:[#allocation4 + $0x30] sm:$0x33] %v458
  %467 = vst [vmem:[#allocation4 + $0x38] sm:$0x33] %v459
  %v468 = vld [vmem:[%s0] sm:$0xff]
  %v469 = vld [vmem:[%s0 + $0x8] sm:$0xff]
  %v470 = vld [vmem:[%s0 + $0x10] sm:$0x3]
  %v471 = vunpack.c.l.bf16 %v468
  %v472 = vunpack.c.h.bf16 %v468
  %v473 = vunpack.c.l.bf16 %v469
  %v474 = vunpack.c.h.bf16 %v469
  %v475 = vunpack.c.l.bf16 %v470
  %v476 = vld [vmem:[%s1] sm:$0x22]
  %v477 = vld [vmem:[%s1 + $0x8] sm:$0x22]
  %v478 = vld [vmem:[%s1 + $0x10] sm:$0x22]
  %v479 = vld [vmem:[%s1 + $0x18] sm:$0x22]
  %v480 = vunpack.c.l.bf16 %v476
  %v481 = vunpack.c.h.bf16 %v476
  %v482 = vunpack.c.l.bf16 %v477
  %v483 = vunpack.c.h.bf16 %v477
  %v484 = vunpack.c.l.bf16 %v478
  %v485 = vunpack.c.h.bf16 %v478
  %v486 = vunpack.c.l.bf16 %v479
  %v487 = vunpack.c.h.bf16 %v479
  %v488 = vlaneseq
  %v489 = vshrl.u32 %v488, 7
  %v490 = vsub.s32 3, %v489
  %v491 = vrot.slane %v480, %v490
  %v492 = vlaneseq
  %v493 = vshrl.u32 %v492, 7
  %v494 = vsub.s32 3, %v493
  %v495 = vrot.slane %v481, %v494
  %v496 = vlaneseq
  %v497 = vshrl.u32 %v496, 7
  %v498 = vsub.s32 3, %v497
  %v499 = vrot.slane %v482, %v498
  %v500 = vlaneseq
  %v501 = vshrl.u32 %v500, 7
  %v502 = vsub.s32 3, %v501
  %v503 = vrot.slane %v483, %v502
  %v504 = vlaneseq
  %v505 = vshrl.u32 %v504, 7
  %v506 = vsub.s32 3, %v505
  %v507 = vrot.slane %v484, %v506
  %v508 = vlaneseq
  %v509 = vshrl.u32 %v508, 7
  %v510 = vsub.s32 3, %v509
  %v511 = vrot.slane %v485, %v510
  %v512 = vlaneseq
  %v513 = vshrl.u32 %v512, 7
  %v514 = vsub.s32 3, %v513
  %v515 = vrot.slane %v486, %v514
  %v516 = vlaneseq
  %v517 = vshrl.u32 %v516, 7
  %v518 = vsub.s32 3, %v517
  %v519 = vrot.slane %v487, %v518
  %v525 = vcombine.high %v471, %v471
  %v526 = vcombine.high %v472, %v472
  %v527 = vcombine.high %v473, %v473
  %v528 = vcombine.high %v474, %v474
  %529 = vrot.lane.b32.xlu0 %v471, 1
  %v530 = vpop.permute.xlu0 %529
  %531 = vrot.lane.b32.xlu0 %v525, 1
  %v532 = vpop.permute.xlu0 %531
  %533 = vrot.lane.b32.xlu0 %v472, 1
  %v534 = vpop.permute.xlu0 %533
  %535 = vrot.lane.b32.xlu0 %v526, 1
  %v536 = vpop.permute.xlu0 %535
  %537 = vrot.lane.b32.xlu0 %v473, 1
  %v538 = vpop.permute.xlu0 %537
  %539 = vrot.lane.b32.xlu0 %v527, 1
  %v540 = vpop.permute.xlu0 %539
  %541 = vrot.lane.b32.xlu0 %v474, 1
  %v542 = vpop.permute.xlu0 %541
  %543 = vrot.lane.b32.xlu0 %v528, 1
  %v544 = vpop.permute.xlu0 %543
  %545 = vrot.lane.b32.xlu0 %v475, 1
  %v546 = vpop.permute.xlu0 %545
  %vm547 = vcmask 7168
  %v548 = vsel %vm547, %v530, %v532
  %v549 = vsel %vm547, %v532, %v534
  %v550 = vsel %vm547, %v534, %v536
  %v551 = vsel %vm547, %v536, %v538
  %v552 = vsel %vm547, %v538, %v540
  %v553 = vsel %vm547, %v540, %v542
  %v554 = vsel %vm547, %v542, %v544
  %v555 = vsel %vm547, %v544, %v546
  %v564 = vmul.f32 %v491, %v548
  %v565 = vmul.f32 %v495, %v549
  %v566 = vmul.f32 %v499, %v550
  %v567 = vmul.f32 %v503, %v551
  %v568 = vmul.f32 %v507, %v552
  %v569 = vmul.f32 %v511, %v553
  %v570 = vmul.f32 %v515, %v554
  %v571 = vmul.f32 %v519, %v555
  %v572 = vpack.c.bf16 %v564, %v564
  %v573 = vpack.c.bf16 %v565, %v565
  %v574 = vpack.c.bf16 %v566, %v566
  %v575 = vpack.c.bf16 %v567, %v567
  %v576 = vpack.c.bf16 %v568, %v568
  %v577 = vpack.c.bf16 %v569, %v569
  %v578 = vpack.c.bf16 %v570, %v570
  %v579 = vpack.c.bf16 %v571, %v571
  %v588 = vunpack.c.l.b16 %v572
  %v589 = vunpack.c.l.b16 %v573
  %v590 = vunpack.c.l.b16 %v574
  %v591 = vunpack.c.l.b16 %v575
  %v592 = vunpack.c.l.b16 %v576
  %v593 = vunpack.c.l.b16 %v577
  %v594 = vunpack.c.l.b16 %v578
  %v595 = vunpack.c.l.b16 %v579
  %v596 = vpack.c.b16 %v589, %v588
  %v597 = vpack.c.b16 %v591, %v590
  %v598 = vpack.c.b16 %v593, %v592
  %v599 = vpack.c.b16 %v595, %v594
  %v600 = vrot.slane %v596, 6
  %v601 = vrot.slane %v597, 6
  %v602 = vrot.slane %v598, 6
  %v603 = vrot.slane %v599, 6
  %608 = vst [vmem:[#allocation4 + $0x20] sm:$0xcc] %v600
  %609 = vst [vmem:[#allocation4 + $0x28] sm:$0xcc] %v601
  %610 = vst [vmem:[#allocation4 + $0x30] sm:$0xcc] %v602
  %611 = vst [vmem:[#allocation4 + $0x38] sm:$0xcc] %v603
  %v612 = vld [vmem:[%s0 + $0x2] sm:$0xff]
  %v613 = vld [vmem:[%s0 + $0xa] sm:$0xff]
  %v616 = vcombine.high %v612, %v612
  %v618 = vunpack.c.l.s4 1983009808
  %v619 = vunpack.c.0.s8 %v618
  %v620 = vlaneseq
  %v621 = vshrl.u32 %v620, 7
  %v622 = vsub.s32 %v619, %v621
  %v623 = vrot.slane %v612, %v622
  %v625 = vunpack.c.l.s4 1983009808
  %v626 = vunpack.c.0.s8 %v625
  %v627 = vlaneseq
  %v628 = vshrl.u32 %v627, 7
  %v629 = vsub.s32 %v626, %v628
  %v630 = vrot.slane %v616, %v629
  %v631 = vcombine.high %v613, %v613
  %v633 = vunpack.c.l.s4 1983009808
  %v634 = vunpack.c.0.s8 %v633
  %v635 = vlaneseq
  %v636 = vshrl.u32 %v635, 7
  %v637 = vsub.s32 %v634, %v636
  %v638 = vrot.slane %v613, %v637
  %v640 = vunpack.c.l.s4 1983009808
  %v641 = vunpack.c.0.s8 %v640
  %v642 = vlaneseq
  %v643 = vshrl.u32 %v642, 7
  %v644 = vsub.s32 %v641, %v643
  %v645 = vrot.slane %v631, %v644
  %650 = vst [vmem:[#allocation4 + $0x40] sm:$0x33] %v623
  %651 = vst [vmem:[#allocation4 + $0x48] sm:$0x33] %v630
  %652 = vst [vmem:[#allocation4 + $0x50] sm:$0x33] %v638
  %653 = vst [vmem:[#allocation4 + $0x58] sm:$0x33] %v645
  %v654 = vld [vmem:[%s0 + $0x2] sm:$0xff]
  %v655 = vld [vmem:[%s0 + $0xa] sm:$0xff]
  %v656 = vld [vmem:[%s0 + $0x12] sm:$0x3]
  %v657 = vunpack.c.l.bf16 %v654
  %v658 = vunpack.c.h.bf16 %v654
  %v659 = vunpack.c.l.bf16 %v655
  %v660 = vunpack.c.h.bf16 %v655
  %v661 = vunpack.c.l.bf16 %v656
  %v662 = vld [vmem:[%s1] sm:$0x44]
  %v663 = vld [vmem:[%s1 + $0x8] sm:$0x44]
  %v664 = vld [vmem:[%s1 + $0x10] sm:$0x44]
  %v665 = vld [vmem:[%s1 + $0x18] sm:$0x44]
  %v666 = vunpack.c.l.bf16 %v662
  %v667 = vunpack.c.h.bf16 %v662
  %v668 = vunpack.c.l.bf16 %v663
  %v669 = vunpack.c.h.bf16 %v663
  %v670 = vunpack.c.l.bf16 %v664
  %v671 = vunpack.c.h.bf16 %v664
  %v672 = vunpack.c.l.bf16 %v665
  %v673 = vunpack.c.h.bf16 %v665
  %v674 = vlaneseq
  %v675 = vshrl.u32 %v674, 7
  %v676 = vsub.s32 5, %v675
  %v677 = vrot.slane %v666, %v676
  %v678 = vlaneseq
  %v679 = vshrl.u32 %v678, 7
  %v680 = vsub.s32 5, %v679
  %v681 = vrot.slane %v667, %v680
  %v682 = vlaneseq
  %v683 = vshrl.u32 %v682, 7
  %v684 = vsub.s32 5, %v683
  %v685 = vrot.slane %v668, %v684
  %v686 = vlaneseq
  %v687 = vshrl.u32 %v686, 7
  %v688 = vsub.s32 5, %v687
  %v689 = vrot.slane %v669, %v688
  %v690 = vlaneseq
  %v691 = vshrl.u32 %v690, 7
  %v692 = vsub.s32 5, %v691
  %v693 = vrot.slane %v670, %v692
  %v694 = vlaneseq
  %v695 = vshrl.u32 %v694, 7
  %v696 = vsub.s32 5, %v695
  %v697 = vrot.slane %v671, %v696
  %v698 = vlaneseq
  %v699 = vshrl.u32 %v698, 7
  %v700 = vsub.s32 5, %v699
  %v701 = vrot.slane %v672, %v700
  %v702 = vlaneseq
  %v703 = vshrl.u32 %v702, 7
  %v704 = vsub.s32 5, %v703
  %v705 = vrot.slane %v673, %v704
  %v711 = vcombine.high %v657, %v657
  %v712 = vcombine.high %v658, %v658
  %v713 = vcombine.high %v659, %v659
  %v714 = vcombine.high %v660, %v660
  %715 = vrot.lane.b32.xlu0 %v657, 127
  %v716 = vpop.permute.xlu0 %715
  %717 = vrot.lane.b32.xlu0 %v711, 127
  %v718 = vpop.permute.xlu0 %717
  %719 = vrot.lane.b32.xlu0 %v658, 127
  %v720 = vpop.permute.xlu0 %719
  %721 = vrot.lane.b32.xlu0 %v712, 127
  %v722 = vpop.permute.xlu0 %721
  %723 = vrot.lane.b32.xlu0 %v659, 127
  %v724 = vpop.permute.xlu0 %723
  %725 = vrot.lane.b32.xlu0 %v713, 127
  %v726 = vpop.permute.xlu0 %725
  %727 = vrot.lane.b32.xlu0 %v660, 127
  %v728 = vpop.permute.xlu0 %727
  %729 = vrot.lane.b32.xlu0 %v714, 127
  %v730 = vpop.permute.xlu0 %729
  %731 = vrot.lane.b32.xlu0 %v661, 127
  %v732 = vpop.permute.xlu0 %731
  %vm733 = vcmask 1039360
  %v734 = vsel %vm733, %v716, %v718
  %v735 = vsel %vm733, %v718, %v720
  %v736 = vsel %vm733, %v720, %v722
  %v737 = vsel %vm733, %v722, %v724
  %v738 = vsel %vm733, %v724, %v726
  %v739 = vsel %vm733, %v726, %v728
  %v740 = vsel %vm733, %v728, %v730
  %v741 = vsel %vm733, %v730, %v732
  %v750 = vmul.f32 %v677, %v734
  %v751 = vmul.f32 %v681, %v735
  %v752 = vmul.f32 %v685, %v736
  %v753 = vmul.f32 %v689, %v737
  %v754 = vmul.f32 %v693, %v738
  %v755 = vmul.f32 %v697, %v739
  %v756 = vmul.f32 %v701, %v740
  %v757 = vmul.f32 %v705, %v741
  %v758 = vpack.c.bf16 %v750, %v750
  %v759 = vpack.c.bf16 %v751, %v751
  %v760 = vpack.c.bf16 %v752, %v752
  %v761 = vpack.c.bf16 %v753, %v753
  %v762 = vpack.c.bf16 %v754, %v754
  %v763 = vpack.c.bf16 %v755, %v755
  %v764 = vpack.c.bf16 %v756, %v756
  %v765 = vpack.c.bf16 %v757, %v757
  %v774 = vunpack.c.l.b16 %v758
  %v775 = vunpack.c.l.b16 %v759
  %v776 = vunpack.c.l.b16 %v760
  %v777 = vunpack.c.l.b16 %v761
  %v778 = vunpack.c.l.b16 %v762
  %v779 = vunpack.c.l.b16 %v763
  %v780 = vunpack.c.l.b16 %v764
  %v781 = vunpack.c.l.b16 %v765
  %v782 = vpack.c.b16 %v775, %v774
  %v783 = vpack.c.b16 %v777, %v776
  %v784 = vpack.c.b16 %v779, %v778
  %v785 = vpack.c.b16 %v781, %v780
  %v786 = vrot.slane %v782, 6
  %v787 = vrot.slane %v783, 6
  %v788 = vrot.slane %v784, 6
  %v789 = vrot.slane %v785, 6
  %794 = vst [vmem:[#allocation4 + $0x40] sm:$0xcc] %v786
  %795 = vst [vmem:[#allocation4 + $0x48] sm:$0xcc] %v787
  %796 = vst [vmem:[#allocation4 + $0x50] sm:$0xcc] %v788
  %797 = vst [vmem:[#allocation4 + $0x58] sm:$0xcc] %v789
  %v798 = vld [vmem:[%s0 + $0x2] sm:$0xff]
  %v799 = vld [vmem:[%s0 + $0xa] sm:$0xff]
  %v800 = vld [vmem:[%s0 + $0x12] sm:$0x3]
  %v801 = vunpack.c.l.bf16 %v798
  %v802 = vunpack.c.h.bf16 %v798
  %v803 = vunpack.c.l.bf16 %v799
  %v804 = vunpack.c.h.bf16 %v799
  %v805 = vunpack.c.l.bf16 %v800
  %v806 = vld [vmem:[%s1] sm:$0x88]
  %v807 = vld [vmem:[%s1 + $0x8] sm:$0x88]
  %v808 = vld [vmem:[%s1 + $0x10] sm:$0x88]
  %v809 = vld [vmem:[%s1 + $0x18] sm:$0x88]
  %v810 = vunpack.c.l.bf16 %v806
  %v811 = vunpack.c.h.bf16 %v806
  %v812 = vunpack.c.l.bf16 %v807
  %v813 = vunpack.c.h.bf16 %v807
  %v814 = vunpack.c.l.bf16 %v808
  %v815 = vunpack.c.h.bf16 %v808
  %v816 = vunpack.c.l.bf16 %v809
  %v817 = vunpack.c.h.bf16 %v809
  %v818 = vlaneseq
  %v819 = vshrl.u32 %v818, 7
  %v820 = vsub.s32 6, %v819
  %v821 = vrot.slane %v810, %v820
  %v822 = vlaneseq
  %v823 = vshrl.u32 %v822, 7
  %v824 = vsub.s32 6, %v823
  %v825 = vrot.slane %v811, %v824
  %v826 = vlaneseq
  %v827 = vshrl.u32 %v826, 7
  %v828 = vsub.s32 6, %v827
  %v829 = vrot.slane %v812, %v828
  %v830 = vlaneseq
  %v831 = vshrl.u32 %v830, 7
  %v832 = vsub.s32 6, %v831
  %v833 = vrot.slane %v813, %v832
  %v834 = vlaneseq
  %v835 = vshrl.u32 %v834, 7
  %v836 = vsub.s32 6, %v835
  %v837 = vrot.slane %v814, %v836
  %v838 = vlaneseq
  %v839 = vshrl.u32 %v838, 7
  %v840 = vsub.s32 6, %v839
  %v841 = vrot.slane %v815, %v840
  %v842 = vlaneseq
  %v843 = vshrl.u32 %v842, 7
  %v844 = vsub.s32 6, %v843
  %v845 = vrot.slane %v816, %v844
  %v846 = vlaneseq
  %v847 = vshrl.u32 %v846, 7
  %v848 = vsub.s32 6, %v847
  %v849 = vrot.slane %v817, %v848
  %v855 = vcombine.high %v801, %v801
  %v856 = vcombine.high %v802, %v802
  %v857 = vcombine.high %v803, %v803
  %v858 = vcombine.high %v804, %v804
  %859 = vrot.lane.b32.xlu0 %v801, 113
  %v860 = vpop.permute.xlu0 %859
  %861 = vrot.lane.b32.xlu0 %v855, 113
  %v862 = vpop.permute.xlu0 %861
  %863 = vrot.lane.b32.xlu0 %v802, 113
  %v864 = vpop.permute.xlu0 %863
  %865 = vrot.lane.b32.xlu0 %v856, 113
  %v866 = vpop.permute.xlu0 %865
  %867 = vrot.lane.b32.xlu0 %v803, 113
  %v868 = vpop.permute.xlu0 %867
  %869 = vrot.lane.b32.xlu0 %v857, 113
  %v870 = vpop.permute.xlu0 %869
  %871 = vrot.lane.b32.xlu0 %v804, 113
  %v872 = vpop.permute.xlu0 %871
  %873 = vrot.lane.b32.xlu0 %v858, 113
  %v874 = vpop.permute.xlu0 %873
  %875 = vrot.lane.b32.xlu0 %v805, 113
  %v876 = vpop.permute.xlu0 %875
  %vm877 = vcmask 924672
  %v878 = vsel %vm877, %v860, %v862
  %v879 = vsel %vm877, %v862, %v864
  %v880 = vsel %vm877, %v864, %v866
  %v881 = vsel %vm877, %v866, %v868
  %v882 = vsel %vm877, %v868, %v870
  %v883 = vsel %vm877, %v870, %v872
  %v884 = vsel %vm877, %v872, %v874
  %v885 = vsel %vm877, %v874, %v876
  %v894 = vmul.f32 %v821, %v878
  %v895 = vmul.f32 %v825, %v879
  %v896 = vmul.f32 %v829, %v880
  %v897 = vmul.f32 %v833, %v881
  %v898 = vmul.f32 %v837, %v882
  %v899 = vmul.f32 %v841, %v883
  %v900 = vmul.f32 %v845, %v884
  %v901 = vmul.f32 %v849, %v885
  %v902 = vpack.c.bf16 %v894, %v894
  %v903 = vpack.c.bf16 %v895, %v895
  %v904 = vpack.c.bf16 %v896, %v896
  %v905 = vpack.c.bf16 %v897, %v897
  %v906 = vpack.c.bf16 %v898, %v898
  %v907 = vpack.c.bf16 %v899, %v899
  %v908 = vpack.c.bf16 %v900, %v900
  %v909 = vpack.c.bf16 %v901, %v901
  %v918 = vunpack.c.l.b16 %v902
  %v919 = vunpack.c.l.b16 %v903
  %v920 = vunpack.c.l.b16 %v904
  %v921 = vunpack.c.l.b16 %v905
  %v922 = vunpack.c.l.b16 %v906
  %v923 = vunpack.c.l.b16 %v907
  %v924 = vunpack.c.l.b16 %v908
  %v925 = vunpack.c.l.b16 %v909
  %v926 = vpack.c.b16 %v919, %v918
  %v927 = vpack.c.b16 %v921, %v920
  %v928 = vpack.c.b16 %v923, %v922
  %v929 = vpack.c.b16 %v925, %v924
  %934 = vst [vmem:[#allocation4 + $0x60] sm:$0x33] %v926
  %935 = vst [vmem:[#allocation4 + $0x68] sm:$0x33] %v927
  %936 = vst [vmem:[#allocation4 + $0x70] sm:$0x33] %v928
  %937 = vst [vmem:[#allocation4 + $0x78] sm:$0x33] %v929
  %v938 = vld [vmem:[%s0 + $0x2] sm:$0xff]
  %v939 = vld [vmem:[%s0 + $0xa] sm:$0xff]
  %v940 = vld [vmem:[%s0 + $0x12] sm:$0x3]
  %v941 = vunpack.c.l.bf16 %v938
  %v942 = vunpack.c.h.bf16 %v938
  %v943 = vunpack.c.l.bf16 %v939
  %v944 = vunpack.c.h.bf16 %v939
  %v945 = vunpack.c.l.bf16 %v940
  %v946 = vld [vmem:[%s1] sm:$0x88]
  %v947 = vld [vmem:[%s1 + $0x8] sm:$0x88]
  %v948 = vld [vmem:[%s1 + $0x10] sm:$0x88]
  %v949 = vld [vmem:[%s1 + $0x18] sm:$0x88]
  %v950 = vunpack.c.l.bf16 %v946
  %v951 = vunpack.c.h.bf16 %v946
  %v952 = vunpack.c.l.bf16 %v947
  %v953 = vunpack.c.h.bf16 %v947
  %v954 = vunpack.c.l.bf16 %v948
  %v955 = vunpack.c.h.bf16 %v948
  %v956 = vunpack.c.l.bf16 %v949
  %v957 = vunpack.c.h.bf16 %v949
  %v958 = vlaneseq
  %v959 = vshrl.u32 %v958, 7
  %v960 = vsub.s32 7, %v959
  %v961 = vrot.slane %v950, %v960
  %v962 = vlaneseq
  %v963 = vshrl.u32 %v962, 7
  %v964 = vsub.s32 7, %v963
  %v965 = vrot.slane %v951, %v964
  %v966 = vlaneseq
  %v967 = vshrl.u32 %v966, 7
  %v968 = vsub.s32 7, %v967
  %v969 = vrot.slane %v952, %v968
  %v970 = vlaneseq
  %v971 = vshrl.u32 %v970, 7
  %v972 = vsub.s32 7, %v971
  %v973 = vrot.slane %v953, %v972
  %v974 = vlaneseq
  %v975 = vshrl.u32 %v974, 7
  %v976 = vsub.s32 7, %v975
  %v977 = vrot.slane %v954, %v976
  %v978 = vlaneseq
  %v979 = vshrl.u32 %v978, 7
  %v980 = vsub.s32 7, %v979
  %v981 = vrot.slane %v955, %v980
  %v982 = vlaneseq
  %v983 = vshrl.u32 %v982, 7
  %v984 = vsub.s32 7, %v983
  %v985 = vrot.slane %v956, %v984
  %v986 = vlaneseq
  %v987 = vshrl.u32 %v986, 7
  %v988 = vsub.s32 7, %v987
  %v989 = vrot.slane %v957, %v988
  %v995 = vcombine.high %v941, %v941
  %v996 = vcombine.high %v942, %v942
  %v997 = vcombine.high %v943, %v943
  %v998 = vcombine.high %v944, %v944
  %999 = vrot.lane.b32.xlu0 %v941, 112
  %v1000 = vpop.permute.xlu0 %999
  %1001 = vrot.lane.b32.xlu0 %v995, 112
  %v1002 = vpop.permute.xlu0 %1001
  %1003 = vrot.lane.b32.xlu0 %v942, 112
  %v1004 = vpop.permute.xlu0 %1003
  %1005 = vrot.lane.b32.xlu0 %v996, 112
  %v1006 = vpop.permute.xlu0 %1005
  %1007 = vrot.lane.b32.xlu0 %v943, 112
  %v1008 = vpop.permute.xlu0 %1007
  %1009 = vrot.lane.b32.xlu0 %v997, 112
  %v1010 = vpop.permute.xlu0 %1009
  %1011 = vrot.lane.b32.xlu0 %v944, 112
  %v1012 = vpop.permute.xlu0 %1011
  %1013 = vrot.lane.b32.xlu0 %v998, 112
  %v1014 = vpop.permute.xlu0 %1013
  %1015 = vrot.lane.b32.xlu0 %v945, 112
  %v1016 = vpop.permute.xlu0 %1015
  %vm1017 = vcmask 916480
  %v1018 = vsel %vm1017, %v1000, %v1002
  %v1019 = vsel %vm1017, %v1002, %v1004
  %v1020 = vsel %vm1017, %v1004, %v1006
  %v1021 = vsel %vm1017, %v1006, %v1008
  %v1022 = vsel %vm1017, %v1008, %v1010
  %v1023 = vsel %vm1017, %v1010, %v1012
  %v1024 = vsel %vm1017, %v1012, %v1014
  %v1025 = vsel %vm1017, %v1014, %v1016
  %v1034 = vmul.f32 %v961, %v1018
  %v1035 = vmul.f32 %v965, %v1019
  %v1036 = vmul.f32 %v969, %v1020
  %v1037 = vmul.f32 %v973, %v1021
  %v1038 = vmul.f32 %v977, %v1022
  %v1039 = vmul.f32 %v981, %v1023
  %v1040 = vmul.f32 %v985, %v1024
  %v1041 = vmul.f32 %v989, %v1025
  %v1042 = vpack.c.bf16 %v1034, %v1034
  %v1043 = vpack.c.bf16 %v1035, %v1035
  %v1044 = vpack.c.bf16 %v1036, %v1036
  %v1045 = vpack.c.bf16 %v1037, %v1037
  %v1046 = vpack.c.bf16 %v1038, %v1038
  %v1047 = vpack.c.bf16 %v1039, %v1039
  %v1048 = vpack.c.bf16 %v1040, %v1040
  %v1049 = vpack.c.bf16 %v1041, %v1041
  %v1058 = vunpack.c.l.b16 %v1042
  %v1059 = vunpack.c.l.b16 %v1043
  %v1060 = vunpack.c.l.b16 %v1044
  %v1061 = vunpack.c.l.b16 %v1045
  %v1062 = vunpack.c.l.b16 %v1046
  %v1063 = vunpack.c.l.b16 %v1047
  %v1064 = vunpack.c.l.b16 %v1048
  %v1065 = vunpack.c.l.b16 %v1049
  %v1066 = vpack.c.b16 %v1059, %v1058
  %v1067 = vpack.c.b16 %v1061, %v1060
  %v1068 = vpack.c.b16 %v1063, %v1062
  %v1069 = vpack.c.b16 %v1065, %v1064
  %v1070 = vrot.slane %v1066, 6
  %v1071 = vrot.slane %v1067, 6
  %v1072 = vrot.slane %v1068, 6
  %v1073 = vrot.slane %v1069, 6
  %1078 = vst [vmem:[#allocation4 + $0x60] sm:$0xcc] %v1070
  %1079 = vst [vmem:[#allocation4 + $0x68] sm:$0xcc] %v1071
  %1080 = vst [vmem:[#allocation4 + $0x70] sm:$0xcc] %v1072
  %1081 = vst [vmem:[#allocation4 + $0x78] sm:$0xcc] %v1073
  %v1082 = vld [vmem:[%s0 + $0x2] sm:$0xff]
  %v1083 = vld [vmem:[%s0 + $0xa] sm:$0xff]
  %v1084 = vld [vmem:[%s0 + $0x12] sm:$0x3]
  %v1085 = vunpack.c.l.bf16 %v1082
  %v1086 = vunpack.c.h.bf16 %v1082
  %v1087 = vunpack.c.l.bf16 %v1083
  %v1088 = vunpack.c.h.bf16 %v1083
  %v1089 = vunpack.c.l.bf16 %v1084
  %v1090 = vld [vmem:[%s1 + $0x20] sm:$0x11]
  %v1091 = vld [vmem:[%s1 + $0x28] sm:$0x11]
  %v1092 = vld [vmem:[%s1 + $0x30] sm:$0x11]
  %v1093 = vld [vmem:[%s1 + $0x38] sm:$0x11]
  %v1094 = vunpack.c.l.bf16 %v1090
  %v1095 = vunpack.c.h.bf16 %v1090
  %v1096 = vunpack.c.l.bf16 %v1091
  %v1097 = vunpack.c.h.bf16 %v1091
  %v1098 = vunpack.c.l.bf16 %v1092
  %v1099 = vunpack.c.h.bf16 %v1092
  %v1100 = vunpack.c.l.bf16 %v1093
  %v1101 = vunpack.c.h.bf16 %v1093
  %v1102 = vlaneseq
  %v1103 = vshrl.u32 %v1102, 7
  %v1104 = vsub.s32 0, %v1103
  %v1105 = vrot.slane %v1094, %v1104
  %v1106 = vlaneseq
  %v1107 = vshrl.u32 %v1106, 7
  %v1108 = vsub.s32 0, %v1107
  %v1109 = vrot.slane %v1095, %v1108
  %v1110 = vlaneseq
  %v1111 = vshrl.u32 %v1110, 7
  %v1112 = vsub.s32 0, %v1111
  %v1113 = vrot.slane %v1096, %v1112
  %v1114 = vlaneseq
  %v1115 = vshrl.u32 %v1114, 7
  %v1116 = vsub.s32 0, %v1115
  %v1117 = vrot.slane %v1097, %v1116
  %v1118 = vlaneseq
  %v1119 = vshrl.u32 %v1118, 7
  %v1120 = vsub.s32 0, %v1119
  %v1121 = vrot.slane %v1098, %v1120
  %v1122 = vlaneseq
  %v1123 = vshrl.u32 %v1122, 7
  %v1124 = vsub.s32 0, %v1123
  %v1125 = vrot.slane %v1099, %v1124
  %v1126 = vlaneseq
  %v1127 = vshrl.u32 %v1126, 7
  %v1128 = vsub.s32 0, %v1127
  %v1129 = vrot.slane %v1100, %v1128
  %v1130 = vlaneseq
  %v1131 = vshrl.u32 %v1130, 7
  %v1132 = vsub.s32 0, %v1131
  %v1133 = vrot.slane %v1101, %v1132
  %v1139 = vcombine.high %v1085, %v1085
  %v1140 = vcombine.high %v1086, %v1086
  %v1141 = vcombine.high %v1087, %v1087
  %v1142 = vcombine.high %v1088, %v1088
  %1143 = vrot.lane.b32.xlu0 %v1085, 111
  %v1144 = vpop.permute.xlu0 %1143
  %1145 = vrot.lane.b32.xlu0 %v1139, 111
  %v1146 = vpop.permute.xlu0 %1145
  %1147 = vrot.lane.b32.xlu0 %v1086, 111
  %v1148 = vpop.permute.xlu0 %1147
  %1149 = vrot.lane.b32.xlu0 %v1140, 111
  %v1150 = vpop.permute.xlu0 %1149
  %1151 = vrot.lane.b32.xlu0 %v1087, 111
  %v1152 = vpop.permute.xlu0 %1151
  %1153 = vrot.lane.b32.xlu0 %v1141, 111
  %v1154 = vpop.permute.xlu0 %1153
  %1155 = vrot.lane.b32.xlu0 %v1088, 111
  %v1156 = vpop.permute.xlu0 %1155
  %1157 = vrot.lane.b32.xlu0 %v1142, 111
  %v1158 = vpop.permute.xlu0 %1157
  %1159 = vrot.lane.b32.xlu0 %v1089, 111
  %v1160 = vpop.permute.xlu0 %1159
  %vm1161 = vcmask 908288
  %v1162 = vsel %vm1161, %v1144, %v1146
  %v1163 = vsel %vm1161, %v1146, %v1148
  %v1164 = vsel %vm1161, %v1148, %v1150
  %v1165 = vsel %vm1161, %v1150, %v1152
  %v1166 = vsel %vm1161, %v1152, %v1154
  %v1167 = vsel %vm1161, %v1154, %v1156
  %v1168 = vsel %vm1161, %v1156, %v1158
  %v1169 = vsel %vm1161, %v1158, %v1160
  %v1178 = vmul.f32 %v1105, %v1162
  %v1179 = vmul.f32 %v1109, %v1163
  %v1180 = vmul.f32 %v1113, %v1164
  %v1181 = vmul.f32 %v1117, %v1165
  %v1182 = vmul.f32 %v1121, %v1166
  %v1183 = vmul.f32 %v1125, %v1167
  %v1184 = vmul.f32 %v1129, %v1168
  %v1185 = vmul.f32 %v1133, %v1169
  %v1186 = vpack.c.bf16 %v1178, %v1178
  %v1187 = vpack.c.bf16 %v1179, %v1179
  %v1188 = vpack.c.bf16 %v1180, %v1180
  %v1189 = vpack.c.bf16 %v1181, %v1181
  %v1190 = vpack.c.bf16 %v1182, %v1182
  %v1191 = vpack.c.bf16 %v1183, %v1183
  %v1192 = vpack.c.bf16 %v1184, %v1184
  %v1193 = vpack.c.bf16 %v1185, %v1185
  %v1202 = vunpack.c.l.b16 %v1186
  %v1203 = vunpack.c.l.b16 %v1187
  %v1204 = vunpack.c.l.b16 %v1188
  %v1205 = vunpack.c.l.b16 %v1189
  %v1206 = vunpack.c.l.b16 %v1190
  %v1207 = vunpack.c.l.b16 %v1191
  %v1208 = vunpack.c.l.b16 %v1192
  %v1209 = vunpack.c.l.b16 %v1193
  %v1210 = vpack.c.b16 %v1203, %v1202
  %v1211 = vpack.c.b16 %v1205, %v1204
  %v1212 = vpack.c.b16 %v1207, %v1206
  %v1213 = vpack.c.b16 %v1209, %v1208
  %1218 = vst [vmem:[#allocation4 + $0x80] sm:$0x33] %v1210
  %1219 = vst [vmem:[#allocation4 + $0x88] sm:$0x33] %v1211
  %1220 = vst [vmem:[#allocation4 + $0x90] sm:$0x33] %v1212
  %1221 = vst [vmem:[#allocation4 + $0x98] sm:$0x33] %v1213
  %v1222 = vld [vmem:[%s2] sm:$0xf]
  %v1223 = vld [vmem:[#allocation4] sm:$0xff]
  %v1224 = vld [vmem:[#allocation4 + $0x8] sm:$0xff]
  %v1225 = vld [vmem:[#allocation4 + $0x10] sm:$0xff]
  %v1226 = vld [vmem:[#allocation4 + $0x18] sm:$0xff]
  %v1227 = vld [vmem:[#allocation4 + $0x20] sm:$0xff]
  %v1228 = vld [vmem:[#allocation4 + $0x28] sm:$0xff]
  %v1229 = vld [vmem:[#allocation4 + $0x30] sm:$0xff]
  %v1230 = vld [vmem:[#allocation4 + $0x38] sm:$0xff]
  %v1231 = vld [vmem:[#allocation4 + $0x40] sm:$0xff]
  %v1232 = vld [vmem:[#allocation4 + $0x48] sm:$0xff]
  %v1233 = vld [vmem:[#allocation4 + $0x50] sm:$0xff]
  %v1234 = vld [vmem:[#allocation4 + $0x58] sm:$0xff]
  %v1235 = vld [vmem:[#allocation4 + $0x60] sm:$0xff]
  %v1236 = vld [vmem:[#allocation4 + $0x68] sm:$0xff]
  %v1237 = vld [vmem:[#allocation4 + $0x70] sm:$0xff]
  %v1238 = vld [vmem:[#allocation4 + $0x78] sm:$0xff]
  %v1239 = vld [vmem:[#allocation4 + $0x80] sm:$0x33]
  %v1240 = vld [vmem:[#allocation4 + $0x88] sm:$0x33]
  %v1241 = vld [vmem:[#allocation4 + $0x90] sm:$0x33]
  %v1242 = vld [vmem:[#allocation4 + $0x98] sm:$0x33]
  %v1243 = vld [vmem:[%s3] sm:$0xff]
  %1245 = vset.pattern.permute.xlu0 0
  %1246 = vperm.xlu0 %1245, %v1243
  %v1247 = vpop.permute.xlu0 %1246
  %v1269 = vunpack.c.l.b16 %v1223
  %v1270 = vunpack.c.h.b16 %v1223
  %v1271 = vunpack.c.l.b16 %v1224
  %v1272 = vunpack.c.h.b16 %v1224
  %v1273 = vunpack.c.l.b16 %v1225
  %v1274 = vunpack.c.h.b16 %v1225
  %v1275 = vunpack.c.l.b16 %v1226
  %v1276 = vunpack.c.h.b16 %v1226
  %v1277 = vunpack.c.l.b16 %v1227
  %v1278 = vunpack.c.h.b16 %v1227
  %v1279 = vunpack.c.l.b16 %v1228
  %v1280 = vunpack.c.h.b16 %v1228
  %v1281 = vunpack.c.l.b16 %v1229
  %v1282 = vunpack.c.h.b16 %v1229
  %v1283 = vunpack.c.l.b16 %v1230
  %v1284 = vunpack.c.h.b16 %v1230
  %v1285 = vunpack.c.l.b16 %v1231
  %v1286 = vunpack.c.h.b16 %v1231
  %v1287 = vunpack.c.l.b16 %v1232
  %v1288 = vunpack.c.h.b16 %v1232
  %v1289 = vunpack.c.l.b16 %v1233
  %v1290 = vunpack.c.h.b16 %v1233
  %v1291 = vunpack.c.l.b16 %v1234
  %v1292 = vunpack.c.h.b16 %v1234
  %v1293 = vunpack.c.l.b16 %v1235
  %v1294 = vunpack.c.h.b16 %v1235
  %v1295 = vunpack.c.l.b16 %v1236
  %v1296 = vunpack.c.h.b16 %v1236
  %v1297 = vunpack.c.l.b16 %v1237
  %v1298 = vunpack.c.h.b16 %v1237
  %v1299 = vunpack.c.l.b16 %v1238
  %v1300 = vunpack.c.h.b16 %v1238
  %v1301 = vunpack.c.l.b16 %v1239
  %v1302 = vunpack.c.h.b16 %v1239
  %v1303 = vunpack.c.l.b16 %v1240
  %v1304 = vunpack.c.h.b16 %v1240
  %v1305 = vunpack.c.l.b16 %v1241
  %v1306 = vunpack.c.h.b16 %v1241
  %v1307 = vunpack.c.l.b16 %v1242
  %v1308 = vunpack.c.h.b16 %v1242
  %v1309 = vpack.c.b16 %v1277, %v1269
  %v1310 = vpack.c.b16 %v1278, %v1270
  %v1311 = vpack.c.b16 %v1279, %v1271
  %v1312 = vpack.c.b16 %v1280, %v1272
  %v1313 = vpack.c.b16 %v1281, %v1273
  %v1314 = vpack.c.b16 %v1282, %v1274
  %v1315 = vpack.c.b16 %v1283, %v1275
  %v1316 = vpack.c.b16 %v1284, %v1276
  %v1317 = vpack.c.b16 %v1293, %v1285
  %v1318 = vpack.c.b16 %v1294, %v1286
  %v1319 = vpack.c.b16 %v1295, %v1287
  %v1320 = vpack.c.b16 %v1296, %v1288
  %v1321 = vpack.c.b16 %v1297, %v1289
  %v1322 = vpack.c.b16 %v1298, %v1290
  %v1323 = vpack.c.b16 %v1299, %v1291
  %v1324 = vpack.c.b16 %v1300, %v1292
  %v1325 = vpack.c.b16 %v1301, %v1301
  %v1326 = vpack.c.b16 %v1302, %v1302
  %v1327 = vpack.c.b16 %v1303, %v1303
  %v1328 = vpack.c.b16 %v1304, %v1304
  %v1329 = vpack.c.b16 %v1305, %v1305
  %v1330 = vpack.c.b16 %v1306, %v1306
  %v1331 = vpack.c.b16 %v1307, %v1307
  %v1332 = vpack.c.b16 %v1308, %v1308
  %vm1349 = vcmask 293888
  %v1351 = vsel %vm1349, %v1222, 0
  %vm1353 = vcmask 1041408
  %v1355 = vsel %vm1353, %v1325, 0
  %v1358 = vsel %vm1353, %v1326, 0
  %v1361 = vsel %vm1353, %v1327, 0
  %v1364 = vsel %vm1353, %v1328, 0
  %v1367 = vsel %vm1353, %v1329, 0
  %v1370 = vsel %vm1353, %v1330, 0
  %v1373 = vsel %vm1353, %v1331, 0
  %v1376 = vsel %vm1353, %v1332, 0
  %1378 = vmatprep.subr.bf16.mxu0 0
  %1379 = vmatpush1.bf16.msra.mxu0 0
  %1380 = vmatprep.subr.bf16.mxu0 0
  %1381 = vmatpush1.bf16.msra.mxu0 0
  %1382 = vmatprep.subr.bf16.mxu0 0
  %1383 = vmatpush1.bf16.msra.mxu0 0
  %1384 = vmatprep.subr.bf16.mxu0 0
  %1385 = vmatpush1.bf16.msra.mxu0 0
  %1386 = vmatprep.subr.bf16.mxu0 0
  %1387 = vmatpush1.bf16.msra.mxu0 0
  %1388 = vmatprep.subr.bf16.mxu0 %v1358
  %1389 = vmatpush1.bf16.msra.mxu0 %v1355
  %1390 = vmatprep.subr.bf16.mxu0 %v1318
  %1391 = vmatpush1.bf16.msra.mxu0 %v1317
  %1392 = vmatprep.subr.bf16.mxu0 %v1310
  %1393 = vmatpush1.bf16.msra.mxu0 %v1309
  %1394 = vmatprep.subr.bf16.mxu0 0
  %1395 = vmatpush2.bf16.msra.mxu0 0
  %1396 = vmatprep.subr.bf16.mxu0 0
  %1397 = vmatpush2.bf16.msra.mxu0 0
  %1398 = vmatprep.subr.bf16.mxu0 0
  %1399 = vmatpush2.bf16.msra.mxu0 0
  %1400 = vmatprep.subr.bf16.mxu0 0
  %1401 = vmatpush2.bf16.msra.mxu0 0
  %1402 = vmatprep.subr.bf16.mxu0 0
  %1403 = vmatpush2.bf16.msra.mxu0 0
  %1404 = vmatprep.subr.bf16.mxu0 0
  %1405 = vmatpush2.bf16.msra.mxu0 0
  %1406 = vmatprep.subr.bf16.mxu0 0
  %1407 = vmatpush2.bf16.msra.mxu0 0
  %1408 = vmatprep.subr.bf16.mxu0 0
  %1409 = vmatpush2.bf16.msra.mxu0 0
  %1410 = vmatprep.mubr.bf16.mxu0 0
  %1411 = vmatmul.mubr.bf16.gmra.mxu0 %v1351
  %v1412 = vpop.f32.mrf.mxu0
  %v1413 = vadd.f32 %v1247, %v1412
  %v1414 = vpop.f32.mrf.mxu0
  %v1415 = vadd.f32 %v1247, %v1414
  %v1416 = vpop.f32.mrf.mxu0
  %v1417 = vpop.f32.mrf.mxu0
  %1418 = vdwg.mxu0
  %1419 = vmatprep.subr.bf16.mxu0 0
  %1420 = vmatpush1.bf16.msra.mxu0 0
  %1421 = vmatprep.subr.bf16.mxu0 0
  %1422 = vmatpush1.bf16.msra.mxu0 0
  %1423 = vmatprep.subr.bf16.mxu0 0
  %1424 = vmatpush1.bf16.msra.mxu0 0
  %1425 = vmatprep.subr.bf16.mxu0 0
  %1426 = vmatpush1.bf16.msra.mxu0 0
  %1427 = vmatprep.subr.bf16.mxu0 0
  %1428 = vmatpush1.bf16.msra.mxu0 0
  %1429 = vmatprep.subr.bf16.mxu0 %v1364
  %1430 = vmatpush1.bf16.msra.mxu0 %v1361
  %1431 = vmatprep.subr.bf16.mxu0 %v1320
  %1432 = vmatpush1.bf16.msra.mxu0 %v1319
  %1433 = vmatprep.subr.bf16.mxu0 %v1312
  %1434 = vmatpush1.bf16.msra.mxu0 %v1311
  %1435 = vmatprep.subr.bf16.mxu0 0
  %1436 = vmatpush2.bf16.msra.mxu0 0
  %1437 = vmatprep.subr.bf16.mxu0 0
  %1438 = vmatpush2.bf16.msra.mxu0 0
  %1439 = vmatprep.subr.bf16.mxu0 0
  %1440 = vmatpush2.bf16.msra.mxu0 0
  %1441 = vmatprep.subr.bf16.mxu0 0
  %1442 = vmatpush2.bf16.msra.mxu0 0
  %1443 = vmatprep.subr.bf16.mxu0 0
  %1444 = vmatpush2.bf16.msra.mxu0 0
  %1445 = vmatprep.subr.bf16.mxu0 0
  %1446 = vmatpush2.bf16.msra.mxu0 0
  %1447 = vmatprep.subr.bf16.mxu0 0
  %1448 = vmatpush2.bf16.msra.mxu0 0
  %1449 = vmatprep.subr.bf16.mxu0 0
  %1450 = vmatpush2.bf16.msra.mxu0 0
  %1451 = vmatprep.mubr.bf16.mxu0 0
  %1452 = vmatmul.mubr.bf16.gmra.mxu0 %v1351
  %v1453 = vpop.f32.mrf.mxu0
  %v1454 = vadd.f32 %v1247, %v1453
  %v1455 = vpop.f32.mrf.mxu0
  %v1456 = vadd.f32 %v1247, %v1455
  %v1457 = vpop.f32.mrf.mxu0
  %v1458 = vpop.f32.mrf.mxu0
  %1459 = vdwg.mxu0
  %1460 = vmatprep.subr.bf16.mxu0 0
  %1461 = vmatpush1.bf16.msra.mxu0 0
  %1462 = vmatprep.subr.bf16.mxu0 0
  %1463 = vmatpush1.bf16.msra.mxu0 0
  %1464 = vmatprep.subr.bf16.mxu0 0
  %1465 = vmatpush1.bf16.msra.mxu0 0
  %1466 = vmatprep.subr.bf16.mxu0 0
  %1467 = vmatpush1.bf16.msra.mxu0 0
  %1468 = vmatprep.subr.bf16.mxu0 0
  %1469 = vmatpush1.bf16.msra.mxu0 0
  %1470 = vmatprep.subr.bf16.mxu0 %v1370
  %1471 = vmatpush1.bf16.msra.mxu0 %v1367
  %1472 = vmatprep.subr.bf16.mxu0 %v1322
  %1473 = vmatpush1.bf16.msra.mxu0 %v1321
  %1474 = vmatprep.subr.bf16.mxu0 %v1314
  %1475 = vmatpush1.bf16.msra.mxu0 %v1313
  %1476 = vmatprep.subr.bf16.mxu0 0
  %1477 = vmatpush2.bf16.msra.mxu0 0
  %1478 = vmatprep.subr.bf16.mxu0 0
  %1479 = vmatpush2.bf16.msra.mxu0 0
  %1480 = vmatprep.subr.bf16.mxu0 0
  %1481 = vmatpush2.bf16.msra.mxu0 0
  %1482 = vmatprep.subr.bf16.mxu0 0
  %1483 = vmatpush2.bf16.msra.mxu0 0
  %1484 = vmatprep.subr.bf16.mxu0 0
  %1485 = vmatpush2.bf16.msra.mxu0 0
  %1486 = vmatprep.subr.bf16.mxu0 0
  %1487 = vmatpush2.bf16.msra.mxu0 0
  %1488 = vmatprep.subr.bf16.mxu0 0
  %1489 = vmatpush2.bf16.msra.mxu0 0
  %1490 = vmatprep.subr.bf16.mxu0 0
  %1491 = vmatpush2.bf16.msra.mxu0 0
  %1492 = vmatprep.mubr.bf16.mxu0 0
  %1493 = vmatmul.mubr.bf16.gmra.mxu0 %v1351
  %v1494 = vpop.f32.mrf.mxu0
  %v1495 = vadd.f32 %v1247, %v1494
  %v1496 = vpop.f32.mrf.mxu0
  %v1497 = vadd.f32 %v1247, %v1496
  %v1498 = vpop.f32.mrf.mxu0
  %v1499 = vpop.f32.mrf.mxu0
  %1500 = vdwg.mxu0
  %1501 = vmatprep.subr.bf16.mxu0 0
  %1502 = vmatpush1.bf16.msra.mxu0 0
  %1503 = vmatprep.subr.bf16.mxu0 0
  %1504 = vmatpush1.bf16.msra.mxu0 0
  %1505 = vmatprep.subr.bf16.mxu0 0
  %1506 = vmatpush1.bf16.msra.mxu0 0
  %1507 = vmatprep.subr.bf16.mxu0 0
  %1508 = vmatpush1.bf16.msra.mxu0 0
  %1509 = vmatprep.subr.bf16.mxu0 0
  %1510 = vmatpush1.bf16.msra.mxu0 0
  %1511 = vmatprep.subr.bf16.mxu0 %v1376
  %1512 = vmatpush1.bf16.msra.mxu0 %v1373
  %1513 = vmatprep.subr.bf16.mxu0 %v1324
  %1514 = vmatpush1.bf16.msra.mxu0 %v1323
  %1515 = vmatprep.subr.bf16.mxu0 %v1316
  %1516 = vmatpush1.bf16.msra.mxu0 %v1315
  %1517 = vmatprep.subr.bf16.mxu0 0
  %1518 = vmatpush2.bf16.msra.mxu0 0
  %1519 = vmatprep.subr.bf16.mxu0 0
  %1520 = vmatpush2.bf16.msra.mxu0 0
  %1521 = vmatprep.subr.bf16.mxu0 0
  %1522 = vmatpush2.bf16.msra.mxu0 0
  %1523 = vmatprep.subr.bf16.mxu0 0
  %1524 = vmatpush2.bf16.msra.mxu0 0
  %1525 = vmatprep.subr.bf16.mxu0 0
  %1526 = vmatpush2.bf16.msra.mxu0 0
  %1527 = vmatprep.subr.bf16.mxu0 0
  %1528 = vmatpush2.bf16.msra.mxu0 0
  %1529 = vmatprep.subr.bf16.mxu0 0
  %1530 = vmatpush2.bf16.msra.mxu0 0
  %1531 = vmatprep.subr.bf16.mxu0 0
  %1532 = vmatpush2.bf16.msra.mxu0 0
  %1533 = vmatprep.mubr.bf16.mxu0 0
  %1534 = vmatmul.mubr.bf16.gmra.mxu0 %v1351
  %v1535 = vpop.f32.mrf.mxu0
  %v1536 = vadd.f32 %v1247, %v1535
  %v1537 = vpop.f32.mrf.mxu0
  %v1538 = vadd.f32 %v1247, %v1537
  %v1539 = vpop.f32.mrf.mxu0
  %v1540 = vpop.f32.mrf.mxu0
  %1541 = vdwg.mxu0
  %v1542 = vmax.f32 %v1413, 0.0
  %v1543 = vmax.f32 %v1415, 0.0
  %v1544 = vmax.f32 %v1454, 0.0
  %v1545 = vmax.f32 %v1456, 0.0
  %v1546 = vmax.f32 %v1495, 0.0
  %v1547 = vmax.f32 %v1497, 0.0
  %v1548 = vmax.f32 %v1536, 0.0
  %v1549 = vmax.f32 %v1538, 0.0
  %1550 = vst [vmem:[#allocation2 + $0x8] sm:$0xff] %v1542
  %1551 = vst [vmem:[#allocation2 + $0x10] sm:$0xff] %v1543
  %1552 = vst [vmem:[#allocation2 + $0x18] sm:$0xff] %v1544
  %1553 = vst [vmem:[#allocation2 + $0x20] sm:$0xff] %v1545
  %1554 = vst [vmem:[#allocation2 + $0x28] sm:$0xff] %v1546
  %1555 = vst [vmem:[#allocation2 + $0x30] sm:$0xff] %v1547
  %1556 = vst [vmem:[#allocation2 + $0x38] sm:$0xff] %v1548
  %1557 = vst [vmem:[#allocation2 + $0x40] sm:$0xff] %v1549
  %v1558 = vld [vmem:[#allocation2] sm:$0xff]
  %v1559 = vld [vmem:[#allocation2 + $0x8] sm:$0xff]
  %v1560 = vld [vmem:[#allocation2 + $0x10] sm:$0xff]
  %v1561 = vld [vmem:[#allocation2 + $0x18] sm:$0xff]
  %v1562 = vld [vmem:[#allocation2 + $0x20] sm:$0xff]
  %v1563 = vld [vmem:[#allocation2 + $0x28] sm:$0xff]
  %v1564 = vld [vmem:[#allocation2 + $0x30] sm:$0xff]
  %v1565 = vld [vmem:[#allocation2 + $0x38] sm:$0xff]
  %v1566 = vld [vmem:[#allocation2 + $0x40] sm:$0xff]
  %v1567 = vld [vmem:[%s1] sm:$0x11]
  %v1568 = vld [vmem:[%s1 + $0x8] sm:$0x11]
  %v1569 = vld [vmem:[%s1 + $0x10] sm:$0x11]
  %v1570 = vld [vmem:[%s1 + $0x18] sm:$0x11]
  %v1571 = vunpack.c.l.bf16 %v1567
  %v1572 = vunpack.c.h.bf16 %v1567
  %v1573 = vunpack.c.l.bf16 %v1568
  %v1574 = vunpack.c.h.bf16 %v1568
  %v1575 = vunpack.c.l.bf16 %v1569
  %v1576 = vunpack.c.h.bf16 %v1569
  %v1577 = vunpack.c.l.bf16 %v1570
  %v1578 = vunpack.c.h.bf16 %v1570
  %v1579 = vlaneseq
  %v1580 = vshrl.u32 %v1579, 7
  %v1581 = vsub.s32 0, %v1580
  %v1582 = vrot.slane %v1571, %v1581
  %v1583 = vlaneseq
  %v1584 = vshrl.u32 %v1583, 7
  %v1585 = vsub.s32 0, %v1584
  %v1586 = vrot.slane %v1572, %v1585
  %v1587 = vlaneseq
  %v1588 = vshrl.u32 %v1587, 7
  %v1589 = vsub.s32 0, %v1588
  %v1590 = vrot.slane %v1573, %v1589
  %v1591 = vlaneseq
  %v1592 = vshrl.u32 %v1591, 7
  %v1593 = vsub.s32 0, %v1592
  %v1594 = vrot.slane %v1574, %v1593
  %v1595 = vlaneseq
  %v1596 = vshrl.u32 %v1595, 7
  %v1597 = vsub.s32 0, %v1596
  %v1598 = vrot.slane %v1575, %v1597
  %v1599 = vlaneseq
  %v1600 = vshrl.u32 %v1599, 7
  %v1601 = vsub.s32 0, %v1600
  %v1602 = vrot.slane %v1576, %v1601
  %v1603 = vlaneseq
  %v1604 = vshrl.u32 %v1603, 7
  %v1605 = vsub.s32 0, %v1604
  %v1606 = vrot.slane %v1577, %v1605
  %v1607 = vlaneseq
  %v1608 = vshrl.u32 %v1607, 7
  %v1609 = vsub.s32 0, %v1608
  %v1610 = vrot.slane %v1578, %v1609
  %1620 = vrot.lane.b32.xlu0 %v1558, 17
  %v1621 = vpop.permute.xlu0 %1620
  %1622 = vrot.lane.b32.xlu0 %v1559, 17
  %v1623 = vpop.permute.xlu0 %1622
  %1624 = vrot.lane.b32.xlu0 %v1560, 17
  %v1625 = vpop.permute.xlu0 %1624
  %1626 = vrot.lane.b32.xlu0 %v1561, 17
  %v1627 = vpop.permute.xlu0 %1626
  %1628 = vrot.lane.b32.xlu0 %v1562, 17
  %v1629 = vpop.permute.xlu0 %1628
  %1630 = vrot.lane.b32.xlu0 %v1563, 17
  %v1631 = vpop.permute.xlu0 %1630
  %1632 = vrot.lane.b32.xlu0 %v1564, 17
  %v1633 = vpop.permute.xlu0 %1632
  %1634 = vrot.lane.b32.xlu0 %v1565, 17
  %v1635 = vpop.permute.xlu0 %1634
  %1636 = vrot.lane.b32.xlu0 %v1566, 17
  %v1637 = vpop.permute.xlu0 %1636
  %v1638 = vsel %vm123, %v1621, %v1623
  %v1639 = vsel %vm123, %v1623, %v1625
  %v1640 = vsel %vm123, %v1625, %v1627
  %v1641 = vsel %vm123, %v1627, %v1629
  %v1642 = vsel %vm123, %v1629, %v1631
  %v1643 = vsel %vm123, %v1631, %v1633
  %v1644 = vsel %vm123, %v1633, %v1635
  %v1645 = vsel %vm123, %v1635, %v1637
  %v1654 = vmul.f32 %v1582, %v1638
  %v1655 = vmul.f32 %v1586, %v1639
  %v1656 = vmul.f32 %v1590, %v1640
  %v1657 = vmul.f32 %v1594, %v1641
  %v1658 = vmul.f32 %v1598, %v1642
  %v1659 = vmul.f32 %v1602, %v1643
  %v1660 = vmul.f32 %v1606, %v1644
  %v1661 = vmul.f32 %v1610, %v1645
  %v1662 = vpack.c.bf16 %v1654, %v1654
  %v1663 = vpack.c.bf16 %v1655, %v1655
  %v1664 = vpack.c.bf16 %v1656, %v1656
  %v1665 = vpack.c.bf16 %v1657, %v1657
  %v1666 = vpack.c.bf16 %v1658, %v1658
  %v1667 = vpack.c.bf16 %v1659, %v1659
  %v1668 = vpack.c.bf16 %v1660, %v1660
  %v1669 = vpack.c.bf16 %v1661, %v1661
  %v1678 = vunpack.c.l.b16 %v1662
  %v1679 = vunpack.c.l.b16 %v1663
  %v1680 = vunpack.c.l.b16 %v1664
  %v1681 = vunpack.c.l.b16 %v1665
  %v1682 = vunpack.c.l.b16 %v1666
  %v1683 = vunpack.c.l.b16 %v1667
  %v1684 = vunpack.c.l.b16 %v1668
  %v1685 = vunpack.c.l.b16 %v1669
  %v1686 = vpack.c.b16 %v1679, %v1678
  %v1687 = vpack.c.b16 %v1681, %v1680
  %v1688 = vpack.c.b16 %v1683, %v1682
  %v1689 = vpack.c.b16 %v1685, %v1684
  %1694 = vst [vmem:[#allocation4] sm:$0xff] %v1686
  %1695 = vst [vmem:[#allocation4 + $0x8] sm:$0xff] %v1687
  %1696 = vst [vmem:[#allocation4 + $0x10] sm:$0xff] %v1688
  %1697 = vst [vmem:[#allocation4 + $0x18] sm:$0xff] %v1689
  %v1698 = vld [vmem:[#allocation2] sm:$0xff]
  %v1699 = vld [vmem:[#allocation2 + $0x8] sm:$0xff]
  %v1700 = vld [vmem:[#allocation2 + $0x10] sm:$0xff]
  %v1701 = vld [vmem:[#allocation2 + $0x18] sm:$0xff]
  %v1702 = vld [vmem:[#allocation2 + $0x20] sm:$0xff]
  %v1703 = vld [vmem:[#allocation2 + $0x28] sm:$0xff]
  %v1704 = vld [vmem:[#allocation2 + $0x30] sm:$0xff]
  %v1705 = vld [vmem:[#allocation2 + $0x38] sm:$0xff]
  %v1706 = vld [vmem:[#allocation2 + $0x40] sm:$0xff]
  %v1707 = vld [vmem:[%s1] sm:$0x11]
  %v1708 = vld [vmem:[%s1 + $0x8] sm:$0x11]
  %v1709 = vld [vmem:[%s1 + $0x10] sm:$0x11]
  %v1710 = vld [vmem:[%s1 + $0x18] sm:$0x11]
  %v1711 = vunpack.c.l.bf16 %v1707
  %v1712 = vunpack.c.h.bf16 %v1707
  %v1713 = vunpack.c.l.bf16 %v1708
  %v1714 = vunpack.c.h.bf16 %v1708
  %v1715 = vunpack.c.l.bf16 %v1709
  %v1716 = vunpack.c.h.bf16 %v1709
  %v1717 = vunpack.c.l.bf16 %v1710
  %v1718 = vunpack.c.h.bf16 %v1710
  %v1719 = vlaneseq
  %v1720 = vshrl.u32 %v1719, 7
  %v1721 = vsub.s32 1, %v1720
  %v1722 = vrot.slane %v1711, %v1721
  %v1723 = vlaneseq
  %v1724 = vshrl.u32 %v1723, 7
  %v1725 = vsub.s32 1, %v1724
  %v1726 = vrot.slane %v1712, %v1725
  %v1727 = vlaneseq
  %v1728 = vshrl.u32 %v1727, 7
  %v1729 = vsub.s32 1, %v1728
  %v1730 = vrot.slane %v1713, %v1729
  %v1731 = vlaneseq
  %v1732 = vshrl.u32 %v1731, 7
  %v1733 = vsub.s32 1, %v1732
  %v1734 = vrot.slane %v1714, %v1733
  %v1735 = vlaneseq
  %v1736 = vshrl.u32 %v1735, 7
  %v1737 = vsub.s32 1, %v1736
  %v1738 = vrot.slane %v1715, %v1737
  %v1739 = vlaneseq
  %v1740 = vshrl.u32 %v1739, 7
  %v1741 = vsub.s32 1, %v1740
  %v1742 = vrot.slane %v1716, %v1741
  %v1743 = vlaneseq
  %v1744 = vshrl.u32 %v1743, 7
  %v1745 = vsub.s32 1, %v1744
  %v1746 = vrot.slane %v1717, %v1745
  %v1747 = vlaneseq
  %v1748 = vshrl.u32 %v1747, 7
  %v1749 = vsub.s32 1, %v1748
  %v1750 = vrot.slane %v1718, %v1749
  %1760 = vrot.lane.b32.xlu0 %v1698, 16
  %v1761 = vpop.permute.xlu0 %1760
  %1762 = vrot.lane.b32.xlu0 %v1699, 16
  %v1763 = vpop.permute.xlu0 %1762
  %1764 = vrot.lane.b32.xlu0 %v1700, 16
  %v1765 = vpop.permute.xlu0 %1764
  %1766 = vrot.lane.b32.xlu0 %v1701, 16
  %v1767 = vpop.permute.xlu0 %1766
  %1768 = vrot.lane.b32.xlu0 %v1702, 16
  %v1769 = vpop.permute.xlu0 %1768
  %1770 = vrot.lane.b32.xlu0 %v1703, 16
  %v1771 = vpop.permute.xlu0 %1770
  %1772 = vrot.lane.b32.xlu0 %v1704, 16
  %v1773 = vpop.permute.xlu0 %1772
  %1774 = vrot.lane.b32.xlu0 %v1705, 16
  %v1775 = vpop.permute.xlu0 %1774
  %1776 = vrot.lane.b32.xlu0 %v1706, 16
  %v1777 = vpop.permute.xlu0 %1776
  %v1778 = vsel %vm263, %v1761, %v1763
  %v1779 = vsel %vm263, %v1763, %v1765
  %v1780 = vsel %vm263, %v1765, %v1767
  %v1781 = vsel %vm263, %v1767, %v1769
  %v1782 = vsel %vm263, %v1769, %v1771
  %v1783 = vsel %vm263, %v1771, %v1773
  %v1784 = vsel %vm263, %v1773, %v1775
  %v1785 = vsel %vm263, %v1775, %v1777
  %v1794 = vmul.f32 %v1722, %v1778
  %v1795 = vmul.f32 %v1726, %v1779
  %v1796 = vmul.f32 %v1730, %v1780
  %v1797 = vmul.f32 %v1734, %v1781
  %v1798 = vmul.f32 %v1738, %v1782
  %v1799 = vmul.f32 %v1742, %v1783
  %v1800 = vmul.f32 %v1746, %v1784
  %v1801 = vmul.f32 %v1750, %v1785
  %v1802 = vpack.c.bf16 %v1794, %v1794
  %v1803 = vpack.c.bf16 %v1795, %v1795
  %v1804 = vpack.c.bf16 %v1796, %v1796
  %v1805 = vpack.c.bf16 %v1797, %v1797
  %v1806 = vpack.c.bf16 %v1798, %v1798
  %v1807 = vpack.c.bf16 %v1799, %v1799
  %v1808 = vpack.c.bf16 %v1800, %v1800
  %v1809 = vpack.c.bf16 %v1801, %v1801
  %v1818 = vunpack.c.l.b16 %v1802
  %v1819 = vunpack.c.l.b16 %v1803
  %v1820 = vunpack.c.l.b16 %v1804
  %v1821 = vunpack.c.l.b16 %v1805
  %v1822 = vunpack.c.l.b16 %v1806
  %v1823 = vunpack.c.l.b16 %v1807
  %v1824 = vunpack.c.l.b16 %v1808
  %v1825 = vunpack.c.l.b16 %v1809
  %v1826 = vpack.c.b16 %v1819, %v1818
  %v1827 = vpack.c.b16 %v1821, %v1820
  %v1828 = vpack.c.b16 %v1823, %v1822
  %v1829 = vpack.c.b16 %v1825, %v1824
  %1834 = vst [vmem:[#allocation4 + $0x20] sm:$0xff] %v1826
  %1835 = vst [vmem:[#allocation4 + $0x28] sm:$0xff] %v1827
  %1836 = vst [vmem:[#allocation4 + $0x30] sm:$0xff] %v1828
  %1837 = vst [vmem:[#allocation4 + $0x38] sm:$0xff] %v1829
  %v1838 = vld [vmem:[#allocation2] sm:$0xff]
  %v1839 = vld [vmem:[#allocation2 + $0x8] sm:$0xff]
  %v1840 = vld [vmem:[#allocation2 + $0x10] sm:$0xff]
  %v1841 = vld [vmem:[#allocation2 + $0x18] sm:$0xff]
  %v1842 = vld [vmem:[#allocation2 + $0x20] sm:$0xff]
  %v1843 = vld [vmem:[#allocation2 + $0x28] sm:$0xff]
  %v1844 = vld [vmem:[#allocation2 + $0x30] sm:$0xff]
  %v1845 = vld [vmem:[#allocation2 + $0x38] sm:$0xff]
  %v1846 = vld [vmem:[#allocation2 + $0x40] sm:$0xff]
  %v1847 = vld [vmem:[%s1] sm:$0x22]
  %v1848 = vld [vmem:[%s1 + $0x8] sm:$0x22]
  %v1849 = vld [vmem:[%s1 + $0x10] sm:$0x22]
  %v1850 = vld [vmem:[%s1 + $0x18] sm:$0x22]
  %v1851 = vunpack.c.l.bf16 %v1847
  %v1852 = vunpack.c.h.bf16 %v1847
  %v1853 = vunpack.c.l.bf16 %v1848
  %v1854 = vunpack.c.h.bf16 %v1848
  %v1855 = vunpack.c.l.bf16 %v1849
  %v1856 = vunpack.c.h.bf16 %v1849
  %v1857 = vunpack.c.l.bf16 %v1850
  %v1858 = vunpack.c.h.bf16 %v1850
  %v1859 = vlaneseq
  %v1860 = vshrl.u32 %v1859, 7
  %v1861 = vsub.s32 2, %v1860
  %v1862 = vrot.slane %v1851, %v1861
  %v1863 = vlaneseq
  %v1864 = vshrl.u32 %v1863, 7
  %v1865 = vsub.s32 2, %v1864
  %v1866 = vrot.slane %v1852, %v1865
  %v1867 = vlaneseq
  %v1868 = vshrl.u32 %v1867, 7
  %v1869 = vsub.s32 2, %v1868
  %v1870 = vrot.slane %v1853, %v1869
  %v1871 = vlaneseq
  %v1872 = vshrl.u32 %v1871, 7
  %v1873 = vsub.s32 2, %v1872
  %v1874 = vrot.slane %v1854, %v1873
  %v1875 = vlaneseq
  %v1876 = vshrl.u32 %v1875, 7
  %v1877 = vsub.s32 2, %v1876
  %v1878 = vrot.slane %v1855, %v1877
  %v1879 = vlaneseq
  %v1880 = vshrl.u32 %v1879, 7
  %v1881 = vsub.s32 2, %v1880
  %v1882 = vrot.slane %v1856, %v1881
  %v1883 = vlaneseq
  %v1884 = vshrl.u32 %v1883, 7
  %v1885 = vsub.s32 2, %v1884
  %v1886 = vrot.slane %v1857, %v1885
  %v1887 = vlaneseq
  %v1888 = vshrl.u32 %v1887, 7
  %v1889 = vsub.s32 2, %v1888
  %v1890 = vrot.slane %v1858, %v1889
  %1900 = vrot.lane.b32.xlu0 %v1838, 15
  %v1901 = vpop.permute.xlu0 %1900
  %1902 = vrot.lane.b32.xlu0 %v1839, 15
  %v1903 = vpop.permute.xlu0 %1902
  %1904 = vrot.lane.b32.xlu0 %v1840, 15
  %v1905 = vpop.permute.xlu0 %1904
  %1906 = vrot.lane.b32.xlu0 %v1841, 15
  %v1907 = vpop.permute.xlu0 %1906
  %1908 = vrot.lane.b32.xlu0 %v1842, 15
  %v1909 = vpop.permute.xlu0 %1908
  %1910 = vrot.lane.b32.xlu0 %v1843, 15
  %v1911 = vpop.permute.xlu0 %1910
  %1912 = vrot.lane.b32.xlu0 %v1844, 15
  %v1913 = vpop.permute.xlu0 %1912
  %1914 = vrot.lane.b32.xlu0 %v1845, 15
  %v1915 = vpop.permute.xlu0 %1914
  %1916 = vrot.lane.b32.xlu0 %v1846, 15
  %v1917 = vpop.permute.xlu0 %1916
  %v1918 = vsel %vm407, %v1901, %v1903
  %v1919 = vsel %vm407, %v1903, %v1905
  %v1920 = vsel %vm407, %v1905, %v1907
  %v1921 = vsel %vm407, %v1907, %v1909
  %v1922 = vsel %vm407, %v1909, %v1911
  %v1923 = vsel %vm407, %v1911, %v1913
  %v1924 = vsel %vm407, %v1913, %v1915
  %v1925 = vsel %vm407, %v1915, %v1917
  %v1934 = vmul.f32 %v1862, %v1918
  %v1935 = vmul.f32 %v1866, %v1919
  %v1936 = vmul.f32 %v1870, %v1920
  %v1937 = vmul.f32 %v1874, %v1921
  %v1938 = vmul.f32 %v1878, %v1922
  %v1939 = vmul.f32 %v1882, %v1923
  %v1940 = vmul.f32 %v1886, %v1924
  %v1941 = vmul.f32 %v1890, %v1925
  %v1942 = vpack.c.bf16 %v1934, %v1934
  %v1943 = vpack.c.bf16 %v1935, %v1935
  %v1944 = vpack.c.bf16 %v1936, %v1936
  %v1945 = vpack.c.bf16 %v1937, %v1937
  %v1946 = vpack.c.bf16 %v1938, %v1938
  %v1947 = vpack.c.bf16 %v1939, %v1939
  %v1948 = vpack.c.bf16 %v1940, %v1940
  %v1949 = vpack.c.bf16 %v1941, %v1941
  %v1958 = vunpack.c.l.b16 %v1942
  %v1959 = vunpack.c.l.b16 %v1943
  %v1960 = vunpack.c.l.b16 %v1944
  %v1961 = vunpack.c.l.b16 %v1945
  %v1962 = vunpack.c.l.b16 %v1946
  %v1963 = vunpack.c.l.b16 %v1947
  %v1964 = vunpack.c.l.b16 %v1948
  %v1965 = vunpack.c.l.b16 %v1949
  %v1966 = vpack.c.b16 %v1959, %v1958
  %v1967 = vpack.c.b16 %v1961, %v1960
  %v1968 = vpack.c.b16 %v1963, %v1962
  %v1969 = vpack.c.b16 %v1965, %v1964
  %1974 = vst [vmem:[#allocation4 + $0x40] sm:$0xff] %v1966
  %1975 = vst [vmem:[#allocation4 + $0x48] sm:$0xff] %v1967
  %1976 = vst [vmem:[#allocation4 + $0x50] sm:$0xff] %v1968
  %1977 = vst [vmem:[#allocation4 + $0x58] sm:$0xff] %v1969
  %v1978 = vld [vmem:[#allocation2] sm:$0xff]
  %v1979 = vld [vmem:[#allocation2 + $0x8] sm:$0xff]
  %v1980 = vld [vmem:[#allocation2 + $0x10] sm:$0xff]
  %v1981 = vld [vmem:[#allocation2 + $0x18] sm:$0xff]
  %v1982 = vld [vmem:[#allocation2 + $0x20] sm:$0xff]
  %v1983 = vld [vmem:[#allocation2 + $0x28] sm:$0xff]
  %v1984 = vld [vmem:[#allocation2 + $0x30] sm:$0xff]
  %v1985 = vld [vmem:[#allocation2 + $0x38] sm:$0xff]
  %v1986 = vld [vmem:[#allocation2 + $0x40] sm:$0xff]
  %v1987 = vld [vmem:[%s1] sm:$0x22]
  %v1988 = vld [vmem:[%s1 + $0x8] sm:$0x22]
  %v1989 = vld [vmem:[%s1 + $0x10] sm:$0x22]
  %v1990 = vld [vmem:[%s1 + $0x18] sm:$0x22]
  %v1991 = vunpack.c.l.bf16 %v1987
  %v1992 = vunpack.c.h.bf16 %v1987
  %v1993 = vunpack.c.l.bf16 %v1988
  %v1994 = vunpack.c.h.bf16 %v1988
  %v1995 = vunpack.c.l.bf16 %v1989
  %v1996 = vunpack.c.h.bf16 %v1989
  %v1997 = vunpack.c.l.bf16 %v1990
  %v1998 = vunpack.c.h.bf16 %v1990
  %v1999 = vlaneseq
  %v2000 = vshrl.u32 %v1999, 7
  %v2001 = vsub.s32 3, %v2000
  %v2002 = vrot.slane %v1991, %v2001
  %v2003 = vlaneseq
  %v2004 = vshrl.u32 %v2003, 7
  %v2005 = vsub.s32 3, %v2004
  %v2006 = vrot.slane %v1992, %v2005
  %v2007 = vlaneseq
  %v2008 = vshrl.u32 %v2007, 7
  %v2009 = vsub.s32 3, %v2008
  %v2010 = vrot.slane %v1993, %v2009
  %v2011 = vlaneseq
  %v2012 = vshrl.u32 %v2011, 7
  %v2013 = vsub.s32 3, %v2012
  %v2014 = vrot.slane %v1994, %v2013
  %v2015 = vlaneseq
  %v2016 = vshrl.u32 %v2015, 7
  %v2017 = vsub.s32 3, %v2016
  %v2018 = vrot.slane %v1995, %v2017
  %v2019 = vlaneseq
  %v2020 = vshrl.u32 %v2019, 7
  %v2021 = vsub.s32 3, %v2020
  %v2022 = vrot.slane %v1996, %v2021
  %v2023 = vlaneseq
  %v2024 = vshrl.u32 %v2023, 7
  %v2025 = vsub.s32 3, %v2024
  %v2026 = vrot.slane %v1997, %v2025
  %v2027 = vlaneseq
  %v2028 = vshrl.u32 %v2027, 7
  %v2029 = vsub.s32 3, %v2028
  %v2030 = vrot.slane %v1998, %v2029
  %2040 = vrot.lane.b32.xlu0 %v1978, 1
  %v2041 = vpop.permute.xlu0 %2040
  %2042 = vrot.lane.b32.xlu0 %v1979, 1
  %v2043 = vpop.permute.xlu0 %2042
  %2044 = vrot.lane.b32.xlu0 %v1980, 1
  %v2045 = vpop.permute.xlu0 %2044
  %2046 = vrot.lane.b32.xlu0 %v1981, 1
  %v2047 = vpop.permute.xlu0 %2046
  %2048 = vrot.lane.b32.xlu0 %v1982, 1
  %v2049 = vpop.permute.xlu0 %2048
  %2050 = vrot.lane.b32.xlu0 %v1983, 1
  %v2051 = vpop.permute.xlu0 %2050
  %2052 = vrot.lane.b32.xlu0 %v1984, 1
  %v2053 = vpop.permute.xlu0 %2052
  %2054 = vrot.lane.b32.xlu0 %v1985, 1
  %v2055 = vpop.permute.xlu0 %2054
  %2056 = vrot.lane.b32.xlu0 %v1986, 1
  %v2057 = vpop.permute.xlu0 %2056
  %v2058 = vsel %vm547, %v2041, %v2043
  %v2059 = vsel %vm547, %v2043, %v2045
  %v2060 = vsel %vm547, %v2045, %v2047
  %v2061 = vsel %vm547, %v2047, %v2049
  %v2062 = vsel %vm547, %v2049, %v2051
  %v2063 = vsel %vm547, %v2051, %v2053
  %v2064 = vsel %vm547, %v2053, %v2055
  %v2065 = vsel %vm547, %v2055, %v2057
  %v2074 = vmul.f32 %v2002, %v2058
  %v2075 = vmul.f32 %v2006, %v2059
  %v2076 = vmul.f32 %v2010, %v2060
  %v2077 = vmul.f32 %v2014, %v2061
  %v2078 = vmul.f32 %v2018, %v2062
  %v2079 = vmul.f32 %v2022, %v2063
  %v2080 = vmul.f32 %v2026, %v2064
  %v2081 = vmul.f32 %v2030, %v2065
  %v2082 = vpack.c.bf16 %v2074, %v2074
  %v2083 = vpack.c.bf16 %v2075, %v2075
  %v2084 = vpack.c.bf16 %v2076, %v2076
  %v2085 = vpack.c.bf16 %v2077, %v2077
  %v2086 = vpack.c.bf16 %v2078, %v2078
  %v2087 = vpack.c.bf16 %v2079, %v2079
  %v2088 = vpack.c.bf16 %v2080, %v2080
  %v2089 = vpack.c.bf16 %v2081, %v2081
  %v2098 = vunpack.c.l.b16 %v2082
  %v2099 = vunpack.c.l.b16 %v2083
  %v2100 = vunpack.c.l.b16 %v2084
  %v2101 = vunpack.c.l.b16 %v2085
  %v2102 = vunpack.c.l.b16 %v2086
  %v2103 = vunpack.c.l.b16 %v2087
  %v2104 = vunpack.c.l.b16 %v2088
  %v2105 = vunpack.c.l.b16 %v2089
  %v2106 = vpack.c.b16 %v2099, %v2098
  %v2107 = vpack.c.b16 %v2101, %v2100
  %v2108 = vpack.c.b16 %v2103, %v2102
  %v2109 = vpack.c.b16 %v2105, %v2104
  %2114 = vst [vmem:[#allocation4 + $0x60] sm:$0xff] %v2106
  %2115 = vst [vmem:[#allocation4 + $0x68] sm:$0xff] %v2107
  %2116 = vst [vmem:[#allocation4 + $0x70] sm:$0xff] %v2108
  %2117 = vst [vmem:[#allocation4 + $0x78] sm:$0xff] %v2109
  %v2118 = vld [vmem:[#allocation2 + $0x8] sm:$0xff]
  %v2119 = vld [vmem:[#allocation2 + $0x10] sm:$0xff]
  %v2120 = vld [vmem:[#allocation2 + $0x18] sm:$0xff]
  %v2121 = vld [vmem:[#allocation2 + $0x20] sm:$0xff]
  %v2122 = vld [vmem:[#allocation2 + $0x28] sm:$0xff]
  %v2123 = vld [vmem:[#allocation2 + $0x30] sm:$0xff]
  %v2124 = vld [vmem:[#allocation2 + $0x38] sm:$0xff]
  %v2125 = vld [vmem:[#allocation2 + $0x40] sm:$0xff]
  %v2126 = vpack.c.bf16 %v2118, %v2118
  %v2127 = vpack.c.bf16 %v2119, %v2119
  %v2128 = vpack.c.bf16 %v2120, %v2120
  %v2129 = vpack.c.bf16 %v2121, %v2121
  %v2130 = vpack.c.bf16 %v2122, %v2122
  %v2131 = vpack.c.bf16 %v2123, %v2123
  %v2132 = vpack.c.bf16 %v2124, %v2124
  %v2133 = vpack.c.bf16 %v2125, %v2125
  %v2142 = vunpack.c.l.b16 %v2126
  %v2143 = vunpack.c.l.b16 %v2127
  %v2144 = vunpack.c.l.b16 %v2128
  %v2145 = vunpack.c.l.b16 %v2129
  %v2146 = vunpack.c.l.b16 %v2130
  %v2147 = vunpack.c.l.b16 %v2131
  %v2148 = vunpack.c.l.b16 %v2132
  %v2149 = vunpack.c.l.b16 %v2133
  %v2150 = vpack.c.b16 %v2143, %v2142
  %v2151 = vpack.c.b16 %v2145, %v2144
  %v2152 = vpack.c.b16 %v2147, %v2146
  %v2153 = vpack.c.b16 %v2149, %v2148
  %2158 = vst [vmem:[#allocation4 + $0x80] sm:$0xff] %v2150
  %2159 = vst [vmem:[#allocation4 + $0x88] sm:$0xff] %v2151
  %2160 = vst [vmem:[#allocation4 + $0x90] sm:$0xff] %v2152
  %2161 = vst [vmem:[#allocation4 + $0x98] sm:$0xff] %v2153
  %v2162 = vld [vmem:[#allocation2 + $0x8] sm:$0xff]
  %v2163 = vld [vmem:[#allocation2 + $0x10] sm:$0xff]
  %v2164 = vld [vmem:[#allocation2 + $0x18] sm:$0xff]
  %v2165 = vld [vmem:[#allocation2 + $0x20] sm:$0xff]
  %v2166 = vld [vmem:[#allocation2 + $0x28] sm:$0xff]
  %v2167 = vld [vmem:[#allocation2 + $0x30] sm:$0xff]
  %v2168 = vld [vmem:[#allocation2 + $0x38] sm:$0xff]
  %v2169 = vld [vmem:[#allocation2 + $0x40] sm:$0xff]
  %v2170 = vld [vmem:[#allocation2 + $0x48] sm:$0xff]
  %v2171 = vld [vmem:[%s1] sm:$0x44]
  %v2172 = vld [vmem:[%s1 + $0x8] sm:$0x44]
  %v2173 = vld [vmem:[%s1 + $0x10] sm:$0x44]
  %v2174 = vld [vmem:[%s1 + $0x18] sm:$0x44]
  %v2175 = vunpack.c.l.bf16 %v2171
  %v2176 = vunpack.c.h.bf16 %v2171
  %v2177 = vunpack.c.l.bf16 %v2172
  %v2178 = vunpack.c.h.bf16 %v2172
  %v2179 = vunpack.c.l.bf16 %v2173
  %v2180 = vunpack.c.h.bf16 %v2173
  %v2181 = vunpack.c.l.bf16 %v2174
  %v2182 = vunpack.c.h.bf16 %v2174
  %v2183 = vlaneseq
  %v2184 = vshrl.u32 %v2183, 7
  %v2185 = vsub.s32 5, %v2184
  %v2186 = vrot.slane %v2175, %v2185
  %v2187 = vlaneseq
  %v2188 = vshrl.u32 %v2187, 7
  %v2189 = vsub.s32 5, %v2188
  %v2190 = vrot.slane %v2176, %v2189
  %v2191 = vlaneseq
  %v2192 = vshrl.u32 %v2191, 7
  %v2193 = vsub.s32 5, %v2192
  %v2194 = vrot.slane %v2177, %v2193
  %v2195 = vlaneseq
  %v2196 = vshrl.u32 %v2195, 7
  %v2197 = vsub.s32 5, %v2196
  %v2198 = vrot.slane %v2178, %v2197
  %v2199 = vlaneseq
  %v2200 = vshrl.u32 %v2199, 7
  %v2201 = vsub.s32 5, %v2200
  %v2202 = vrot.slane %v2179, %v2201
  %v2203 = vlaneseq
  %v2204 = vshrl.u32 %v2203, 7
  %v2205 = vsub.s32 5, %v2204
  %v2206 = vrot.slane %v2180, %v2205
  %v2207 = vlaneseq
  %v2208 = vshrl.u32 %v2207, 7
  %v2209 = vsub.s32 5, %v2208
  %v2210 = vrot.slane %v2181, %v2209
  %v2211 = vlaneseq
  %v2212 = vshrl.u32 %v2211, 7
  %v2213 = vsub.s32 5, %v2212
  %v2214 = vrot.slane %v2182, %v2213
  %2224 = vrot.lane.b32.xlu0 %v2162, 127
  %v2225 = vpop.permute.xlu0 %2224
  %2226 = vrot.lane.b32.xlu0 %v2163, 127
  %v2227 = vpop.permute.xlu0 %2226
  %2228 = vrot.lane.b32.xlu0 %v2164, 127
  %v2229 = vpop.permute.xlu0 %2228
  %2230 = vrot.lane.b32.xlu0 %v2165, 127
  %v2231 = vpop.permute.xlu0 %2230
  %2232 = vrot.lane.b32.xlu0 %v2166, 127
  %v2233 = vpop.permute.xlu0 %2232
  %2234 = vrot.lane.b32.xlu0 %v2167, 127
  %v2235 = vpop.permute.xlu0 %2234
  %2236 = vrot.lane.b32.xlu0 %v2168, 127
  %v2237 = vpop.permute.xlu0 %2236
  %2238 = vrot.lane.b32.xlu0 %v2169, 127
  %v2239 = vpop.permute.xlu0 %2238
  %2240 = vrot.lane.b32.xlu0 %v2170, 127
  %v2241 = vpop.permute.xlu0 %2240
  %v2242 = vsel %vm733, %v2225, %v2227
  %v2243 = vsel %vm733, %v2227, %v2229
  %v2244 = vsel %vm733, %v2229, %v2231
  %v2245 = vsel %vm733, %v2231, %v2233
  %v2246 = vsel %vm733, %v2233, %v2235
  %v2247 = vsel %vm733, %v2235, %v2237
  %v2248 = vsel %vm733, %v2237, %v2239
  %v2249 = vsel %vm733, %v2239, %v2241
  %v2258 = vmul.f32 %v2186, %v2242
  %v2259 = vmul.f32 %v2190, %v2243
  %v2260 = vmul.f32 %v2194, %v2244
  %v2261 = vmul.f32 %v2198, %v2245
  %v2262 = vmul.f32 %v2202, %v2246
  %v2263 = vmul.f32 %v2206, %v2247
  %v2264 = vmul.f32 %v2210, %v2248
  %v2265 = vmul.f32 %v2214, %v2249
  %v2266 = vpack.c.bf16 %v2258, %v2258
  %v2267 = vpack.c.bf16 %v2259, %v2259
  %v2268 = vpack.c.bf16 %v2260, %v2260
  %v2269 = vpack.c.bf16 %v2261, %v2261
  %v2270 = vpack.c.bf16 %v2262, %v2262
  %v2271 = vpack.c.bf16 %v2263, %v2263
  %v2272 = vpack.c.bf16 %v2264, %v2264
  %v2273 = vpack.c.bf16 %v2265, %v2265
  %v2282 = vunpack.c.l.b16 %v2266
  %v2283 = vunpack.c.l.b16 %v2267
  %v2284 = vunpack.c.l.b16 %v2268
  %v2285 = vunpack.c.l.b16 %v2269
  %v2286 = vunpack.c.l.b16 %v2270
  %v2287 = vunpack.c.l.b16 %v2271
  %v2288 = vunpack.c.l.b16 %v2272
  %v2289 = vunpack.c.l.b16 %v2273
  %v2290 = vpack.c.b16 %v2283, %v2282
  %v2291 = vpack.c.b16 %v2285, %v2284
  %v2292 = vpack.c.b16 %v2287, %v2286
  %v2293 = vpack.c.b16 %v2289, %v2288
  %2298 = vst [vmem:[#allocation4 + $0xa0] sm:$0xff] %v2290
  %2299 = vst [vmem:[#allocation4 + $0xa8] sm:$0xff] %v2291
  %2300 = vst [vmem:[#allocation4 + $0xb0] sm:$0xff] %v2292
  %2301 = vst [vmem:[#allocation4 + $0xb8] sm:$0xff] %v2293
  %v2302 = vld [vmem:[#allocation2 + $0x8] sm:$0xff]
  %v2303 = vld [vmem:[#allocation2 + $0x10] sm:$0xff]
  %v2304 = vld [vmem:[#allocation2 + $0x18] sm:$0xff]
  %v2305 = vld [vmem:[#allocation2 + $0x20] sm:$0xff]
  %v2306 = vld [vmem:[#allocation2 + $0x28] sm:$0xff]
  %v2307 = vld [vmem:[#allocation2 + $0x30] sm:$0xff]
  %v2308 = vld [vmem:[#allocation2 + $0x38] sm:$0xff]
  %v2309 = vld [vmem:[#allocation2 + $0x40] sm:$0xff]
  %v2310 = vld [vmem:[#allocation2 + $0x48] sm:$0xff]
  %v2311 = vld [vmem:[%s1] sm:$0x88]
  %v2312 = vld [vmem:[%s1 + $0x8] sm:$0x88]
  %v2313 = vld [vmem:[%s1 + $0x10] sm:$0x88]
  %v2314 = vld [vmem:[%s1 + $0x18] sm:$0x88]
  %v2315 = vunpack.c.l.bf16 %v2311
  %v2316 = vunpack.c.h.bf16 %v2311
  %v2317 = vunpack.c.l.bf16 %v2312
  %v2318 = vunpack.c.h.bf16 %v2312
  %v2319 = vunpack.c.l.bf16 %v2313
  %v2320 = vunpack.c.h.bf16 %v2313
  %v2321 = vunpack.c.l.bf16 %v2314
  %v2322 = vunpack.c.h.bf16 %v2314
  %v2323 = vlaneseq
  %v2324 = vshrl.u32 %v2323, 7
  %v2325 = vsub.s32 6, %v2324
  %v2326 = vrot.slane %v2315, %v2325
  %v2327 = vlaneseq
  %v2328 = vshrl.u32 %v2327, 7
  %v2329 = vsub.s32 6, %v2328
  %v2330 = vrot.slane %v2316, %v2329
  %v2331 = vlaneseq
  %v2332 = vshrl.u32 %v2331, 7
  %v2333 = vsub.s32 6, %v2332
  %v2334 = vrot.slane %v2317, %v2333
  %v2335 = vlaneseq
  %v2336 = vshrl.u32 %v2335, 7
  %v2337 = vsub.s32 6, %v2336
  %v2338 = vrot.slane %v2318, %v2337
  %v2339 = vlaneseq
  %v2340 = vshrl.u32 %v2339, 7
  %v2341 = vsub.s32 6, %v2340
  %v2342 = vrot.slane %v2319, %v2341
  %v2343 = vlaneseq
  %v2344 = vshrl.u32 %v2343, 7
  %v2345 = vsub.s32 6, %v2344
  %v2346 = vrot.slane %v2320, %v2345
  %v2347 = vlaneseq
  %v2348 = vshrl.u32 %v2347, 7
  %v2349 = vsub.s32 6, %v2348
  %v2350 = vrot.slane %v2321, %v2349
  %v2351 = vlaneseq
  %v2352 = vshrl.u32 %v2351, 7
  %v2353 = vsub.s32 6, %v2352
  %v2354 = vrot.slane %v2322, %v2353
  %2364 = vrot.lane.b32.xlu0 %v2302, 113
  %v2365 = vpop.permute.xlu0 %2364
  %2366 = vrot.lane.b32.xlu0 %v2303, 113
  %v2367 = vpop.permute.xlu0 %2366
  %2368 = vrot.lane.b32.xlu0 %v2304, 113
  %v2369 = vpop.permute.xlu0 %2368
  %2370 = vrot.lane.b32.xlu0 %v2305, 113
  %v2371 = vpop.permute.xlu0 %2370
  %2372 = vrot.lane.b32.xlu0 %v2306, 113
  %v2373 = vpop.permute.xlu0 %2372
  %2374 = vrot.lane.b32.xlu0 %v2307, 113
  %v2375 = vpop.permute.xlu0 %2374
  %2376 = vrot.lane.b32.xlu0 %v2308, 113
  %v2377 = vpop.permute.xlu0 %2376
  %2378 = vrot.lane.b32.xlu0 %v2309, 113
  %v2379 = vpop.permute.xlu0 %2378
  %2380 = vrot.lane.b32.xlu0 %v2310, 113
  %v2381 = vpop.permute.xlu0 %2380
  %v2382 = vsel %vm877, %v2365, %v2367
  %v2383 = vsel %vm877, %v2367, %v2369
  %v2384 = vsel %vm877, %v2369, %v2371
  %v2385 = vsel %vm877, %v2371, %v2373
  %v2386 = vsel %vm877, %v2373, %v2375
  %v2387 = vsel %vm877, %v2375, %v2377
  %v2388 = vsel %vm877, %v2377, %v2379
  %v2389 = vsel %vm877, %v2379, %v2381
  %v2398 = vmul.f32 %v2326, %v2382
  %v2399 = vmul.f32 %v2330, %v2383
  %v2400 = vmul.f32 %v2334, %v2384
  %v2401 = vmul.f32 %v2338, %v2385
  %v2402 = vmul.f32 %v2342, %v2386
  %v2403 = vmul.f32 %v2346, %v2387
  %v2404 = vmul.f32 %v2350, %v2388
  %v2405 = vmul.f32 %v2354, %v2389
  %v2406 = vpack.c.bf16 %v2398, %v2398
  %v2407 = vpack.c.bf16 %v2399, %v2399
  %v2408 = vpack.c.bf16 %v2400, %v2400
  %v2409 = vpack.c.bf16 %v2401, %v2401
  %v2410 = vpack.c.bf16 %v2402, %v2402
  %v2411 = vpack.c.bf16 %v2403, %v2403
  %v2412 = vpack.c.bf16 %v2404, %v2404
  %v2413 = vpack.c.bf16 %v2405, %v2405
  %v2422 = vunpack.c.l.b16 %v2406
  %v2423 = vunpack.c.l.b16 %v2407
  %v2424 = vunpack.c.l.b16 %v2408
  %v2425 = vunpack.c.l.b16 %v2409
  %v2426 = vunpack.c.l.b16 %v2410
  %v2427 = vunpack.c.l.b16 %v2411
  %v2428 = vunpack.c.l.b16 %v2412
  %v2429 = vunpack.c.l.b16 %v2413
  %v2430 = vpack.c.b16 %v2423, %v2422
  %v2431 = vpack.c.b16 %v2425, %v2424
  %v2432 = vpack.c.b16 %v2427, %v2426
  %v2433 = vpack.c.b16 %v2429, %v2428
  %2438 = vst [vmem:[#allocation4 + $0xc0] sm:$0xff] %v2430
  %2439 = vst [vmem:[#allocation4 + $0xc8] sm:$0xff] %v2431
  %2440 = vst [vmem:[#allocation4 + $0xd0] sm:$0xff] %v2432
  %2441 = vst [vmem:[#allocation4 + $0xd8] sm:$0xff] %v2433
  %v2442 = vld [vmem:[#allocation2 + $0x8] sm:$0xff]
  %v2443 = vld [vmem:[#allocation2 + $0x10] sm:$0xff]
  %v2444 = vld [vmem:[#allocation2 + $0x18] sm:$0xff]
  %v2445 = vld [vmem:[#allocation2 + $0x20] sm:$0xff]
  %v2446 = vld [vmem:[#allocation2 + $0x28] sm:$0xff]
  %v2447 = vld [vmem:[#allocation2 + $0x30] sm:$0xff]
  %v2448 = vld [vmem:[#allocation2 + $0x38] sm:$0xff]
  %v2449 = vld [vmem:[#allocation2 + $0x40] sm:$0xff]
  %v2450 = vld [vmem:[#allocation2 + $0x48] sm:$0xff]
  %v2451 = vld [vmem:[%s1] sm:$0x88]
  %v2452 = vld [vmem:[%s1 + $0x8] sm:$0x88]
  %v2453 = vld [vmem:[%s1 + $0x10] sm:$0x88]
  %v2454 = vld [vmem:[%s1 + $0x18] sm:$0x88]
  %v2455 = vunpack.c.l.bf16 %v2451
  %v2456 = vunpack.c.h.bf16 %v2451
  %v2457 = vunpack.c.l.bf16 %v2452
  %v2458 = vunpack.c.h.bf16 %v2452
  %v2459 = vunpack.c.l.bf16 %v2453
  %v2460 = vunpack.c.h.bf16 %v2453
  %v2461 = vunpack.c.l.bf16 %v2454
  %v2462 = vunpack.c.h.bf16 %v2454
  %v2463 = vlaneseq
  %v2464 = vshrl.u32 %v2463, 7
  %v2465 = vsub.s32 7, %v2464
  %v2466 = vrot.slane %v2455, %v2465
  %v2467 = vlaneseq
  %v2468 = vshrl.u32 %v2467, 7
  %v2469 = vsub.s32 7, %v2468
  %v2470 = vrot.slane %v2456, %v2469
  %v2471 = vlaneseq
  %v2472 = vshrl.u32 %v2471, 7
  %v2473 = vsub.s32 7, %v2472
  %v2474 = vrot.slane %v2457, %v2473
  %v2475 = vlaneseq
  %v2476 = vshrl.u32 %v2475, 7
  %v2477 = vsub.s32 7, %v2476
  %v2478 = vrot.slane %v2458, %v2477
  %v2479 = vlaneseq
  %v2480 = vshrl.u32 %v2479, 7
  %v2481 = vsub.s32 7, %v2480
  %v2482 = vrot.slane %v2459, %v2481
  %v2483 = vlaneseq
  %v2484 = vshrl.u32 %v2483, 7
  %v2485 = vsub.s32 7, %v2484
  %v2486 = vrot.slane %v2460, %v2485
  %v2487 = vlaneseq
  %v2488 = vshrl.u32 %v2487, 7
  %v2489 = vsub.s32 7, %v2488
  %v2490 = vrot.slane %v2461, %v2489
  %v2491 = vlaneseq
  %v2492 = vshrl.u32 %v2491, 7
  %v2493 = vsub.s32 7, %v2492
  %v2494 = vrot.slane %v2462, %v2493
  %2504 = vrot.lane.b32.xlu0 %v2442, 112
  %v2505 = vpop.permute.xlu0 %2504
  %2506 = vrot.lane.b32.xlu0 %v2443, 112
  %v2507 = vpop.permute.xlu0 %2506
  %2508 = vrot.lane.b32.xlu0 %v2444, 112
  %v2509 = vpop.permute.xlu0 %2508
  %2510 = vrot.lane.b32.xlu0 %v2445, 112
  %v2511 = vpop.permute.xlu0 %2510
  %2512 = vrot.lane.b32.xlu0 %v2446, 112
  %v2513 = vpop.permute.xlu0 %2512
  %2514 = vrot.lane.b32.xlu0 %v2447, 112
  %v2515 = vpop.permute.xlu0 %2514
  %2516 = vrot.lane.b32.xlu0 %v2448, 112
  %v2517 = vpop.permute.xlu0 %2516
  %2518 = vrot.lane.b32.xlu0 %v2449, 112
  %v2519 = vpop.permute.xlu0 %2518
  %2520 = vrot.lane.b32.xlu0 %v2450, 112
  %v2521 = vpop.permute.xlu0 %2520
  %v2522 = vsel %vm1017, %v2505, %v2507
  %v2523 = vsel %vm1017, %v2507, %v2509
  %v2524 = vsel %vm1017, %v2509, %v2511
  %v2525 = vsel %vm1017, %v2511, %v2513
  %v2526 = vsel %vm1017, %v2513, %v2515
  %v2527 = vsel %vm1017, %v2515, %v2517
  %v2528 = vsel %vm1017, %v2517, %v2519
  %v2529 = vsel %vm1017, %v2519, %v2521
  %v2538 = vmul.f32 %v2466, %v2522
  %v2539 = vmul.f32 %v2470, %v2523
  %v2540 = vmul.f32 %v2474, %v2524
  %v2541 = vmul.f32 %v2478, %v2525
  %v2542 = vmul.f32 %v2482, %v2526
  %v2543 = vmul.f32 %v2486, %v2527
  %v2544 = vmul.f32 %v2490, %v2528
  %v2545 = vmul.f32 %v2494, %v2529
  %v2546 = vpack.c.bf16 %v2538, %v2538
  %v2547 = vpack.c.bf16 %v2539, %v2539
  %v2548 = vpack.c.bf16 %v2540, %v2540
  %v2549 = vpack.c.bf16 %v2541, %v2541
  %v2550 = vpack.c.bf16 %v2542, %v2542
  %v2551 = vpack.c.bf16 %v2543, %v2543
  %v2552 = vpack.c.bf16 %v2544, %v2544
  %v2553 = vpack.c.bf16 %v2545, %v2545
  %v2562 = vunpack.c.l.b16 %v2546
  %v2563 = vunpack.c.l.b16 %v2547
  %v2564 = vunpack.c.l.b16 %v2548
  %v2565 = vunpack.c.l.b16 %v2549
  %v2566 = vunpack.c.l.b16 %v2550
  %v2567 = vunpack.c.l.b16 %v2551
  %v2568 = vunpack.c.l.b16 %v2552
  %v2569 = vunpack.c.l.b16 %v2553
  %v2570 = vpack.c.b16 %v2563, %v2562
  %v2571 = vpack.c.b16 %v2565, %v2564
  %v2572 = vpack.c.b16 %v2567, %v2566
  %v2573 = vpack.c.b16 %v2569, %v2568
  %2578 = vst [vmem:[#allocation4 + $0xe0] sm:$0xff] %v2570
  %2579 = vst [vmem:[#allocation4 + $0xe8] sm:$0xff] %v2571
  %2580 = vst [vmem:[#allocation4 + $0xf0] sm:$0xff] %v2572
  %2581 = vst [vmem:[#allocation4 + $0xf8] sm:$0xff] %v2573
  %v2582 = vld [vmem:[#allocation2 + $0x8] sm:$0xff]
  %v2583 = vld [vmem:[#allocation2 + $0x10] sm:$0xff]
  %v2584 = vld [vmem:[#allocation2 + $0x18] sm:$0xff]
  %v2585 = vld [vmem:[#allocation2 + $0x20] sm:$0xff]
  %v2586 = vld [vmem:[#allocation2 + $0x28] sm:$0xff]
  %v2587 = vld [vmem:[#allocation2 + $0x30] sm:$0xff]
  %v2588 = vld [vmem:[#allocation2 + $0x38] sm:$0xff]
  %v2589 = vld [vmem:[#allocation2 + $0x40] sm:$0xff]
  %v2590 = vld [vmem:[#allocation2 + $0x48] sm:$0xff]
  %v2591 = vld [vmem:[%s1 + $0x20] sm:$0x11]
  %v2592 = vld [vmem:[%s1 + $0x28] sm:$0x11]
  %v2593 = vld [vmem:[%s1 + $0x30] sm:$0x11]
  %v2594 = vld [vmem:[%s1 + $0x38] sm:$0x11]
  %v2595 = vunpack.c.l.bf16 %v2591
  %v2596 = vunpack.c.h.bf16 %v2591
  %v2597 = vunpack.c.l.bf16 %v2592
  %v2598 = vunpack.c.h.bf16 %v2592
  %v2599 = vunpack.c.l.bf16 %v2593
  %v2600 = vunpack.c.h.bf16 %v2593
  %v2601 = vunpack.c.l.bf16 %v2594
  %v2602 = vunpack.c.h.bf16 %v2594
  %v2603 = vlaneseq
  %v2604 = vshrl.u32 %v2603, 7
  %v2605 = vsub.s32 0, %v2604
  %v2606 = vrot.slane %v2595, %v2605
  %v2607 = vlaneseq
  %v2608 = vshrl.u32 %v2607, 7
  %v2609 = vsub.s32 0, %v2608
  %v2610 = vrot.slane %v2596, %v2609
  %v2611 = vlaneseq
  %v2612 = vshrl.u32 %v2611, 7
  %v2613 = vsub.s32 0, %v2612
  %v2614 = vrot.slane %v2597, %v2613
  %v2615 = vlaneseq
  %v2616 = vshrl.u32 %v2615, 7
  %v2617 = vsub.s32 0, %v2616
  %v2618 = vrot.slane %v2598, %v2617
  %v2619 = vlaneseq
  %v2620 = vshrl.u32 %v2619, 7
  %v2621 = vsub.s32 0, %v2620
  %v2622 = vrot.slane %v2599, %v2621
  %v2623 = vlaneseq
  %v2624 = vshrl.u32 %v2623, 7
  %v2625 = vsub.s32 0, %v2624
  %v2626 = vrot.slane %v2600, %v2625
  %v2627 = vlaneseq
  %v2628 = vshrl.u32 %v2627, 7
  %v2629 = vsub.s32 0, %v2628
  %v2630 = vrot.slane %v2601, %v2629
  %v2631 = vlaneseq
  %v2632 = vshrl.u32 %v2631, 7
  %v2633 = vsub.s32 0, %v2632
  %v2634 = vrot.slane %v2602, %v2633
  %2644 = vrot.lane.b32.xlu0 %v2582, 111
  %v2645 = vpop.permute.xlu0 %2644
  %2646 = vrot.lane.b32.xlu0 %v2583, 111
  %v2647 = vpop.permute.xlu0 %2646
  %2648 = vrot.lane.b32.xlu0 %v2584, 111
  %v2649 = vpop.permute.xlu0 %2648
  %2650 = vrot.lane.b32.xlu0 %v2585, 111
  %v2651 = vpop.permute.xlu0 %2650
  %2652 = vrot.lane.b32.xlu0 %v2586, 111
  %v2653 = vpop.permute.xlu0 %2652
  %2654 = vrot.lane.b32.xlu0 %v2587, 111
  %v2655 = vpop.permute.xlu0 %2654
  %2656 = vrot.lane.b32.xlu0 %v2588, 111
  %v2657 = vpop.permute.xlu0 %2656
  %2658 = vrot.lane.b32.xlu0 %v2589, 111
  %v2659 = vpop.permute.xlu0 %2658
  %2660 = vrot.lane.b32.xlu0 %v2590, 111
  %v2661 = vpop.permute.xlu0 %2660
  %v2662 = vsel %vm1161, %v2645, %v2647
  %v2663 = vsel %vm1161, %v2647, %v2649
  %v2664 = vsel %vm1161, %v2649, %v2651
  %v2665 = vsel %vm1161, %v2651, %v2653
  %v2666 = vsel %vm1161, %v2653, %v2655
  %v2667 = vsel %vm1161, %v2655, %v2657
  %v2668 = vsel %vm1161, %v2657, %v2659
  %v2669 = vsel %vm1161, %v2659, %v2661
  %v2678 = vmul.f32 %v2606, %v2662
  %v2679 = vmul.f32 %v2610, %v2663
  %v2680 = vmul.f32 %v2614, %v2664
  %v2681 = vmul.f32 %v2618, %v2665
  %v2682 = vmul.f32 %v2622, %v2666
  %v2683 = vmul.f32 %v2626, %v2667
  %v2684 = vmul.f32 %v2630, %v2668
  %v2685 = vmul.f32 %v2634, %v2669
  %v2686 = vpack.c.bf16 %v2678, %v2678
  %v2687 = vpack.c.bf16 %v2679, %v2679
  %v2688 = vpack.c.bf16 %v2680, %v2680
  %v2689 = vpack.c.bf16 %v2681, %v2681
  %v2690 = vpack.c.bf16 %v2682, %v2682
  %v2691 = vpack.c.bf16 %v2683, %v2683
  %v2692 = vpack.c.bf16 %v2684, %v2684
  %v2693 = vpack.c.bf16 %v2685, %v2685
  %v2702 = vunpack.c.l.b16 %v2686
  %v2703 = vunpack.c.l.b16 %v2687
  %v2704 = vunpack.c.l.b16 %v2688
  %v2705 = vunpack.c.l.b16 %v2689
  %v2706 = vunpack.c.l.b16 %v2690
  %v2707 = vunpack.c.l.b16 %v2691
  %v2708 = vunpack.c.l.b16 %v2692
  %v2709 = vunpack.c.l.b16 %v2693
  %v2710 = vpack.c.b16 %v2703, %v2702
  %v2711 = vpack.c.b16 %v2705, %v2704
  %v2712 = vpack.c.b16 %v2707, %v2706
  %v2713 = vpack.c.b16 %v2709, %v2708
  %2718 = vst [vmem:[#allocation4 + $0x100] sm:$0xff] %v2710
  %2719 = vst [vmem:[#allocation4 + $0x108] sm:$0xff] %v2711
  %2720 = vst [vmem:[#allocation4 + $0x110] sm:$0xff] %v2712
  %2721 = vst [vmem:[#allocation4 + $0x118] sm:$0xff] %v2713
  %v2722 = vld [vmem:[%s4] sm:$0xf]
  %v2723 = vld [vmem:[#allocation4] sm:$0xff]
  %v2724 = vld [vmem:[#allocation4 + $0x8] sm:$0xff]
  %v2725 = vld [vmem:[#allocation4 + $0x10] sm:$0xff]
  %v2726 = vld [vmem:[#allocation4 + $0x18] sm:$0xff]
  %v2727 = vld [vmem:[#allocation4 + $0x20] sm:$0xff]
  %v2728 = vld [vmem:[#allocation4 + $0x28] sm:$0xff]
  %v2729 = vld [vmem:[#allocation4 + $0x30] sm:$0xff]
  %v2730 = vld [vmem:[#allocation4 + $0x38] sm:$0xff]
  %v2731 = vld [vmem:[#allocation4 + $0x40] sm:$0xff]
  %v2732 = vld [vmem:[#allocation4 + $0x48] sm:$0xff]
  %v2733 = vld [vmem:[#allocation4 + $0x50] sm:$0xff]
  %v2734 = vld [vmem:[#allocation4 + $0x58] sm:$0xff]
  %v2735 = vld [vmem:[#allocation4 + $0x60] sm:$0xff]
  %v2736 = vld [vmem:[#allocation4 + $0x68] sm:$0xff]
  %v2737 = vld [vmem:[#allocation4 + $0x70] sm:$0xff]
  %v2738 = vld [vmem:[#allocation4 + $0x78] sm:$0xff]
  %v2739 = vld [vmem:[#allocation4 + $0x80] sm:$0xff]
  %v2740 = vld [vmem:[#allocation4 + $0x88] sm:$0xff]
  %v2741 = vld [vmem:[#allocation4 + $0x90] sm:$0xff]
  %v2742 = vld [vmem:[#allocation4 + $0x98] sm:$0xff]
  %v2743 = vld [vmem:[#allocation4 + $0xa0] sm:$0xff]
  %v2744 = vld [vmem:[#allocation4 + $0xa8] sm:$0xff]
  %v2745 = vld [vmem:[#allocation4 + $0xb0] sm:$0xff]
  %v2746 = vld [vmem:[#allocation4 + $0xb8] sm:$0xff]
  %v2747 = vld [vmem:[#allocation4 + $0xc0] sm:$0xff]
  %v2748 = vld [vmem:[#allocation4 + $0xc8] sm:$0xff]
  %v2749 = vld [vmem:[#allocation4 + $0xd0] sm:$0xff]
  %v2750 = vld [vmem:[#allocation4 + $0xd8] sm:$0xff]
  %v2751 = vld [vmem:[#allocation4 + $0xe0] sm:$0xff]
  %v2752 = vld [vmem:[#allocation4 + $0xe8] sm:$0xff]
  %v2753 = vld [vmem:[#allocation4 + $0xf0] sm:$0xff]
  %v2754 = vld [vmem:[#allocation4 + $0xf8] sm:$0xff]
  %v2755 = vld [vmem:[#allocation4 + $0x100] sm:$0xff]
  %v2756 = vld [vmem:[#allocation4 + $0x108] sm:$0xff]
  %v2757 = vld [vmem:[#allocation4 + $0x110] sm:$0xff]
  %v2758 = vld [vmem:[#allocation4 + $0x118] sm:$0xff]
  %v2759 = vld [vmem:[%s5] sm:$0xff]
  %2761 = vset.pattern.permute.xlu0 0
  %2762 = vperm.xlu0 %2761, %v2759
  %v2763 = vpop.permute.xlu0 %2762
  %v2801 = vunpack.c.l.b16 %v2723
  %v2802 = vunpack.c.h.b16 %v2723
  %v2803 = vunpack.c.l.b16 %v2724
  %v2804 = vunpack.c.h.b16 %v2724
  %v2805 = vunpack.c.l.b16 %v2725
  %v2806 = vunpack.c.h.b16 %v2725
  %v2807 = vunpack.c.l.b16 %v2726
  %v2808 = vunpack.c.h.b16 %v2726
  %v2809 = vunpack.c.l.b16 %v2727
  %v2810 = vunpack.c.h.b16 %v2727
  %v2811 = vunpack.c.l.b16 %v2728
  %v2812 = vunpack.c.h.b16 %v2728
  %v2813 = vunpack.c.l.b16 %v2729
  %v2814 = vunpack.c.h.b16 %v2729
  %v2815 = vunpack.c.l.b16 %v2730
  %v2816 = vunpack.c.h.b16 %v2730
  %v2817 = vunpack.c.l.b16 %v2731
  %v2818 = vunpack.c.h.b16 %v2731
  %v2819 = vunpack.c.l.b16 %v2732
  %v2820 = vunpack.c.h.b16 %v2732
  %v2821 = vunpack.c.l.b16 %v2733
  %v2822 = vunpack.c.h.b16 %v2733
  %v2823 = vunpack.c.l.b16 %v2734
  %v2824 = vunpack.c.h.b16 %v2734
  %v2825 = vunpack.c.l.b16 %v2735
  %v2826 = vunpack.c.h.b16 %v2735
  %v2827 = vunpack.c.l.b16 %v2736
  %v2828 = vunpack.c.h.b16 %v2736
  %v2829 = vunpack.c.l.b16 %v2737
  %v2830 = vunpack.c.h.b16 %v2737
  %v2831 = vunpack.c.l.b16 %v2738
  %v2832 = vunpack.c.h.b16 %v2738
  %v2833 = vunpack.c.l.b16 %v2739
  %v2834 = vunpack.c.h.b16 %v2739
  %v2835 = vunpack.c.l.b16 %v2740
  %v2836 = vunpack.c.h.b16 %v2740
  %v2837 = vunpack.c.l.b16 %v2741
  %v2838 = vunpack.c.h.b16 %v2741
  %v2839 = vunpack.c.l.b16 %v2742
  %v2840 = vunpack.c.h.b16 %v2742
  %v2841 = vunpack.c.l.b16 %v2743
  %v2842 = vunpack.c.h.b16 %v2743
  %v2843 = vunpack.c.l.b16 %v2744
  %v2844 = vunpack.c.h.b16 %v2744
  %v2845 = vunpack.c.l.b16 %v2745
  %v2846 = vunpack.c.h.b16 %v2745
  %v2847 = vunpack.c.l.b16 %v2746
  %v2848 = vunpack.c.h.b16 %v2746
  %v2849 = vunpack.c.l.b16 %v2747
  %v2850 = vunpack.c.h.b16 %v2747
  %v2851 = vunpack.c.l.b16 %v2748
  %v2852 = vunpack.c.h.b16 %v2748
  %v2853 = vunpack.c.l.b16 %v2749
  %v2854 = vunpack.c.h.b16 %v2749
  %v2855 = vunpack.c.l.b16 %v2750
  %v2856 = vunpack.c.h.b16 %v2750
  %v2857 = vunpack.c.l.b16 %v2751
  %v2858 = vunpack.c.h.b16 %v2751
  %v2859 = vunpack.c.l.b16 %v2752
  %v2860 = vunpack.c.h.b16 %v2752
  %v2861 = vunpack.c.l.b16 %v2753
  %v2862 = vunpack.c.h.b16 %v2753
  %v2863 = vunpack.c.l.b16 %v2754
  %v2864 = vunpack.c.h.b16 %v2754
  %v2865 = vunpack.c.l.b16 %v2755
  %v2866 = vunpack.c.h.b16 %v2755
  %v2867 = vunpack.c.l.b16 %v2756
  %v2868 = vunpack.c.h.b16 %v2756
  %v2869 = vunpack.c.l.b16 %v2757
  %v2870 = vunpack.c.h.b16 %v2757
  %v2871 = vunpack.c.l.b16 %v2758
  %v2872 = vunpack.c.h.b16 %v2758
  %v2873 = vpack.c.b16 %v2809, %v2801
  %v2874 = vpack.c.b16 %v2810, %v2802
  %v2875 = vpack.c.b16 %v2811, %v2803
  %v2876 = vpack.c.b16 %v2812, %v2804
  %v2877 = vpack.c.b16 %v2813, %v2805
  %v2878 = vpack.c.b16 %v2814, %v2806
  %v2879 = vpack.c.b16 %v2815, %v2807
  %v2880 = vpack.c.b16 %v2816, %v2808
  %v2881 = vpack.c.b16 %v2825, %v2817
  %v2882 = vpack.c.b16 %v2826, %v2818
  %v2883 = vpack.c.b16 %v2827, %v2819
  %v2884 = vpack.c.b16 %v2828, %v2820
  %v2885 = vpack.c.b16 %v2829, %v2821
  %v2886 = vpack.c.b16 %v2830, %v2822
  %v2887 = vpack.c.b16 %v2831, %v2823
  %v2888 = vpack.c.b16 %v2832, %v2824
  %v2889 = vpack.c.b16 %v2841, %v2833
  %v2890 = vpack.c.b16 %v2842, %v2834
  %v2891 = vpack.c.b16 %v2843, %v2835
  %v2892 = vpack.c.b16 %v2844, %v2836
  %v2893 = vpack.c.b16 %v2845, %v2837
  %v2894 = vpack.c.b16 %v2846, %v2838
  %v2895 = vpack.c.b16 %v2847, %v2839
  %v2896 = vpack.c.b16 %v2848, %v2840
  %v2897 = vpack.c.b16 %v2857, %v2849
  %v2898 = vpack.c.b16 %v2858, %v2850
  %v2899 = vpack.c.b16 %v2859, %v2851
  %v2900 = vpack.c.b16 %v2860, %v2852
  %v2901 = vpack.c.b16 %v2861, %v2853
  %v2902 = vpack.c.b16 %v2862, %v2854
  %v2903 = vpack.c.b16 %v2863, %v2855
  %v2904 = vpack.c.b16 %v2864, %v2856
  %v2905 = vpack.c.b16 %v2865, %v2865
  %v2906 = vpack.c.b16 %v2866, %v2866
  %v2907 = vpack.c.b16 %v2867, %v2867
  %v2908 = vpack.c.b16 %v2868, %v2868
  %v2909 = vpack.c.b16 %v2869, %v2869
  %v2910 = vpack.c.b16 %v2870, %v2870
  %v2911 = vpack.c.b16 %v2871, %v2871
  %v2912 = vpack.c.b16 %v2872, %v2872
  %vm2945 = vcmask 588800
  %v2947 = vsel %vm2945, %v2722, 0
  %vm2949 = vcmask 1043456
  %v2951 = vsel %vm2949, %v2905, 0
  %v2954 = vsel %vm2949, %v2906, 0
  %v2957 = vsel %vm2949, %v2907, 0
  %v2960 = vsel %vm2949, %v2908, 0
  %v2963 = vsel %vm2949, %v2909, 0
  %v2966 = vsel %vm2949, %v2910, 0
  %v2969 = vsel %vm2949, %v2911, 0
  %v2972 = vsel %vm2949, %v2912, 0
  %2974 = vmatprep.subr.bf16.mxu0 0
  %2975 = vmatpush1.bf16.msra.mxu0 0
  %2976 = vmatprep.subr.bf16.mxu0 0
  %2977 = vmatpush1.bf16.msra.mxu0 0
  %2978 = vmatprep.subr.bf16.mxu0 0
  %2979 = vmatpush1.bf16.msra.mxu0 0
  %2980 = vmatprep.subr.bf16.mxu0 %v2954
  %2981 = vmatpush1.bf16.msra.mxu0 %v2951
  %2982 = vmatprep.subr.bf16.mxu0 %v2898
  %2983 = vmatpush1.bf16.msra.mxu0 %v2897
  %2984 = vmatprep.subr.bf16.mxu0 %v2890
  %2985 = vmatpush1.bf16.msra.mxu0 %v2889
  %2986 = vmatprep.subr.bf16.mxu0 %v2882
  %2987 = vmatpush1.bf16.msra.mxu0 %v2881
  %2988 = vmatprep.subr.bf16.mxu0 %v2874
  %2989 = vmatpush1.bf16.msra.mxu0 %v2873
  %2990 = vmatprep.subr.bf16.mxu0 0
  %2991 = vmatpush2.bf16.msra.mxu0 0
  %2992 = vmatprep.subr.bf16.mxu0 0
  %2993 = vmatpush2.bf16.msra.mxu0 0
  %2994 = vmatprep.subr.bf16.mxu0 0
  %2995 = vmatpush2.bf16.msra.mxu0 0
  %2996 = vmatprep.subr.bf16.mxu0 0
  %2997 = vmatpush2.bf16.msra.mxu0 0
  %2998 = vmatprep.subr.bf16.mxu0 0
  %2999 = vmatpush2.bf16.msra.mxu0 0
  %3000 = vmatprep.subr.bf16.mxu0 0
  %3001 = vmatpush2.bf16.msra.mxu0 0
  %3002 = vmatprep.subr.bf16.mxu0 0
  %3003 = vmatpush2.bf16.msra.mxu0 0
  %3004 = vmatprep.subr.bf16.mxu0 0
  %3005 = vmatpush2.bf16.msra.mxu0 0
  %3006 = vmatprep.mubr.bf16.mxu0 0
  %3007 = vmatmul.mubr.bf16.gmra.mxu0 %v2947
  %v3008 = vpop.f32.mrf.mxu0
  %v3009 = vadd.f32 %v2763, %v3008
  %v3010 = vpop.f32.mrf.mxu0
  %v3011 = vadd.f32 %v2763, %v3010
  %v3012 = vpop.f32.mrf.mxu0
  %v3013 = vpop.f32.mrf.mxu0
  %3014 = vdwg.mxu0
  %3015 = vmatprep.subr.bf16.mxu0 0
  %3016 = vmatpush1.bf16.msra.mxu0 0
  %3017 = vmatprep.subr.bf16.mxu0 0
  %3018 = vmatpush1.bf16.msra.mxu0 0
  %3019 = vmatprep.subr.bf16.mxu0 0
  %3020 = vmatpush1.bf16.msra.mxu0 0
  %3021 = vmatprep.subr.bf16.mxu0 %v2960
  %3022 = vmatpush1.bf16.msra.mxu0 %v2957
  %3023 = vmatprep.subr.bf16.mxu0 %v2900
  %3024 = vmatpush1.bf16.msra.mxu0 %v2899
  %3025 = vmatprep.subr.bf16.mxu0 %v2892
  %3026 = vmatpush1.bf16.msra.mxu0 %v2891
  %3027 = vmatprep.subr.bf16.mxu0 %v2884
  %3028 = vmatpush1.bf16.msra.mxu0 %v2883
  %3029 = vmatprep.subr.bf16.mxu0 %v2876
  %3030 = vmatpush1.bf16.msra.mxu0 %v2875
  %3031 = vmatprep.subr.bf16.mxu0 0
  %3032 = vmatpush2.bf16.msra.mxu0 0
  %3033 = vmatprep.subr.bf16.mxu0 0
  %3034 = vmatpush2.bf16.msra.mxu0 0
  %3035 = vmatprep.subr.bf16.mxu0 0
  %3036 = vmatpush2.bf16.msra.mxu0 0
  %3037 = vmatprep.subr.bf16.mxu0 0
  %3038 = vmatpush2.bf16.msra.mxu0 0
  %3039 = vmatprep.subr.bf16.mxu0 0
  %3040 = vmatpush2.bf16.msra.mxu0 0
  %3041 = vmatprep.subr.bf16.mxu0 0
  %3042 = vmatpush2.bf16.msra.mxu0 0
  %3043 = vmatprep.subr.bf16.mxu0 0
  %3044 = vmatpush2.bf16.msra.mxu0 0
  %3045 = vmatprep.subr.bf16.mxu0 0
  %3046 = vmatpush2.bf16.msra.mxu0 0
  %3047 = vmatprep.mubr.bf16.mxu0 0
  %3048 = vmatmul.mubr.bf16.gmra.mxu0 %v2947
  %v3049 = vpop.f32.mrf.mxu0
  %v3050 = vadd.f32 %v2763, %v3049
  %v3051 = vpop.f32.mrf.mxu0
  %v3052 = vadd.f32 %v2763, %v3051
  %v3053 = vpop.f32.mrf.mxu0
  %v3054 = vpop.f32.mrf.mxu0
  %3055 = vdwg.mxu0
  %3056 = vmatprep.subr.bf16.mxu0 0
  %3057 = vmatpush1.bf16.msra.mxu0 0
  %3058 = vmatprep.subr.bf16.mxu0 0
  %3059 = vmatpush1.bf16.msra.mxu0 0
  %3060 = vmatprep.subr.bf16.mxu0 0
  %3061 = vmatpush1.bf16.msra.mxu0 0
  %3062 = vmatprep.subr.bf16.mxu0 %v2966
  %3063 = vmatpush1.bf16.msra.mxu0 %v2963
  %3064 = vmatprep.subr.bf16.mxu0 %v2902
  %3065 = vmatpush1.bf16.msra.mxu0 %v2901
  %3066 = vmatprep.subr.bf16.mxu0 %v2894
  %3067 = vmatpush1.bf16.msra.mxu0 %v2893
  %3068 = vmatprep.subr.bf16.mxu0 %v2886
  %3069 = vmatpush1.bf16.msra.mxu0 %v2885
  %3070 = vmatprep.subr.bf16.mxu0 %v2878
  %3071 = vmatpush1.bf16.msra.mxu0 %v2877
  %3072 = vmatprep.subr.bf16.mxu0 0
  %3073 = vmatpush2.bf16.msra.mxu0 0
  %3074 = vmatprep.subr.bf16.mxu0 0
  %3075 = vmatpush2.bf16.msra.mxu0 0
  %3076 = vmatprep.subr.bf16.mxu0 0
  %3077 = vmatpush2.bf16.msra.mxu0 0
  %3078 = vmatprep.subr.bf16.mxu0 0
  %3079 = vmatpush2.bf16.msra.mxu0 0
  %3080 = vmatprep.subr.bf16.mxu0 0
  %3081 = vmatpush2.bf16.msra.mxu0 0
  %3082 = vmatprep.subr.bf16.mxu0 0
  %3083 = vmatpush2.bf16.msra.mxu0 0
  %3084 = vmatprep.subr.bf16.mxu0 0
  %3085 = vmatpush2.bf16.msra.mxu0 0
  %3086 = vmatprep.subr.bf16.mxu0 0
  %3087 = vmatpush2.bf16.msra.mxu0 0
  %3088 = vmatprep.mubr.bf16.mxu0 0
  %3089 = vmatmul.mubr.bf16.gmra.mxu0 %v2947
  %v3090 = vpop.f32.mrf.mxu0
  %v3091 = vadd.f32 %v2763, %v3090
  %v3092 = vpop.f32.mrf.mxu0
  %v3093 = vadd.f32 %v2763, %v3092
  %v3094 = vpop.f32.mrf.mxu0
  %v3095 = vpop.f32.mrf.mxu0
  %3096 = vdwg.mxu0
  %3097 = vmatprep.subr.bf16.mxu0 0
  %3098 = vmatpush1.bf16.msra.mxu0 0
  %3099 = vmatprep.subr.bf16.mxu0 0
  %3100 = vmatpush1.bf16.msra.mxu0 0
  %3101 = vmatprep.subr.bf16.mxu0 0
  %3102 = vmatpush1.bf16.msra.mxu0 0
  %3103 = vmatprep.subr.bf16.mxu0 %v2972
  %3104 = vmatpush1.bf16.msra.mxu0 %v2969
  %3105 = vmatprep.subr.bf16.mxu0 %v2904
  %3106 = vmatpush1.bf16.msra.mxu0 %v2903
  %3107 = vmatprep.subr.bf16.mxu0 %v2896
  %3108 = vmatpush1.bf16.msra.mxu0 %v2895
  %3109 = vmatprep.subr.bf16.mxu0 %v2888
  %3110 = vmatpush1.bf16.msra.mxu0 %v2887
  %3111 = vmatprep.subr.bf16.mxu0 %v2880
  %3112 = vmatpush1.bf16.msra.mxu0 %v2879
  %3113 = vmatprep.subr.bf16.mxu0 0
  %3114 = vmatpush2.bf16.msra.mxu0 0
  %3115 = vmatprep.subr.bf16.mxu0 0
  %3116 = vmatpush2.bf16.msra.mxu0 0
  %3117 = vmatprep.subr.bf16.mxu0 0
  %3118 = vmatpush2.bf16.msra.mxu0 0
  %3119 = vmatprep.subr.bf16.mxu0 0
  %3120 = vmatpush2.bf16.msra.mxu0 0
  %3121 = vmatprep.subr.bf16.mxu0 0
  %3122 = vmatpush2.bf16.msra.mxu0 0
  %3123 = vmatprep.subr.bf16.mxu0 0
  %3124 = vmatpush2.bf16.msra.mxu0 0
  %3125 = vmatprep.subr.bf16.mxu0 0
  %3126 = vmatpush2.bf16.msra.mxu0 0
  %3127 = vmatprep.subr.bf16.mxu0 0
  %3128 = vmatpush2.bf16.msra.mxu0 0
  %3129 = vmatprep.mubr.bf16.mxu0 0
  %3130 = vmatmul.mubr.bf16.gmra.mxu0 %v2947
  %v3131 = vpop.f32.mrf.mxu0
  %v3132 = vadd.f32 %v2763, %v3131
  %v3133 = vpop.f32.mrf.mxu0
  %v3134 = vadd.f32 %v2763, %v3133
  %v3135 = vpop.f32.mrf.mxu0
  %v3136 = vpop.f32.mrf.mxu0
  %3137 = vdwg.mxu0
  %v3138 = vmax.f32 %v3009, 0.0
  %v3139 = vmax.f32 %v3011, 0.0
  %v3140 = vmax.f32 %v3050, 0.0
  %v3141 = vmax.f32 %v3052, 0.0
  %v3142 = vmax.f32 %v3091, 0.0
  %v3143 = vmax.f32 %v3093, 0.0
  %v3144 = vmax.f32 %v3132, 0.0
  %v3145 = vmax.f32 %v3134, 0.0
  %3146 = vst [vmem:[#allocation3 + $0x8] sm:$0xff] %v3138
  %3147 = vst [vmem:[#allocation3 + $0x10] sm:$0xff] %v3139
  %3148 = vst [vmem:[#allocation3 + $0x18] sm:$0xff] %v3140
  %3149 = vst [vmem:[#allocation3 + $0x20] sm:$0xff] %v3141
  %3150 = vst [vmem:[#allocation3 + $0x28] sm:$0xff] %v3142
  %3151 = vst [vmem:[#allocation3 + $0x30] sm:$0xff] %v3143
  %3152 = vst [vmem:[#allocation3 + $0x38] sm:$0xff] %v3144
  %3153 = vst [vmem:[#allocation3 + $0x40] sm:$0xff] %v3145
  %v3154 = vld [vmem:[#allocation3 + $0x8] sm:$0xff]
  %v3155 = vld [vmem:[#allocation3 + $0x10] sm:$0xff]
  %v3156 = vld [vmem:[#allocation3 + $0x18] sm:$0xff]
  %v3157 = vld [vmem:[#allocation3 + $0x20] sm:$0xff]
  %v3158 = vld [vmem:[#allocation3 + $0x28] sm:$0xff]
  %v3159 = vld [vmem:[#allocation3 + $0x30] sm:$0xff]
  %v3160 = vld [vmem:[#allocation3 + $0x38] sm:$0xff]
  %v3161 = vld [vmem:[#allocation3 + $0x40] sm:$0xff]
  %v3162 = vsub.f32 %v3158, %v3154
  %v3163 = vsub.f32 %v3159, %v3155
  %v3164 = vsub.f32 %v3160, %v3156
  %v3165 = vsub.f32 %v3161, %v3157
  %v3166 = vand.u32 2147483647, %v3162
  %v3167 = vand.u32 2147483647, %v3163
  %v3168 = vand.u32 2147483647, %v3164
  %v3169 = vand.u32 2147483647, %v3165
  %3170 = vst [vmem:[#allocation2 + $0x8] sm:$0xff] %v3166
  %3171 = vst [vmem:[#allocation2 + $0x10] sm:$0xff] %v3167
  %3172 = vst [vmem:[#allocation2 + $0x18] sm:$0xff] %v3168
  %3173 = vst [vmem:[#allocation2 + $0x20] sm:$0xff] %v3169
  %v3174 = vld [vmem:[#allocation2] sm:$0xff]
  %v3175 = vld [vmem:[#allocation2 + $0x8] sm:$0xff]
  %v3176 = vld [vmem:[#allocation2 + $0x10] sm:$0xff]
  %v3177 = vld [vmem:[#allocation2 + $0x18] sm:$0xff]
  %v3178 = vld [vmem:[#allocation2 + $0x20] sm:$0xff]
  %v3179 = vld [vmem:[%s1] sm:$0x11]
  %v3180 = vld [vmem:[%s1 + $0x8] sm:$0x11]
  %v3181 = vunpack.c.l.bf16 %v3179
  %v3182 = vunpack.c.h.bf16 %v3179
  %v3183 = vunpack.c.l.bf16 %v3180
  %v3184 = vunpack.c.h.bf16 %v3180
  %v3185 = vlaneseq
  %v3186 = vshrl.u32 %v3185, 7
  %v3187 = vsub.s32 0, %v3186
  %v3188 = vrot.slane %v3181, %v3187
  %v3189 = vlaneseq
  %v3190 = vshrl.u32 %v3189, 7
  %v3191 = vsub.s32 0, %v3190
  %v3192 = vrot.slane %v3182, %v3191
  %v3193 = vlaneseq
  %v3194 = vshrl.u32 %v3193, 7
  %v3195 = vsub.s32 0, %v3194
  %v3196 = vrot.slane %v3183, %v3195
  %v3197 = vlaneseq
  %v3198 = vshrl.u32 %v3197, 7
  %v3199 = vsub.s32 0, %v3198
  %v3200 = vrot.slane %v3184, %v3199
  %3206 = vrot.lane.b32.xlu0 %v3174, 17
  %v3207 = vpop.permute.xlu0 %3206
  %3208 = vrot.lane.b32.xlu0 %v3175, 17
  %v3209 = vpop.permute.xlu0 %3208
  %3210 = vrot.lane.b32.xlu0 %v3176, 17
  %v3211 = vpop.permute.xlu0 %3210
  %3212 = vrot.lane.b32.xlu0 %v3177, 17
  %v3213 = vpop.permute.xlu0 %3212
  %3214 = vrot.lane.b32.xlu0 %v3178, 17
  %v3215 = vpop.permute.xlu0 %3214
  %v3216 = vsel %vm123, %v3207, %v3209
  %v3217 = vsel %vm123, %v3209, %v3211
  %v3218 = vsel %vm123, %v3211, %v3213
  %v3219 = vsel %vm123, %v3213, %v3215
  %v3224 = vmul.f32 %v3188, %v3216
  %v3225 = vmul.f32 %v3192, %v3217
  %v3226 = vmul.f32 %v3196, %v3218
  %v3227 = vmul.f32 %v3200, %v3219
  %v3228 = vpack.c.bf16 %v3224, %v3224
  %v3229 = vpack.c.bf16 %v3225, %v3225
  %v3230 = vpack.c.bf16 %v3226, %v3226
  %v3231 = vpack.c.bf16 %v3227, %v3227
  %v3236 = vunpack.c.l.b16 %v3228
  %v3237 = vunpack.c.l.b16 %v3229
  %v3238 = vunpack.c.l.b16 %v3230
  %v3239 = vunpack.c.l.b16 %v3231
  %v3240 = vpack.c.b16 %v3237, %v3236
  %v3241 = vpack.c.b16 %v3239, %v3238
  %3244 = vst [vmem:[#allocation4] sm:$0xff] %v3240
  %3245 = vst [vmem:[#allocation4 + $0x8] sm:$0xff] %v3241
  %v3246 = vld [vmem:[#allocation2] sm:$0xff]
  %v3247 = vld [vmem:[#allocation2 + $0x8] sm:$0xff]
  %v3248 = vld [vmem:[#allocation2 + $0x10] sm:$0xff]
  %v3249 = vld [vmem:[#allocation2 + $0x18] sm:$0xff]
  %v3250 = vld [vmem:[#allocation2 + $0x20] sm:$0xff]
  %v3251 = vld [vmem:[%s1] sm:$0x11]
  %v3252 = vld [vmem:[%s1 + $0x8] sm:$0x11]
  %v3253 = vunpack.c.l.bf16 %v3251
  %v3254 = vunpack.c.h.bf16 %v3251
  %v3255 = vunpack.c.l.bf16 %v3252
  %v3256 = vunpack.c.h.bf16 %v3252
  %v3257 = vlaneseq
  %v3258 = vshrl.u32 %v3257, 7
  %v3259 = vsub.s32 1, %v3258
  %v3260 = vrot.slane %v3253, %v3259
  %v3261 = vlaneseq
  %v3262 = vshrl.u32 %v3261, 7
  %v3263 = vsub.s32 1, %v3262
  %v3264 = vrot.slane %v3254, %v3263
  %v3265 = vlaneseq
  %v3266 = vshrl.u32 %v3265, 7
  %v3267 = vsub.s32 1, %v3266
  %v3268 = vrot.slane %v3255, %v3267
  %v3269 = vlaneseq
  %v3270 = vshrl.u32 %v3269, 7
  %v3271 = vsub.s32 1, %v3270
  %v3272 = vrot.slane %v3256, %v3271
  %3278 = vrot.lane.b32.xlu0 %v3246, 16
  %v3279 = vpop.permute.xlu0 %3278
  %3280 = vrot.lane.b32.xlu0 %v3247, 16
  %v3281 = vpop.permute.xlu0 %3280
  %3282 = vrot.lane.b32.xlu0 %v3248, 16
  %v3283 = vpop.permute.xlu0 %3282
  %3284 = vrot.lane.b32.xlu0 %v3249, 16
  %v3285 = vpop.permute.xlu0 %3284
  %3286 = vrot.lane.b32.xlu0 %v3250, 16
  %v3287 = vpop.permute.xlu0 %3286
  %v3288 = vsel %vm263, %v3279, %v3281
  %v3289 = vsel %vm263, %v3281, %v3283
  %v3290 = vsel %vm263, %v3283, %v3285
  %v3291 = vsel %vm263, %v3285, %v3287
  %v3296 = vmul.f32 %v3260, %v3288
  %v3297 = vmul.f32 %v3264, %v3289
  %v3298 = vmul.f32 %v3268, %v3290
  %v3299 = vmul.f32 %v3272, %v3291
  %v3300 = vpack.c.bf16 %v3296, %v3296
  %v3301 = vpack.c.bf16 %v3297, %v3297
  %v3302 = vpack.c.bf16 %v3298, %v3298
  %v3303 = vpack.c.bf16 %v3299, %v3299
  %v3308 = vunpack.c.l.b16 %v3300
  %v3309 = vunpack.c.l.b16 %v3301
  %v3310 = vunpack.c.l.b16 %v3302
  %v3311 = vunpack.c.l.b16 %v3303
  %v3312 = vpack.c.b16 %v3309, %v3308
  %v3313 = vpack.c.b16 %v3311, %v3310
  %3316 = vst [vmem:[#allocation4 + $0x20] sm:$0xff] %v3312
  %3317 = vst [vmem:[#allocation4 + $0x28] sm:$0xff] %v3313
  %v3318 = vld [vmem:[#allocation2] sm:$0xff]
  %v3319 = vld [vmem:[#allocation2 + $0x8] sm:$0xff]
  %v3320 = vld [vmem:[#allocation2 + $0x10] sm:$0xff]
  %v3321 = vld [vmem:[#allocation2 + $0x18] sm:$0xff]
  %v3322 = vld [vmem:[#allocation2 + $0x20] sm:$0xff]
  %v3323 = vld [vmem:[%s1] sm:$0x22]
  %v3324 = vld [vmem:[%s1 + $0x8] sm:$0x22]
  %v3325 = vunpack.c.l.bf16 %v3323
  %v3326 = vunpack.c.h.bf16 %v3323
  %v3327 = vunpack.c.l.bf16 %v3324
  %v3328 = vunpack.c.h.bf16 %v3324
  %v3329 = vlaneseq
  %v3330 = vshrl.u32 %v3329, 7
  %v3331 = vsub.s32 2, %v3330
  %v3332 = vrot.slane %v3325, %v3331
  %v3333 = vlaneseq
  %v3334 = vshrl.u32 %v3333, 7
  %v3335 = vsub.s32 2, %v3334
  %v3336 = vrot.slane %v3326, %v3335
  %v3337 = vlaneseq
  %v3338 = vshrl.u32 %v3337, 7
  %v3339 = vsub.s32 2, %v3338
  %v3340 = vrot.slane %v3327, %v3339
  %v3341 = vlaneseq
  %v3342 = vshrl.u32 %v3341, 7
  %v3343 = vsub.s32 2, %v3342
  %v3344 = vrot.slane %v3328, %v3343
  %3350 = vrot.lane.b32.xlu0 %v3318, 15
  %v3351 = vpop.permute.xlu0 %3350
  %3352 = vrot.lane.b32.xlu0 %v3319, 15
  %v3353 = vpop.permute.xlu0 %3352
  %3354 = vrot.lane.b32.xlu0 %v3320, 15
  %v3355 = vpop.permute.xlu0 %3354
  %3356 = vrot.lane.b32.xlu0 %v3321, 15
  %v3357 = vpop.permute.xlu0 %3356
  %3358 = vrot.lane.b32.xlu0 %v3322, 15
  %v3359 = vpop.permute.xlu0 %3358
  %v3360 = vsel %vm407, %v3351, %v3353
  %v3361 = vsel %vm407, %v3353, %v3355
  %v3362 = vsel %vm407, %v3355, %v3357
  %v3363 = vsel %vm407, %v3357, %v3359
  %v3368 = vmul.f32 %v3332, %v3360
  %v3369 = vmul.f32 %v3336, %v3361
  %v3370 = vmul.f32 %v3340, %v3362
  %v3371 = vmul.f32 %v3344, %v3363
  %v3372 = vpack.c.bf16 %v3368, %v3368
  %v3373 = vpack.c.bf16 %v3369, %v3369
  %v3374 = vpack.c.bf16 %v3370, %v3370
  %v3375 = vpack.c.bf16 %v3371, %v3371
  %v3380 = vunpack.c.l.b16 %v3372
  %v3381 = vunpack.c.l.b16 %v3373
  %v3382 = vunpack.c.l.b16 %v3374
  %v3383 = vunpack.c.l.b16 %v3375
  %v3384 = vpack.c.b16 %v3381, %v3380
  %v3385 = vpack.c.b16 %v3383, %v3382
  %3388 = vst [vmem:[#allocation4 + $0x40] sm:$0xff] %v3384
  %3389 = vst [vmem:[#allocation4 + $0x48] sm:$0xff] %v3385
  %v3390 = vld [vmem:[#allocation2] sm:$0xff]
  %v3391 = vld [vmem:[#allocation2 + $0x8] sm:$0xff]
  %v3392 = vld [vmem:[#allocation2 + $0x10] sm:$0xff]
  %v3393 = vld [vmem:[#allocation2 + $0x18] sm:$0xff]
  %v3394 = vld [vmem:[#allocation2 + $0x20] sm:$0xff]
  %v3395 = vld [vmem:[%s1] sm:$0x22]
  %v3396 = vld [vmem:[%s1 + $0x8] sm:$0x22]
  %v3397 = vunpack.c.l.bf16 %v3395
  %v3398 = vunpack.c.h.bf16 %v3395
  %v3399 = vunpack.c.l.bf16 %v3396
  %v3400 = vunpack.c.h.bf16 %v3396
  %v3401 = vlaneseq
  %v3402 = vshrl.u32 %v3401, 7
  %v3403 = vsub.s32 3, %v3402
  %v3404 = vrot.slane %v3397, %v3403
  %v3405 = vlaneseq
  %v3406 = vshrl.u32 %v3405, 7
  %v3407 = vsub.s32 3, %v3406
  %v3408 = vrot.slane %v3398, %v3407
  %v3409 = vlaneseq
  %v3410 = vshrl.u32 %v3409, 7
  %v3411 = vsub.s32 3, %v3410
  %v3412 = vrot.slane %v3399, %v3411
  %v3413 = vlaneseq
  %v3414 = vshrl.u32 %v3413, 7
  %v3415 = vsub.s32 3, %v3414
  %v3416 = vrot.slane %v3400, %v3415
  %3422 = vrot.lane.b32.xlu0 %v3390, 1
  %v3423 = vpop.permute.xlu0 %3422
  %3424 = vrot.lane.b32.xlu0 %v3391, 1
  %v3425 = vpop.permute.xlu0 %3424
  %3426 = vrot.lane.b32.xlu0 %v3392, 1
  %v3427 = vpop.permute.xlu0 %3426
  %3428 = vrot.lane.b32.xlu0 %v3393, 1
  %v3429 = vpop.permute.xlu0 %3428
  %3430 = vrot.lane.b32.xlu0 %v3394, 1
  %v3431 = vpop.permute.xlu0 %3430
  %v3432 = vsel %vm547, %v3423, %v3425
  %v3433 = vsel %vm547, %v3425, %v3427
  %v3434 = vsel %vm547, %v3427, %v3429
  %v3435 = vsel %vm547, %v3429, %v3431
  %v3440 = vmul.f32 %v3404, %v3432
  %v3441 = vmul.f32 %v3408, %v3433
  %v3442 = vmul.f32 %v3412, %v3434
  %v3443 = vmul.f32 %v3416, %v3435
  %v3444 = vpack.c.bf16 %v3440, %v3440
  %v3445 = vpack.c.bf16 %v3441, %v3441
  %v3446 = vpack.c.bf16 %v3442, %v3442
  %v3447 = vpack.c.bf16 %v3443, %v3443
  %v3452 = vunpack.c.l.b16 %v3444
  %v3453 = vunpack.c.l.b16 %v3445
  %v3454 = vunpack.c.l.b16 %v3446
  %v3455 = vunpack.c.l.b16 %v3447
  %v3456 = vpack.c.b16 %v3453, %v3452
  %v3457 = vpack.c.b16 %v3455, %v3454
  %3460 = vst [vmem:[#allocation4 + $0x60] sm:$0xff] %v3456
  %3461 = vst [vmem:[#allocation4 + $0x68] sm:$0xff] %v3457
  %v3462 = vld [vmem:[#allocation2 + $0x8] sm:$0xff]
  %v3463 = vld [vmem:[#allocation2 + $0x10] sm:$0xff]
  %v3464 = vld [vmem:[#allocation2 + $0x18] sm:$0xff]
  %v3465 = vld [vmem:[#allocation2 + $0x20] sm:$0xff]
  %v3466 = vpack.c.bf16 %v3462, %v3462
  %v3467 = vpack.c.bf16 %v3463, %v3463
  %v3468 = vpack.c.bf16 %v3464, %v3464
  %v3469 = vpack.c.bf16 %v3465, %v3465
  %v3474 = vunpack.c.l.b16 %v3466
  %v3475 = vunpack.c.l.b16 %v3467
  %v3476 = vunpack.c.l.b16 %v3468
  %v3477 = vunpack.c.l.b16 %v3469
  %v3478 = vpack.c.b16 %v3475, %v3474
  %v3479 = vpack.c.b16 %v3477, %v3476
  %3482 = vst [vmem:[#allocation4 + $0x80] sm:$0xff] %v3478
  %3483 = vst [vmem:[#allocation4 + $0x88] sm:$0xff] %v3479
  %v3484 = vld [vmem:[#allocation2 + $0x8] sm:$0xff]
  %v3485 = vld [vmem:[#allocation2 + $0x10] sm:$0xff]
  %v3486 = vld [vmem:[#allocation2 + $0x18] sm:$0xff]
  %v3487 = vld [vmem:[#allocation2 + $0x20] sm:$0xff]
  %v3488 = vld [vmem:[#allocation2 + $0x28] sm:$0xff]
  %v3489 = vld [vmem:[%s1] sm:$0x44]
  %v3490 = vld [vmem:[%s1 + $0x8] sm:$0x44]
  %v3491 = vunpack.c.l.bf16 %v3489
  %v3492 = vunpack.c.h.bf16 %v3489
  %v3493 = vunpack.c.l.bf16 %v3490
  %v3494 = vunpack.c.h.bf16 %v3490
  %v3495 = vlaneseq
  %v3496 = vshrl.u32 %v3495, 7
  %v3497 = vsub.s32 5, %v3496
  %v3498 = vrot.slane %v3491, %v3497
  %v3499 = vlaneseq
  %v3500 = vshrl.u32 %v3499, 7
  %v3501 = vsub.s32 5, %v3500
  %v3502 = vrot.slane %v3492, %v3501
  %v3503 = vlaneseq
  %v3504 = vshrl.u32 %v3503, 7
  %v3505 = vsub.s32 5, %v3504
  %v3506 = vrot.slane %v3493, %v3505
  %v3507 = vlaneseq
  %v3508 = vshrl.u32 %v3507, 7
  %v3509 = vsub.s32 5, %v3508
  %v3510 = vrot.slane %v3494, %v3509
  %3516 = vrot.lane.b32.xlu0 %v3484, 127
  %v3517 = vpop.permute.xlu0 %3516
  %3518 = vrot.lane.b32.xlu0 %v3485, 127
  %v3519 = vpop.permute.xlu0 %3518
  %3520 = vrot.lane.b32.xlu0 %v3486, 127
  %v3521 = vpop.permute.xlu0 %3520
  %3522 = vrot.lane.b32.xlu0 %v3487, 127
  %v3523 = vpop.permute.xlu0 %3522
  %3524 = vrot.lane.b32.xlu0 %v3488, 127
  %v3525 = vpop.permute.xlu0 %3524
  %v3526 = vsel %vm733, %v3517, %v3519
  %v3527 = vsel %vm733, %v3519, %v3521
  %v3528 = vsel %vm733, %v3521, %v3523
  %v3529 = vsel %vm733, %v3523, %v3525
  %v3534 = vmul.f32 %v3498, %v3526
  %v3535 = vmul.f32 %v3502, %v3527
  %v3536 = vmul.f32 %v3506, %v3528
  %v3537 = vmul.f32 %v3510, %v3529
  %v3538 = vpack.c.bf16 %v3534, %v3534
  %v3539 = vpack.c.bf16 %v3535, %v3535
  %v3540 = vpack.c.bf16 %v3536, %v3536
  %v3541 = vpack.c.bf16 %v3537, %v3537
  %v3546 = vunpack.c.l.b16 %v3538
  %v3547 = vunpack.c.l.b16 %v3539
  %v3548 = vunpack.c.l.b16 %v3540
  %v3549 = vunpack.c.l.b16 %v3541
  %v3550 = vpack.c.b16 %v3547, %v3546
  %v3551 = vpack.c.b16 %v3549, %v3548
  %3554 = vst [vmem:[#allocation4 + $0xa0] sm:$0xff] %v3550
  %3555 = vst [vmem:[#allocation4 + $0xa8] sm:$0xff] %v3551
  %v3556 = vld [vmem:[#allocation2 + $0x8] sm:$0xff]
  %v3557 = vld [vmem:[#allocation2 + $0x10] sm:$0xff]
  %v3558 = vld [vmem:[#allocation2 + $0x18] sm:$0xff]
  %v3559 = vld [vmem:[#allocation2 + $0x20] sm:$0xff]
  %v3560 = vld [vmem:[#allocation2 + $0x28] sm:$0xff]
  %v3561 = vld [vmem:[%s1] sm:$0x88]
  %v3562 = vld [vmem:[%s1 + $0x8] sm:$0x88]
  %v3563 = vunpack.c.l.bf16 %v3561
  %v3564 = vunpack.c.h.bf16 %v3561
  %v3565 = vunpack.c.l.bf16 %v3562
  %v3566 = vunpack.c.h.bf16 %v3562
  %v3567 = vlaneseq
  %v3568 = vshrl.u32 %v3567, 7
  %v3569 = vsub.s32 6, %v3568
  %v3570 = vrot.slane %v3563, %v3569
  %v3571 = vlaneseq
  %v3572 = vshrl.u32 %v3571, 7
  %v3573 = vsub.s32 6, %v3572
  %v3574 = vrot.slane %v3564, %v3573
  %v3575 = vlaneseq
  %v3576 = vshrl.u32 %v3575, 7
  %v3577 = vsub.s32 6, %v3576
  %v3578 = vrot.slane %v3565, %v3577
  %v3579 = vlaneseq
  %v3580 = vshrl.u32 %v3579, 7
  %v3581 = vsub.s32 6, %v3580
  %v3582 = vrot.slane %v3566, %v3581
  %3588 = vrot.lane.b32.xlu0 %v3556, 113
  %v3589 = vpop.permute.xlu0 %3588
  %3590 = vrot.lane.b32.xlu0 %v3557, 113
  %v3591 = vpop.permute.xlu0 %3590
  %3592 = vrot.lane.b32.xlu0 %v3558, 113
  %v3593 = vpop.permute.xlu0 %3592
  %3594 = vrot.lane.b32.xlu0 %v3559, 113
  %v3595 = vpop.permute.xlu0 %3594
  %3596 = vrot.lane.b32.xlu0 %v3560, 113
  %v3597 = vpop.permute.xlu0 %3596
  %v3598 = vsel %vm877, %v3589, %v3591
  %v3599 = vsel %vm877, %v3591, %v3593
  %v3600 = vsel %vm877, %v3593, %v3595
  %v3601 = vsel %vm877, %v3595, %v3597
  %v3606 = vmul.f32 %v3570, %v3598
  %v3607 = vmul.f32 %v3574, %v3599
  %v3608 = vmul.f32 %v3578, %v3600
  %v3609 = vmul.f32 %v3582, %v3601
  %v3610 = vpack.c.bf16 %v3606, %v3606
  %v3611 = vpack.c.bf16 %v3607, %v3607
  %v3612 = vpack.c.bf16 %v3608, %v3608
  %v3613 = vpack.c.bf16 %v3609, %v3609
  %v3618 = vunpack.c.l.b16 %v3610
  %v3619 = vunpack.c.l.b16 %v3611
  %v3620 = vunpack.c.l.b16 %v3612
  %v3621 = vunpack.c.l.b16 %v3613
  %v3622 = vpack.c.b16 %v3619, %v3618
  %v3623 = vpack.c.b16 %v3621, %v3620
  %3626 = vst [vmem:[#allocation4 + $0xc0] sm:$0xff] %v3622
  %3627 = vst [vmem:[#allocation4 + $0xc8] sm:$0xff] %v3623
  %v3628 = vld [vmem:[#allocation2 + $0x8] sm:$0xff]
  %v3629 = vld [vmem:[#allocation2 + $0x10] sm:$0xff]
  %v3630 = vld [vmem:[#allocation2 + $0x18] sm:$0xff]
  %v3631 = vld [vmem:[#allocation2 + $0x20] sm:$0xff]
  %v3632 = vld [vmem:[#allocation2 + $0x28] sm:$0xff]
  %v3633 = vld [vmem:[%s1] sm:$0x88]
  %v3634 = vld [vmem:[%s1 + $0x8] sm:$0x88]
  %v3635 = vunpack.c.l.bf16 %v3633
  %v3636 = vunpack.c.h.bf16 %v3633
  %v3637 = vunpack.c.l.bf16 %v3634
  %v3638 = vunpack.c.h.bf16 %v3634
  %v3639 = vlaneseq
  %v3640 = vshrl.u32 %v3639, 7
  %v3641 = vsub.s32 7, %v3640
  %v3642 = vrot.slane %v3635, %v3641
  %v3643 = vlaneseq
  %v3644 = vshrl.u32 %v3643, 7
  %v3645 = vsub.s32 7, %v3644
  %v3646 = vrot.slane %v3636, %v3645
  %v3647 = vlaneseq
  %v3648 = vshrl.u32 %v3647, 7
  %v3649 = vsub.s32 7, %v3648
  %v3650 = vrot.slane %v3637, %v3649
  %v3651 = vlaneseq
  %v3652 = vshrl.u32 %v3651, 7
  %v3653 = vsub.s32 7, %v3652
  %v3654 = vrot.slane %v3638, %v3653
  %3660 = vrot.lane.b32.xlu0 %v3628, 112
  %v3661 = vpop.permute.xlu0 %3660
  %3662 = vrot.lane.b32.xlu0 %v3629, 112
  %v3663 = vpop.permute.xlu0 %3662
  %3664 = vrot.lane.b32.xlu0 %v3630, 112
  %v3665 = vpop.permute.xlu0 %3664
  %3666 = vrot.lane.b32.xlu0 %v3631, 112
  %v3667 = vpop.permute.xlu0 %3666
  %3668 = vrot.lane.b32.xlu0 %v3632, 112
  %v3669 = vpop.permute.xlu0 %3668
  %v3670 = vsel %vm1017, %v3661, %v3663
  %v3671 = vsel %vm1017, %v3663, %v3665
  %v3672 = vsel %vm1017, %v3665, %v3667
  %v3673 = vsel %vm1017, %v3667, %v3669
  %v3678 = vmul.f32 %v3642, %v3670
  %v3679 = vmul.f32 %v3646, %v3671
  %v3680 = vmul.f32 %v3650, %v3672
  %v3681 = vmul.f32 %v3654, %v3673
  %v3682 = vpack.c.bf16 %v3678, %v3678
  %v3683 = vpack.c.bf16 %v3679, %v3679
  %v3684 = vpack.c.bf16 %v3680, %v3680
  %v3685 = vpack.c.bf16 %v3681, %v3681
  %v3690 = vunpack.c.l.b16 %v3682
  %v3691 = vunpack.c.l.b16 %v3683
  %v3692 = vunpack.c.l.b16 %v3684
  %v3693 = vunpack.c.l.b16 %v3685
  %v3694 = vpack.c.b16 %v3691, %v3690
  %v3695 = vpack.c.b16 %v3693, %v3692
  %3698 = vst [vmem:[#allocation4 + $0xe0] sm:$0xff] %v3694
  %3699 = vst [vmem:[#allocation4 + $0xe8] sm:$0xff] %v3695
  %v3700 = vld [vmem:[#allocation2 + $0x8] sm:$0xff]
  %v3701 = vld [vmem:[#allocation2 + $0x10] sm:$0xff]
  %v3702 = vld [vmem:[#allocation2 + $0x18] sm:$0xff]
  %v3703 = vld [vmem:[#allocation2 + $0x20] sm:$0xff]
  %v3704 = vld [vmem:[#allocation2 + $0x28] sm:$0xff]
  %v3705 = vld [vmem:[%s1 + $0x20] sm:$0x11]
  %v3706 = vld [vmem:[%s1 + $0x28] sm:$0x11]
  %v3707 = vunpack.c.l.bf16 %v3705
  %v3708 = vunpack.c.h.bf16 %v3705
  %v3709 = vunpack.c.l.bf16 %v3706
  %v3710 = vunpack.c.h.bf16 %v3706
  %v3711 = vlaneseq
  %v3712 = vshrl.u32 %v3711, 7
  %v3713 = vsub.s32 0, %v3712
  %v3714 = vrot.slane %v3707, %v3713
  %v3715 = vlaneseq
  %v3716 = vshrl.u32 %v3715, 7
  %v3717 = vsub.s32 0, %v3716
  %v3718 = vrot.slane %v3708, %v3717
  %v3719 = vlaneseq
  %v3720 = vshrl.u32 %v3719, 7
  %v3721 = vsub.s32 0, %v3720
  %v3722 = vrot.slane %v3709, %v3721
  %v3723 = vlaneseq
  %v3724 = vshrl.u32 %v3723, 7
  %v3725 = vsub.s32 0, %v3724
  %v3726 = vrot.slane %v3710, %v3725
  %3732 = vrot.lane.b32.xlu0 %v3700, 111
  %v3733 = vpop.permute.xlu0 %3732
  %3734 = vrot.lane.b32.xlu0 %v3701, 111
  %v3735 = vpop.permute.xlu0 %3734
  %3736 = vrot.lane.b32.xlu0 %v3702, 111
  %v3737 = vpop.permute.xlu0 %3736
  %3738 = vrot.lane.b32.xlu0 %v3703, 111
  %v3739 = vpop.permute.xlu0 %3738
  %3740 = vrot.lane.b32.xlu0 %v3704, 111
  %v3741 = vpop.permute.xlu0 %3740
  %v3742 = vsel %vm1161, %v3733, %v3735
  %v3743 = vsel %vm1161, %v3735, %v3737
  %v3744 = vsel %vm1161, %v3737, %v3739
  %v3745 = vsel %vm1161, %v3739, %v3741
  %v3750 = vmul.f32 %v3714, %v3742
  %v3751 = vmul.f32 %v3718, %v3743
  %v3752 = vmul.f32 %v3722, %v3744
  %v3753 = vmul.f32 %v3726, %v3745
  %v3754 = vpack.c.bf16 %v3750, %v3750
  %v3755 = vpack.c.bf16 %v3751, %v3751
  %v3756 = vpack.c.bf16 %v3752, %v3752
  %v3757 = vpack.c.bf16 %v3753, %v3753
  %v3762 = vunpack.c.l.b16 %v3754
  %v3763 = vunpack.c.l.b16 %v3755
  %v3764 = vunpack.c.l.b16 %v3756
  %v3765 = vunpack.c.l.b16 %v3757
  %v3766 = vpack.c.b16 %v3763, %v3762
  %v3767 = vpack.c.b16 %v3765, %v3764
  %3770 = vst [vmem:[#allocation4 + $0x100] sm:$0xff] %v3766
  %3771 = vst [vmem:[#allocation4 + $0x108] sm:$0xff] %v3767
  %v3772 = vld [vmem:[%s6] sm:$0xf]
  %v3773 = vld [vmem:[%s6 + $0x4] sm:$0xf]
  %v3774 = vld [vmem:[#allocation4] sm:$0xff]
  %v3775 = vld [vmem:[#allocation4 + $0x8] sm:$0xff]
  %v3776 = vld [vmem:[#allocation4 + $0x20] sm:$0xff]
  %v3777 = vld [vmem:[#allocation4 + $0x28] sm:$0xff]
  %v3778 = vld [vmem:[#allocation4 + $0x40] sm:$0xff]
  %v3779 = vld [vmem:[#allocation4 + $0x48] sm:$0xff]
  %v3780 = vld [vmem:[#allocation4 + $0x60] sm:$0xff]
  %v3781 = vld [vmem:[#allocation4 + $0x68] sm:$0xff]
  %v3782 = vld [vmem:[#allocation4 + $0x80] sm:$0xff]
  %v3783 = vld [vmem:[#allocation4 + $0x88] sm:$0xff]
  %v3784 = vld [vmem:[#allocation4 + $0xa0] sm:$0xff]
  %v3785 = vld [vmem:[#allocation4 + $0xa8] sm:$0xff]
  %v3786 = vld [vmem:[#allocation4 + $0xc0] sm:$0xff]
  %v3787 = vld [vmem:[#allocation4 + $0xc8] sm:$0xff]
  %v3788 = vld [vmem:[#allocation4 + $0xe0] sm:$0xff]
  %v3789 = vld [vmem:[#allocation4 + $0xe8] sm:$0xff]
  %v3790 = vld [vmem:[#allocation4 + $0x100] sm:$0xff]
  %v3791 = vld [vmem:[#allocation4 + $0x108] sm:$0xff]
  %v3792 = vld [vmem:[%s7] sm:$0xff]
  %v3793 = vld [vmem:[%s7 + $0x8] sm:$0xff]
  %3795 = vset.pattern.permute.xlu0 0
  %3796 = vperm.xlu0 %3795, %v3792
  %v3797 = vpop.permute.xlu0 %3796
  %3800 = vset.pattern.permute.xlu0 0
  %3801 = vperm.xlu0 %3800, %v3793
  %v3802 = vpop.permute.xlu0 %3801
  %v3806 = vunpack.c.l.b16 %v3772
  %v3807 = vunpack.c.l.b16 %v3773
  %v3808 = vpack.c.b16 %v3807, %v3806
  %v3827 = vunpack.c.l.b16 %v3774
  %v3828 = vunpack.c.h.b16 %v3774
  %v3829 = vunpack.c.l.b16 %v3775
  %v3830 = vunpack.c.h.b16 %v3775
  %v3831 = vunpack.c.l.b16 %v3776
  %v3832 = vunpack.c.h.b16 %v3776
  %v3833 = vunpack.c.l.b16 %v3777
  %v3834 = vunpack.c.h.b16 %v3777
  %v3835 = vunpack.c.l.b16 %v3778
  %v3836 = vunpack.c.h.b16 %v3778
  %v3837 = vunpack.c.l.b16 %v3779
  %v3838 = vunpack.c.h.b16 %v3779
  %v3839 = vunpack.c.l.b16 %v3780
  %v3840 = vunpack.c.h.b16 %v3780
  %v3841 = vunpack.c.l.b16 %v3781
  %v3842 = vunpack.c.h.b16 %v3781
  %v3843 = vunpack.c.l.b16 %v3782
  %v3844 = vunpack.c.h.b16 %v3782
  %v3845 = vunpack.c.l.b16 %v3783
  %v3846 = vunpack.c.h.b16 %v3783
  %v3847 = vunpack.c.l.b16 %v3784
  %v3848 = vunpack.c.h.b16 %v3784
  %v3849 = vunpack.c.l.b16 %v3785
  %v3850 = vunpack.c.h.b16 %v3785
  %v3851 = vunpack.c.l.b16 %v3786
  %v3852 = vunpack.c.h.b16 %v3786
  %v3853 = vunpack.c.l.b16 %v3787
  %v3854 = vunpack.c.h.b16 %v3787
  %v3855 = vunpack.c.l.b16 %v3788
  %v3856 = vunpack.c.h.b16 %v3788
  %v3857 = vunpack.c.l.b16 %v3789
  %v3858 = vunpack.c.h.b16 %v3789
  %v3859 = vunpack.c.l.b16 %v3790
  %v3860 = vunpack.c.h.b16 %v3790
  %v3861 = vunpack.c.l.b16 %v3791
  %v3862 = vunpack.c.h.b16 %v3791
  %v3863 = vpack.c.b16 %v3831, %v3827
  %v3864 = vpack.c.b16 %v3832, %v3828
  %v3865 = vpack.c.b16 %v3833, %v3829
  %v3866 = vpack.c.b16 %v3834, %v3830
  %v3867 = vpack.c.b16 %v3839, %v3835
  %v3868 = vpack.c.b16 %v3840, %v3836
  %v3869 = vpack.c.b16 %v3841, %v3837
  %v3870 = vpack.c.b16 %v3842, %v3838
  %v3871 = vpack.c.b16 %v3847, %v3843
  %v3872 = vpack.c.b16 %v3848, %v3844
  %v3873 = vpack.c.b16 %v3849, %v3845
  %v3874 = vpack.c.b16 %v3850, %v3846
  %v3875 = vpack.c.b16 %v3855, %v3851
  %v3876 = vpack.c.b16 %v3856, %v3852
  %v3877 = vpack.c.b16 %v3857, %v3853
  %v3878 = vpack.c.b16 %v3858, %v3854
  %v3879 = vpack.c.b16 %v3859, %v3859
  %v3880 = vpack.c.b16 %v3860, %v3860
  %v3881 = vpack.c.b16 %v3861, %v3861
  %v3882 = vpack.c.b16 %v3862, %v3862
  %v3900 = vsel %vm2945, %v3808, 0
  %v3903 = vsel %vm2949, %v3879, 0
  %v3906 = vsel %vm2949, %v3880, 0
  %v3909 = vsel %vm2949, %v3881, 0
  %v3912 = vsel %vm2949, %v3882, 0
  %3914 = vmatprep.subr.bf16.mxu0 0
  %3915 = vmatpush1.bf16.msra.mxu0 0
  %3916 = vmatprep.subr.bf16.mxu0 0
  %3917 = vmatpush1.bf16.msra.mxu0 0
  %3918 = vmatprep.subr.bf16.mxu0 0
  %3919 = vmatpush1.bf16.msra.mxu0 0
  %3920 = vmatprep.subr.bf16.mxu0 %v3906
  %3921 = vmatpush1.bf16.msra.mxu0 %v3903
  %3922 = vmatprep.subr.bf16.mxu0 %v3876
  %3923 = vmatpush1.bf16.msra.mxu0 %v3875
  %3924 = vmatprep.subr.bf16.mxu0 %v3872
  %3925 = vmatpush1.bf16.msra.mxu0 %v3871
  %3926 = vmatprep.subr.bf16.mxu0 %v3868
  %3927 = vmatpush1.bf16.msra.mxu0 %v3867
  %3928 = vmatprep.subr.bf16.mxu0 %v3864
  %3929 = vmatpush1.bf16.msra.mxu0 %v3863
  %3930 = vmatprep.subr.bf16.mxu0 0
  %3931 = vmatpush2.bf16.msra.mxu0 0
  %3932 = vmatprep.subr.bf16.mxu0 0
  %3933 = vmatpush2.bf16.msra.mxu0 0
  %3934 = vmatprep.subr.bf16.mxu0 0
  %3935 = vmatpush2.bf16.msra.mxu0 0
  %3936 = vmatprep.subr.bf16.mxu0 0
  %3937 = vmatpush2.bf16.msra.mxu0 0
  %3938 = vmatprep.subr.bf16.mxu0 0
  %3939 = vmatpush2.bf16.msra.mxu0 0
  %3940 = vmatprep.subr.bf16.mxu0 0
  %3941 = vmatpush2.bf16.msra.mxu0 0
  %3942 = vmatprep.subr.bf16.mxu0 0
  %3943 = vmatpush2.bf16.msra.mxu0 0
  %3944 = vmatprep.subr.bf16.mxu0 0
  %3945 = vmatpush2.bf16.msra.mxu0 0
  %3946 = vmatprep.mubr.bf16.mxu0 0
  %3947 = vmatmul.mubr.bf16.gmra.mxu0 %v3900
  %v3948 = vpop.f32.mrf.mxu0
  %v3949 = vadd.f32 %v3797, %v3948
  %v3950 = vpop.f32.mrf.mxu0
  %v3951 = vadd.f32 %v3797, %v3950
  %v3952 = vpop.f32.mrf.mxu0
  %v3953 = vadd.f32 %v3802, %v3952
  %v3954 = vpop.f32.mrf.mxu0
  %v3955 = vadd.f32 %v3802, %v3954
  %3956 = vdwg.mxu0
  %3957 = vmatprep.subr.bf16.mxu0 0
  %3958 = vmatpush1.bf16.msra.mxu0 0
  %3959 = vmatprep.subr.bf16.mxu0 0
  %3960 = vmatpush1.bf16.msra.mxu0 0
  %3961 = vmatprep.subr.bf16.mxu0 0
  %3962 = vmatpush1.bf16.msra.mxu0 0
  %3963 = vmatprep.subr.bf16.mxu0 %v3912
  %3964 = vmatpush1.bf16.msra.mxu0 %v3909
  %3965 = vmatprep.subr.bf16.mxu0 %v3878
  %3966 = vmatpush1.bf16.msra.mxu0 %v3877
  %3967 = vmatprep.subr.bf16.mxu0 %v3874
  %3968 = vmatpush1.bf16.msra.mxu0 %v3873
  %3969 = vmatprep.subr.bf16.mxu0 %v3870
  %3970 = vmatpush1.bf16.msra.mxu0 %v3869
  %3971 = vmatprep.subr.bf16.mxu0 %v3866
  %3972 = vmatpush1.bf16.msra.mxu0 %v3865
  %3973 = vmatprep.subr.bf16.mxu0 0
  %3974 = vmatpush2.bf16.msra.mxu0 0
  %3975 = vmatprep.subr.bf16.mxu0 0
  %3976 = vmatpush2.bf16.msra.mxu0 0
  %3977 = vmatprep.subr.bf16.mxu0 0
  %3978 = vmatpush2.bf16.msra.mxu0 0
  %3979 = vmatprep.subr.bf16.mxu0 0
  %3980 = vmatpush2.bf16.msra.mxu0 0
  %3981 = vmatprep.subr.bf16.mxu0 0
  %3982 = vmatpush2.bf16.msra.mxu0 0
  %3983 = vmatprep.subr.bf16.mxu0 0
  %3984 = vmatpush2.bf16.msra.mxu0 0
  %3985 = vmatprep.subr.bf16.mxu0 0
  %3986 = vmatpush2.bf16.msra.mxu0 0
  %3987 = vmatprep.subr.bf16.mxu0 0
  %3988 = vmatpush2.bf16.msra.mxu0 0
  %3989 = vmatprep.mubr.bf16.mxu0 0
  %3990 = vmatmul.mubr.bf16.gmra.mxu0 %v3900
  %v3991 = vpop.f32.mrf.mxu0
  %v3992 = vadd.f32 %v3797, %v3991
  %v3993 = vpop.f32.mrf.mxu0
  %v3994 = vadd.f32 %v3797, %v3993
  %v3995 = vpop.f32.mrf.mxu0
  %v3996 = vadd.f32 %v3802, %v3995
  %v3997 = vpop.f32.mrf.mxu0
  %v3998 = vadd.f32 %v3802, %v3997
  %3999 = vdwg.mxu0
  %v4000 = vmax.f32 %v3949, 0.0
  %v4001 = vmax.f32 %v3951, 0.0
  %v4002 = vmax.f32 %v3992, 0.0
  %v4003 = vmax.f32 %v3994, 0.0
  %v4004 = vmax.f32 %v3953, 0.0
  %v4005 = vmax.f32 %v3955, 0.0
  %v4006 = vmax.f32 %v3996, 0.0
  %v4007 = vmax.f32 %v3998, 0.0
  %4008 = vst [vmem:[#allocation3 + $0x8] sm:$0xff] %v4000
  %4009 = vst [vmem:[#allocation3 + $0x10] sm:$0xff] %v4001
  %4010 = vst [vmem:[#allocation3 + $0x18] sm:$0xff] %v4002
  %4011 = vst [vmem:[#allocation3 + $0x20] sm:$0xff] %v4003
  %4012 = vst [vmem:[#allocation3 + $0x58] sm:$0xff] %v4004
  %4013 = vst [vmem:[#allocation3 + $0x60] sm:$0xff] %v4005
  %4014 = vst [vmem:[#allocation3 + $0x68] sm:$0xff] %v4006
  %4015 = vst [vmem:[#allocation3 + $0x70] sm:$0xff] %v4007
  %v4016 = vld [vmem:[#allocation3 + $0x8] sm:$0xff]
  %v4017 = vld [vmem:[#allocation3 + $0x10] sm:$0xff]
  %v4018 = vld [vmem:[#allocation3 + $0x18] sm:$0xff]
  %v4019 = vld [vmem:[#allocation3 + $0x20] sm:$0xff]
  %v4020 = vld [vmem:[#allocation3 + $0x58] sm:$0xff]
  %v4021 = vld [vmem:[#allocation3 + $0x60] sm:$0xff]
  %v4022 = vld [vmem:[#allocation3 + $0x68] sm:$0xff]
  %v4023 = vld [vmem:[#allocation3 + $0x70] sm:$0xff]
  %v4024 = vld [vmem:[%s8] sm:$0xff]
  %v4025 = vld [vmem:[%s8 + $0x8] sm:$0xff]
  %v4026 = vld [vmem:[%s8 + $0x10] sm:$0xff]
  %v4027 = vld [vmem:[%s8 + $0x18] sm:$0xff]
  %v4028 = vld [vmem:[%s8 + $0x20] sm:$0xff]
  %v4029 = vld [vmem:[%s8 + $0x28] sm:$0xff]
  %v4030 = vld [vmem:[%s8 + $0x30] sm:$0xff]
  %v4031 = vld [vmem:[%s8 + $0x38] sm:$0xff]
  %v4032 = vld [vmem:[%s8 + $0x40] sm:$0xff]
  %v4033 = vld [vmem:[%s8 + $0x48] sm:$0xff]
  %v4034 = vld [vmem:[%s8 + $0x50] sm:$0xff]
  %v4035 = vld [vmem:[%s8 + $0x58] sm:$0xff]
  %v4036 = vmul.f32 %v4024, %v4016
  %v4037 = vmul.f32 %v4025, %v4017
  %v4038 = vmul.f32 %v4026, %v4020
  %v4039 = vmul.f32 %v4027, %v4021
  %v4040 = vmul.f32 %v4028, %v4016
  %v4041 = vmul.f32 %v4029, %v4017
  %v4042 = vmul.f32 %v4030, %v4020
  %v4043 = vmul.f32 %v4031, %v4021
  %v4044 = vmul.f32 %v4032, %v4016
  %v4045 = vmul.f32 %v4033, %v4017
  %v4046 = vmul.f32 %v4034, %v4020
  %v4047 = vmul.f32 %v4035, %v4021
  %v4048 = vadd.f32 %v4036, %v4037
  %4049 = vadd.xlane.f32.xlu0 %v4048
  %v4050 = vpop.xlane.xlu0 %4049
  %v4051 = vadd.f32 %v4038, %v4039
  %4052 = vadd.xlane.f32.xlu0 %v4051
  %v4053 = vpop.xlane.xlu0 %4052
  %v4054 = vadd.f32 %v4040, %v4041
  %4055 = vadd.xlane.f32.xlu0 %v4054
  %v4056 = vpop.xlane.xlu0 %4055
  %v4057 = vadd.f32 %v4042, %v4043
  %4058 = vadd.xlane.f32.xlu0 %v4057
  %v4059 = vpop.xlane.xlu0 %4058
  %v4060 = vadd.f32 %v4044, %v4045
  %4061 = vadd.xlane.f32.xlu0 %v4060
  %v4062 = vpop.xlane.xlu0 %4061
  %v4063 = vadd.f32 %v4046, %v4047
  %4064 = vadd.xlane.f32.xlu0 %v4063
  %v4065 = vpop.xlane.xlu0 %4064
  %v4072 = vlaneseq
  %v4073 = vand.u32 %v4072, 127
  %v4074 = vlaneseq
  %v4075 = vshrl.u32 %v4074, 7
  %v4076 = vsub.s32 %v4073, %v4075
  %v4077 = vrot.slane %v4050, %v4076
  %v4078 = vadd.s32 %v4073, 4294967288
  %v4079 = vlaneseq
  %v4080 = vshrl.u32 %v4079, 7
  %v4081 = vsub.s32 %v4078, %v4080
  %v4082 = vrot.slane %v4053, %v4081
  %vm4083 = vcmask 130112
  %v4084 = vsel %vm4083, %v4082, %v4077
  %v4085 = vlaneseq
  %v4086 = vshrl.u32 %v4085, 7
  %v4087 = vsub.s32 %v4073, %v4086
  %v4088 = vrot.slane %v4056, %v4087
  %v4089 = vlaneseq
  %v4090 = vshrl.u32 %v4089, 7
  %v4091 = vsub.s32 %v4078, %v4090
  %v4092 = vrot.slane %v4059, %v4091
  %v4093 = vsel %vm4083, %v4092, %v4088
  %v4094 = vlaneseq
  %v4095 = vshrl.u32 %v4094, 7
  %v4096 = vsub.s32 %v4073, %v4095
  %v4097 = vrot.slane %v4062, %v4096
  %v4098 = vlaneseq
  %v4099 = vshrl.u32 %v4098, 7
  %v4100 = vsub.s32 %v4078, %v4099
  %v4101 = vrot.slane %v4065, %v4100
  %v4102 = vsel %vm4083, %v4101, %v4097
  %vm4103 = vcmask 1041409
  %v4104 = vsel %vm4103, %v4093, %v4084
  %vm4105 = vcmask 1042434
  %v4106 = vsel %vm4105, %v4102, %v4104
  %vm4108 = vcmask 124928
  %v4109 = vsel %vm4108, %v4106, 0.0
  %4110 = vadd.xlane.f32.xlu0 %v4109
  %v4111 = vpop.xlane.xlu0 %4110
  %v4112 = vmul.f32 %v4024, %v4018
  %v4113 = vmul.f32 %v4025, %v4019
  %v4114 = vmul.f32 %v4026, %v4022
  %v4115 = vmul.f32 %v4027, %v4023
  %v4116 = vmul.f32 %v4028, %v4018
  %v4117 = vmul.f32 %v4029, %v4019
  %v4118 = vmul.f32 %v4030, %v4022
  %v4119 = vmul.f32 %v4031, %v4023
  %v4120 = vmul.f32 %v4032, %v4018
  %v4121 = vmul.f32 %v4033, %v4019
  %v4122 = vmul.f32 %v4034, %v4022
  %v4123 = vmul.f32 %v4035, %v4023
  %v4124 = vadd.f32 %v4112, %v4113
  %4125 = vadd.xlane.f32.xlu0 %v4124
  %v4126 = vpop.xlane.xlu0 %4125
  %v4127 = vadd.f32 %v4114, %v4115
  %4128 = vadd.xlane.f32.xlu0 %v4127
  %v4129 = vpop.xlane.xlu0 %4128
  %v4130 = vadd.f32 %v4116, %v4117
  %4131 = vadd.xlane.f32.xlu0 %v4130
  %v4132 = vpop.xlane.xlu0 %4131
  %v4133 = vadd.f32 %v4118, %v4119
  %4134 = vadd.xlane.f32.xlu0 %v4133
  %v4135 = vpop.xlane.xlu0 %4134
  %v4136 = vadd.f32 %v4120, %v4121
  %4137 = vadd.xlane.f32.xlu0 %v4136
  %v4138 = vpop.xlane.xlu0 %4137
  %v4139 = vadd.f32 %v4122, %v4123
  %4140 = vadd.xlane.f32.xlu0 %v4139
  %v4141 = vpop.xlane.xlu0 %4140
  %v4148 = vlaneseq
  %v4149 = vshrl.u32 %v4148, 7
  %v4150 = vsub.s32 %v4073, %v4149
  %v4151 = vrot.slane %v4126, %v4150
  %v4152 = vlaneseq
  %v4153 = vshrl.u32 %v4152, 7
  %v4154 = vsub.s32 %v4078, %v4153
  %v4155 = vrot.slane %v4129, %v4154
  %v4156 = vsel %vm4083, %v4155, %v4151
  %v4157 = vlaneseq
  %v4158 = vshrl.u32 %v4157, 7
  %v4159 = vsub.s32 %v4073, %v4158
  %v4160 = vrot.slane %v4132, %v4159
  %v4161 = vlaneseq
  %v4162 = vshrl.u32 %v4161, 7
  %v4163 = vsub.s32 %v4078, %v4162
  %v4164 = vrot.slane %v4135, %v4163
  %v4165 = vsel %vm4083, %v4164, %v4160
  %v4166 = vlaneseq
  %v4167 = vshrl.u32 %v4166, 7
  %v4168 = vsub.s32 %v4073, %v4167
  %v4169 = vrot.slane %v4138, %v4168
  %v4170 = vlaneseq
  %v4171 = vshrl.u32 %v4170, 7
  %v4172 = vsub.s32 %v4078, %v4171
  %v4173 = vrot.slane %v4141, %v4172
  %v4174 = vsel %vm4083, %v4173, %v4169
  %v4175 = vsel %vm4103, %v4165, %v4156
  %v4176 = vsel %vm4105, %v4174, %v4175
  %v4178 = vsel %vm4108, %v4176, 0.0
  %4179 = vadd.xlane.f32.xlu0 %v4178
  %v4180 = vpop.xlane.xlu0 %4179
  %v4181 = vsel %vm547, %v4111, %v4180
  %v4182 = vld [vmem:[%s9] sm:$0x7]
  %4184 = vset.pattern.permute.xlu0 0
  %4185 = vperm.xlu0 %4184, %v4182
  %v4186 = vpop.permute.xlu0 %4185
  %v4188 = vadd.f32 %v4181, %v4186
  %vm4189 = vcmask 10240
  %4190 = vst.msk [vmem:[%s10] sm:$0x7] %vm4189, %v4188
  // Predicated region
  $region42: #{siamese_net_forward.1} parent=0 // pred_check
    _
  $region43: #{siamese_net_forward.1} parent=0 // pred_check_branch
    %4192 = sbr.rel (0) target = $region45
  $region44: #{siamese_net_forward.1} parent=0 // pred_region
    _
  $region45: #{siamese_net_forward.1} parent=0 // pred_fallthru
    _
  // Predicated region
  $region46: #{siamese_net_forward.1} parent=0 // pred_check
    _
  $region47: #{siamese_net_forward.1} parent=0 // pred_check_branch
    %4194 = sbr.rel (0) target = $region49
  $region48: #{siamese_net_forward.1} parent=0 // pred_region
    _
  $region49: #{siamese_net_forward.1} parent=0 // pred_fallthru
    _

</llo_original>
